<compile_context>
chip_gen: v7x
topology: tpu7x:2x2x1
jax: 0.10.0
libtpu: 0.0.40
codegen_flags: <defaults>
</compile_context>

<pallas_src>
import jax
import jax.numpy as jnp
from jax.experimental import pallas as pl
from jax.experimental.pallas import tpu as pltpu


# -----------------------------------------------------------------------------
# Per-generation VMEM limit
# -----------------------------------------------------------------------------
def _pick_vmem_limit_bytes():
    """~3/4 of physical VMEM, clipped to [32 MiB, 96 MiB]:
    ~96 MiB on 128-MiB parts (v5e/v6e), ~48 MiB on 64-MiB parts (v7x)."""
    try:
        cap = pltpu.get_tpu_info().vmem_capacity_bytes
        return int(min(96 * 1024 * 1024, max(32 * 1024 * 1024, cap * 3 // 4)))
    except Exception:
        return 64 * 1024 * 1024


_VMEM_LIMIT = _pick_vmem_limit_bytes()


# -----------------------------------------------------------------------------
# Shared in-kernel helpers
# -----------------------------------------------------------------------------
def _accum_scalar(o_ref, s):
    """Accumulate scalar `s` into element [0,0,0] of the (1,8,128) accumulator
    block (shaped this way only to satisfy the (8,128) output-tiling rule)."""
    r = jax.lax.broadcasted_iota(jnp.int32, o_ref.shape, 1)
    c = jax.lax.broadcasted_iota(jnp.int32, o_ref.shape, 2)
    o_ref[...] += jnp.where(jnp.logical_and(r == 0, c == 0), s, 0.0)


def _upsample_ce_tile(slab_fn, num_classes, bh, bwt, tgt):
    """Separable bilinear upsample of one OH tile + per-pixel cross-entropy,
    reduced to a scalar.  `slab_fn(k)` returns the [H, W] low-res logit plane
    of class k (bf16).  Online softmax over classes: the [K, T, OW] block is
    never materialized."""
    T = bh.shape[0]
    OW = bwt.shape[1]
    m = jnp.full((T, OW), -1e30, jnp.float32)
    s = jnp.zeros((T, OW), jnp.float32)
    sel = jnp.zeros((T, OW), jnp.float32)
    for k in range(num_classes):
        # H-contraction first (depends only on this tile) -> no redundant
        # W-contraction work across OH tiles; both matmuls bf16 on the MXU.
        tk = jnp.dot(bh, slab_fn(k), preferred_element_type=jnp.float32)      # [T, W]
        up_k = jnp.dot(tk.astype(jnp.bfloat16), bwt,
                       preferred_element_type=jnp.float32)                    # [T, OW]
        m_new = jnp.maximum(m, up_k)
        s = s * jnp.exp(m - m_new) + jnp.exp(up_k - m_new)
        sel = sel + jnp.where(tgt == k, up_k, 0.0)
        m = m_new
    # TODO(synk): no ignore_index / class-weight handling (losses_cfg not specified).
    nll = jnp.log(s) + m - sel                                                # [T, OW]
    return jnp.sum(nll)


# -----------------------------------------------------------------------------
# Kernel 1: main head — fused bilinear upsample + cross-entropy partial sum.
# Grid = (batch, OH tiles); full-res logits never touch HBM.
# -----------------------------------------------------------------------------
def upsample_ce_kernel(x_ref, bh_ref, bwt_ref, tgt_ref, o_ref):
    # x_ref:   [1, K, H, W]  low-res logits (native NCHW, bf16, W lane-dense)
    # bh_ref:  [T, H]        row-interp weights for this OH tile (bf16)
    # bwt_ref: [W, OW]       col-interp weights, pre-transposed (bf16)
    # tgt_ref: [1, T, OW]    int32 class targets for this tile
    # o_ref:   [1, 8, 128]   per-batch partial NLL sum (resident across t)
    @pl.when(pl.program_id(1) == 0)
    def _():
        o_ref[...] = jnp.zeros_like(o_ref)

    num_classes = x_ref.shape[1]
    s = _upsample_ce_tile(lambda k: x_ref[0, k], num_classes,
                          bh_ref[...], bwt_ref[...], tgt_ref[0])
    _accum_scalar(o_ref, s)


def upsample_ce_mean(x_nkhw_bf16, targets, bh, bwt, tile_oh):
    N, K, H, W = x_nkhw_bf16.shape
    OH = bh.shape[0]
    OW = bwt.shape[1]
    if OH % tile_oh != 0 or (tile_oh % 8 != 0 and tile_oh != OH):
        tile_oh = OH
    n_tiles = OH // tile_oh
    partials = pl.pallas_call(
        upsample_ce_kernel,
        out_shape=jax.ShapeDtypeStruct((N, 8, 128), jnp.float32),
        grid=(N, n_tiles),
        in_specs=[
            pl.BlockSpec((1, K, H, W), lambda n, t: (n, 0, 0, 0)),
            pl.BlockSpec((tile_oh, H), lambda n, t: (t, 0)),
            pl.BlockSpec((W, OW), lambda n, t: (0, 0)),
            pl.BlockSpec((1, tile_oh, OW), lambda n, t: (n, t, 0)),
        ],
        out_specs=pl.BlockSpec((1, 8, 128), lambda n, t: (n, 0, 0)),
        compiler_params=pltpu.CompilerParams(
            dimension_semantics=("parallel", "arbitrary"),
            vmem_limit_bytes=_VMEM_LIMIT),
    )(x_nkhw_bf16, bh, bwt, targets)
    return jnp.sum(partials[:, 0, 0]) / jnp.float32(N * OH * OW)


# -----------------------------------------------------------------------------
# Kernel 2: auxiliary head — fused aux decoder (conv3x3->BN->ReLU->conv1x1)
# + bilinear upsample + cross-entropy partial sum.  The low-res aux logits are
# computed once per batch element (t == 0) into a VMEM scratch and never hit
# HBM; subsequent OH tiles reuse them.
# -----------------------------------------------------------------------------
def aux_fused_ce_kernel(feat_ref, w1_ref, scale_ref, shift_ref, w2_ref, b2_ref,
                        bh_ref, bwt_ref, tgt_ref, o_ref, logits_ref):
    # feat_ref: [1, H+2, W+2, Cin] bf16 padded NHWC feature
    # w1_ref:   [3, 3, Cin, Cmid]  bf16 ; scale/shift: [1, Cmid] f32 (frozen BN)
    # w2_ref:   [Cmid, K] bf16 ; b2_ref: [1, K] f32
    # bh/bwt/tgt/o_ref: as in upsample_ce_kernel
    # logits_ref: VMEM scratch [H, K, W] bf16 (resident aux logits)
    Hp2, Wp2, Cin = feat_ref.shape[1], feat_ref.shape[2], feat_ref.shape[3]
    H, W = Hp2 - 2, Wp2 - 2
    Cmid = w1_ref.shape[3]
    K = w2_ref.shape[1]

    @pl.when(pl.program_id(1) == 0)
    def _():
        o_ref[...] = jnp.zeros_like(o_ref)
        # conv3x3 (no bias) as 9 accumulated shifted matmuls (no im2col blow-up)
        acc = jnp.zeros((H * W, Cmid), jnp.float32)
        for dy in range(3):
            for dx in range(3):
                xs = feat_ref[0, pl.ds(dy, H), pl.ds(dx, W), :]       # [H, W, Cin]
                acc = acc + jnp.dot(xs.reshape(H * W, Cin), w1_ref[dy, dx],
                                    preferred_element_type=jnp.float32)
        # frozen (eval-mode) BatchNorm affine + ReLU on the VPU
        # TODO(synk): training-mode BN (batch statistics) not reproduced.
        hmid = jnp.maximum(acc * scale_ref[...] + shift_ref[...], 0.0)
        # TODO(synk): Dropout2d is identity here (eval / deterministic).
        logits = jnp.dot(hmid.astype(jnp.bfloat16), w2_ref[...],
                         preferred_element_type=jnp.float32) + b2_ref[...]  # [H*W, K]
        # [H*W, K] -> [H, K, W]: lane-dense, per-class slabs for the CE loop.
        logits_ref[...] = jnp.transpose(
            logits.reshape(H, W, K), (0, 2, 1)).astype(jnp.bfloat16)

    s = _upsample_ce_tile(lambda k: logits_ref[:, k, :], K,
                          bh_ref[...], bwt_ref[...], tgt_ref[0])
    _accum_scalar(o_ref, s)


def aux_fused_ce_mean(feat_pad, w1, scale, shift, w2, b2, targets, bh, bwt, tile_oh):
    N, Hp2, Wp2, Cin = feat_pad.shape
    H, W = Hp2 - 2, Wp2 - 2
    Cmid = w1.shape[3]
    K = w2.shape[1]
    OH = bh.shape[0]
    OW = bwt.shape[1]
    if OH % tile_oh != 0 or (tile_oh % 8 != 0 and tile_oh != OH):
        tile_oh = OH
    n_tiles = OH // tile_oh
    # TODO(synk): for very large feature maps on v7x, add an H-row grid axis
    # with a 2-row halo so the per-batch feature block is not fully resident.
    partials = pl.pallas_call(
        aux_fused_ce_kernel,
        out_shape=jax.ShapeDtypeStruct((N, 8, 128), jnp.float32),
        grid=(N, n_tiles),
        in_specs=[
            pl.BlockSpec((1, Hp2, Wp2, Cin), lambda n, t: (n, 0, 0, 0)),
            pl.BlockSpec((3, 3, Cin, Cmid), lambda n, t: (0, 0, 0, 0)),
            pl.BlockSpec((1, Cmid), lambda n, t: (0, 0)),
            pl.BlockSpec((1, Cmid), lambda n, t: (0, 0)),
            pl.BlockSpec((Cmid, K), lambda n, t: (0, 0)),
            pl.BlockSpec((1, K), lambda n, t: (0, 0)),
            pl.BlockSpec((tile_oh, H), lambda n, t: (t, 0)),
            pl.BlockSpec((W, OW), lambda n, t: (0, 0)),
            pl.BlockSpec((1, tile_oh, OW), lambda n, t: (n, t, 0)),
        ],
        out_specs=pl.BlockSpec((1, 8, 128), lambda n, t: (n, 0, 0)),
        scratch_shapes=[pltpu.VMEM((H, K, W), jnp.bfloat16)],
        compiler_params=pltpu.CompilerParams(
            dimension_semantics=("parallel", "arbitrary"),
            vmem_limit_bytes=_VMEM_LIMIT),
    )(feat_pad, w1, scale, shift, w2, b2, bh, bwt, targets)
    return jnp.sum(partials[:, 0, 0]) / jnp.float32(N * OH * OW)


# -----------------------------------------------------------------------------
# Plain-JAX glue: 1-D interpolation matrices, tile choice, parameters
# -----------------------------------------------------------------------------
def bilinear_matrix(in_size, out_size, align_corners=False):
    """1-D interpolation weights [out_size, in_size] matching F.interpolate."""
    if align_corners and out_size > 1:
        src = jnp.arange(out_size, dtype=jnp.float32) * (in_size - 1) / (out_size - 1)
    else:
        scale = in_size / out_size
        src = (jnp.arange(out_size, dtype=jnp.float32) + 0.5) * scale - 0.5
        src = jnp.maximum(src, 0.0)
    i0 = jnp.minimum(jnp.floor(src).astype(jnp.int32), in_size - 1)
    i1 = jnp.minimum(i0 + 1, in_size - 1)
    lam = src - i0.astype(jnp.float32)
    a0 = jax.nn.one_hot(i0, in_size, dtype=jnp.float32) * (1.0 - lam)[:, None]
    a1 = jax.nn.one_hot(i1, in_size, dtype=jnp.float32) * lam[:, None]
    return a0 + a1  # [out_size, in_size]


def choose_oh_tile(oh, ow, cap=128, budget_bytes=8 * 1024 * 1024):
    """Largest multiple-of-8 divisor of `oh` <= cap whose per-tile f32 working
    set (a handful of [tile, OW] planes) fits the budget; else full extent."""
    if oh % 8 != 0 or oh <= 8:
        return oh
    per_row = 8 * 4 * max(ow, 1)
    max_t = max(8, min(cap, budget_bytes // per_row))
    t = min((max_t // 8) * 8, oh)
    while t >= 8:
        if oh % t == 0:
            return t
        t -= 8
    return oh


class PallasBaseSegmentor:
    """Pallas version of BaseSegmentor.forwardtrain + calculatelosses."""

    def __init__(self, cfg, key):
        self.cfg = cfg
        self.align_corners = cfg['align_corners']
        self.loss_tile_oh = cfg.get('loss_tile_oh', None)
        c_in, c_mid, num_classes = (cfg['aux_in_channels'],
                                    cfg['aux_out_channels'],
                                    cfg['num_classes'])
        k1, k2, k3, k4, k5 = jax.random.split(key, 5)

        # conv3x3, PyTorch layout [Cout, Cin, kh, kw], bias=False
        w_conv3 = 0.1 * jax.random.normal(k1, (c_mid, c_in, 3, 3), jnp.float32)
        self.w1 = jnp.transpose(w_conv3, (2, 3, 1, 0)).astype(jnp.bfloat16)  # [3,3,Cin,Cmid]

        # frozen (eval-mode) BatchNorm: y = x * scale + shift (f32)
        gamma = jnp.ones((c_mid,), jnp.float32)
        beta = jnp.zeros((c_mid,), jnp.float32)
        running_mean = 0.01 * jax.random.normal(k2, (c_mid,), jnp.float32)
        running_var = 1.0 + 0.1 * jnp.abs(jax.random.normal(k3, (c_mid,), jnp.float32))
        eps = 1e-5
        scale = gamma / jnp.sqrt(running_var + eps)
        self.bn_scale = scale.reshape(1, c_mid)
        self.bn_shift = (beta - running_mean * scale).reshape(1, c_mid)

        # conv1x1, PyTorch layout [K, Cmid, 1, 1] + bias
        w_conv1 = 0.1 * jax.random.normal(k4, (num_classes, c_mid, 1, 1), jnp.float32)
        self.w2 = jnp.transpose(w_conv1[:, :, 0, 0], (1, 0)).astype(jnp.bfloat16)  # [Cmid, K]
        self.b2 = (0.05 * jax.random.normal(k5, (num_classes,), jnp.float32)
                   ).reshape(1, num_classes)

    def forwardtrain(self, predictions, targets, backbone_outputs, img_size):
        OH, OW = img_size
        targets = targets.astype(jnp.int32)
        tile_oh = self.loss_tile_oh or choose_oh_tile(OH, OW)

        # ---- main head: fused upsample + CE (predictions stay in NCHW) ----
        N, K, H, W = predictions.shape
        bh = bilinear_matrix(H, OH, self.align_corners).astype(jnp.bfloat16)
        bwt = bilinear_matrix(W, OW, self.align_corners).T.astype(jnp.bfloat16)
        loss_cls = upsample_ce_mean(predictions.astype(jnp.bfloat16),
                                    targets, bh, bwt, tile_oh)

        # ---- aux head: fused decoder + upsample + CE ----
        aux_in = backbone_outputs[:-1][-1]                    # [N, Cin, h, w] NCHW
        ha, wa = aux_in.shape[2], aux_in.shape[3]
        bh_a = bilinear_matrix(ha, OH, self.align_corners).astype(jnp.bfloat16)
        bwt_a = bilinear_matrix(wa, OW, self.align_corners).T.astype(jnp.bfloat16)
        # TODO(synk): the NHWC transpose + pad are extra HBM passes; they could
        # be folded into the kernel (masked edge taps) if the backbone layout
        # cannot be changed.
        feat_pad = jnp.pad(jnp.transpose(aux_in, (0, 2, 3, 1)),
                           ((0, 0), (1, 1), (1, 1), (0, 0))).astype(jnp.bfloat16)
        loss_aux = aux_fused_ce_mean(feat_pad, self.w1, self.bn_scale, self.bn_shift,
                                     self.w2, self.b2, targets, bh_a, bwt_a, tile_oh)

        loss = loss_cls + loss_aux
        # TODO(synk): torch.distributed all_reduce of the log values has no
        # single-device Pallas equivalent; values are returned locally.
        losses_log_dict = {
            'loss_cls': loss_cls.reshape(1),
            'loss_aux': loss_aux.reshape(1),
            'total': loss.reshape(1),
        }
        return loss, losses_log_dict


if __name__ == "__main__":
    key = jax.random.PRNGKey(0)
    k_feat, k_pred, k_tgt, k_param = jax.random.split(key, 4)

    cfg = {
        'align_corners': False,
        'num_classes': 5,
        'aux_in_channels': 8,
        'aux_out_channels': 16,
        'loss_tile_oh': None,     # let choose_oh_tile pick (128-row tiles here)
    }
    N, Cin, h, w = 2, 8, 32, 32
    OH = OW = 256                 # 8x upsample -> 2 OH tiles per batch element
    K = cfg['num_classes']

    # backbone feature maps (NCHW, as PyTorch would hand them over)
    backbone_outputs = [
        jax.random.normal(jax.random.fold_in(k_feat, i), (N, Cin, h, w), jnp.float32)
        for i in range(4)
    ]
    # main decode-head predictions (argument to forwardtrain), NCHW
    predictions = jax.random.normal(k_pred, (N, K, h, w), jnp.float32)
    # per-pixel class targets at full image size
    targets = jax.random.randint(k_tgt, (N, OH, OW), 0, K, dtype=jnp.int32)

    model = PallasBaseSegmentor(cfg, k_param)
    loss, log_dict = model.forwardtrain(predictions, targets, backbone_outputs, (OH, OW))
    jax.block_until_ready(loss)
    jax.block_until_ready(log_dict['total'])
    print("KERNEL_OK")
</pallas_src>

<mosaic_0001>
module attributes {stable_mosaic.version = 11 : i64} {
  func.func @upsample_ce_kernel(%arg0: i32, %arg1: i32, %arg2: memref<1x5x32x32xbf16, #tpu.memory_space<vmem>>, %arg3: memref<128x32xbf16, #tpu.memory_space<vmem>>, %arg4: memref<32x256xbf16, #tpu.memory_space<vmem>>, %arg5: memref<1x128x256xi32, #tpu.memory_space<vmem>>, %arg6: memref<1x8x128xf32, #tpu.memory_space<vmem>>) attributes {dimension_semantics = [#tpu.dimension_semantics<parallel>, #tpu.dimension_semantics<arbitrary>], iteration_bounds = array<i64: 2, 2>, scalar_prefetch = 0 : i64, scratch_operands = 0 : i64, tpu.core_type = #tpu.core_type<tc>, window_params = [{transform_indices = @transform_0, window_bounds = array<i64: 1, 5, 32, 32>}, {transform_indices = @transform_1, window_bounds = array<i64: 128, 32>}, {pipeline_mode = #tpu.pipeline_mode<synchronous>, transform_indices = @transform_2, window_bounds = array<i64: 32, 256>}, {transform_indices = @transform_3, window_bounds = array<i64: 1, 128, 256>}, {transform_indices = @transform_4, window_bounds = array<i64: 1, 8, 128>}]} {
    %c0_i32 = arith.constant 0 : i32
    %0 = arith.cmpi eq, %arg1, %c0_i32 : i32
    %1 = arith.extui %0 : i1 to i32
    %c0_i32_0 = arith.constant 0 : i32
    %2 = arith.cmpi ne, %1, %c0_i32_0 : i32
    scf.if %2 {
      %cst_51 = arith.constant 0.000000e+00 : f32
      %115 = vector.broadcast %cst_51 : f32 to vector<1x8x128xf32>
      %c0_52 = arith.constant 0 : index
      %c0_53 = arith.constant 0 : index
      %c0_54 = arith.constant 0 : index
      %116 = vector.load %arg6[%c0_52, %c0_53, %c0_54] : memref<1x8x128xf32, #tpu.memory_space<vmem>>, vector<1x8x128xf32>
      tpu.vector_store %arg6[%c0_52, %c0_53, %c0_54], %115 {strides = array<i32>} : memref<1x8x128xf32, #tpu.memory_space<vmem>>, vector<1x8x128xf32>,
    } else {
    }
    %c0 = arith.constant 0 : index
    %c0_1 = arith.constant 0 : index
    %3 = vector.load %arg3[%c0, %c0_1] : memref<128x32xbf16, #tpu.memory_space<vmem>>, vector<128x32xbf16>
    %c0_2 = arith.constant 0 : index
    %c0_3 = arith.constant 0 : index
    %4 = vector.load %arg4[%c0_2, %c0_3] : memref<32x256xbf16, #tpu.memory_space<vmem>>, vector<32x256xbf16>
    %c0_4 = arith.constant 0 : index
    %c0_5 = arith.constant 0 : index
    %c0_6 = arith.constant 0 : index
    %5 = vector.load %arg5[%c0_4, %c0_5, %c0_6] : memref<1x128x256xi32, #tpu.memory_space<vmem>>, vector<1x128x256xi32>
    %6 = vector.shape_cast %5 : vector<1x128x256xi32> to vector<128x256xi32>
    %cst = arith.constant -1.000000e+30 : f32
    %7 = vector.broadcast %cst : f32 to vector<128x256xf32>
    %cst_7 = arith.constant 0.000000e+00 : f32
    %8 = vector.broadcast %cst_7 : f32 to vector<128x256xf32>
    %cst_8 = arith.constant 0.000000e+00 : f32
    %9 = vector.broadcast %cst_8 : f32 to vector<128x256xf32>
    %c0_9 = arith.constant 0 : index
    %c0_10 = arith.constant 0 : index
    %c0_11 = arith.constant 0 : index
    %c0_12 = arith.constant 0 : index
    %10 = vector.load %arg2[%c0_9, %c0_10, %c0_11, %c0_12] : memref<1x5x32x32xbf16, #tpu.memory_space<vmem>>, vector<1x1x32x32xbf16>
    %11 = vector.shape_cast %10 : vector<1x1x32x32xbf16> to vector<32x32xbf16>
    %cst_13 = arith.constant dense<0.000000e+00> : vector<128x32xf32>
    %12 = tpu.matmul %3, %11, %cst_13 {dimension_numbers = #tpu.dot_dimension_numbers<[1], [0], [0], [1], [0, 0, 1, 1], [], []>} : vector<128x32xbf16>, vector<32x32xbf16>, vector<128x32xf32> -> vector<128x32xf32>
    %13 = arith.truncf %12 : vector<128x32xf32> to vector<128x32xbf16>
    %cst_14 = arith.constant dense<0.000000e+00> : vector<128x256xf32>
    %14 = tpu.matmul %13, %4, %cst_14 {dimension_numbers = #tpu.dot_dimension_numbers<[1], [0], [0], [1], [0, 0, 1, 1], [], []>} : vector<128x32xbf16>, vector<32x256xbf16>, vector<128x256xf32> -> vector<128x256xf32>
    %15 = arith.maximumf %7, %14 : vector<128x256xf32>
    %16 = arith.subf %7, %15 : vector<128x256xf32>
    %17 = math.exp %16 : vector<128x256xf32>
    %18 = arith.mulf %8, %17 : vector<128x256xf32>
    %19 = arith.subf %14, %15 : vector<128x256xf32>
    %20 = math.exp %19 : vector<128x256xf32>
    %21 = arith.addf %18, %20 : vector<128x256xf32>
    %c0_i32_15 = arith.constant 0 : i32
    %22 = vector.broadcast %c0_i32_15 : i32 to vector<128x256xi32>
    %23 = arith.cmpi eq, %6, %22 : vector<128x256xi32>
    %cst_16 = arith.constant 0.000000e+00 : f32
    %24 = vector.broadcast %cst_16 : f32 to vector<128x256xf32>
    %25 = arith.select %23, %14, %24 : vector<128x256xi1>, vector<128x256xf32>
    %26 = arith.addf %9, %25 : vector<128x256xf32>
    %c0_17 = arith.constant 0 : index
    %c1 = arith.constant 1 : index
    %c0_18 = arith.constant 0 : index
    %c0_19 = arith.constant 0 : index
    %27 = vector.load %arg2[%c0_17, %c1, %c0_18, %c0_19] : memref<1x5x32x32xbf16, #tpu.memory_space<vmem>>, vector<1x1x32x32xbf16>
    %28 = vector.shape_cast %27 : vector<1x1x32x32xbf16> to vector<32x32xbf16>
    %cst_20 = arith.constant dense<0.000000e+00> : vector<128x32xf32>
    %29 = tpu.matmul %3, %28, %cst_20 {dimension_numbers = #tpu.dot_dimension_numbers<[1], [0], [0], [1], [0, 0, 1, 1], [], []>} : vector<128x32xbf16>, vector<32x32xbf16>, vector<128x32xf32> -> vector<128x32xf32>
    %30 = arith.truncf %29 : vector<128x32xf32> to vector<128x32xbf16>
    %cst_21 = arith.constant dense<0.000000e+00> : vector<128x256xf32>
    %31 = tpu.matmul %30, %4, %cst_21 {dimension_numbers = #tpu.dot_dimension_numbers<[1], [0], [0], [1], [0, 0, 1, 1], [], []>} : vector<128x32xbf16>, vector<32x256xbf16>, vector<128x256xf32> -> vector<128x256xf32>
    %32 = arith.maximumf %15, %31 : vector<128x256xf32>
    %33 = arith.subf %15, %32 : vector<128x256xf32>
    %34 = math.exp %33 : vector<128x256xf32>
    %35 = arith.mulf %21, %34 : vector<128x256xf32>
    %36 = arith.subf %31, %32 : vector<128x256xf32>
    %37 = math.exp %36 : vector<128x256xf32>
    %38 = arith.addf %35, %37 : vector<128x256xf32>
    %c1_i32 = arith.constant 1 : i32
    %39 = vector.broadcast %c1_i32 : i32 to vector<128x256xi32>
    %40 = arith.cmpi eq, %6, %39 : vector<128x256xi32>
    %cst_22 = arith.constant 0.000000e+00 : f32
    %41 = vector.broadcast %cst_22 : f32 to vector<128x256xf32>
    %42 = arith.select %40, %31, %41 : vector<128x256xi1>, vector<128x256xf32>
    %43 = arith.addf %26, %42 : vector<128x256xf32>
    %c0_23 = arith.constant 0 : index
    %c2 = arith.constant 2 : index
    %c0_24 = arith.constant 0 : index
    %c0_25 = arith.constant 0 : index
    %44 = vector.load %arg2[%c0_23, %c2, %c0_24, %c0_25] : memref<1x5x32x32xbf16, #tpu.memory_space<vmem>>, vector<1x1x32x32xbf16>
    %45 = vector.shape_cast %44 : vector<1x1x32x32xbf16> to vector<32x32xbf16>
    %cst_26 = arith.constant dense<0.000000e+00> : vector<128x32xf32>
    %46 = tpu.matmul %3, %45, %cst_26 {dimension_numbers = #tpu.dot_dimension_numbers<[1], [0], [0], [1], [0, 0, 1, 1], [], []>} : vector<128x32xbf16>, vector<32x32xbf16>, vector<128x32xf32> -> vector<128x32xf32>
    %47 = arith.truncf %46 : vector<128x32xf32> to vector<128x32xbf16>
    %cst_27 = arith.constant dense<0.000000e+00> : vector<128x256xf32>
    %48 = tpu.matmul %47, %4, %cst_27 {dimension_numbers = #tpu.dot_dimension_numbers<[1], [0], [0], [1], [0, 0, 1, 1], [], []>} : vector<128x32xbf16>, vector<32x256xbf16>, vector<128x256xf32> -> vector<128x256xf32>
    %49 = arith.maximumf %32, %48 : vector<128x256xf32>
    %50 = arith.subf %32, %49 : vector<128x256xf32>
    %51 = math.exp %50 : vector<128x256xf32>
    %52 = arith.mulf %38, %51 : vector<128x256xf32>
    %53 = arith.subf %48, %49 : vector<128x256xf32>
    %54 = math.exp %53 : vector<128x256xf32>
    %55 = arith.addf %52, %54 : vector<128x256xf32>
    %c2_i32 = arith.constant 2 : i32
    %56 = vector.broadcast %c2_i32 : i32 to vector<128x256xi32>
    %57 = arith.cmpi eq, %6, %56 : vector<128x256xi32>
    %cst_28 = arith.constant 0.000000e+00 : f32
    %58 = vector.broadcast %cst_28 : f32 to vector<128x256xf32>
    %59 = arith.select %57, %48, %58 : vector<128x256xi1>, vector<128x256xf32>
    %60 = arith.addf %43, %59 : vector<128x256xf32>
    %c0_29 = arith.constant 0 : index
    %c3 = arith.constant 3 : index
    %c0_30 = arith.constant 0 : index
    %c0_31 = arith.constant 0 : index
    %61 = vector.load %arg2[%c0_29, %c3, %c0_30, %c0_31] : memref<1x5x32x32xbf16, #tpu.memory_space<vmem>>, vector<1x1x32x32xbf16>
    %62 = vector.shape_cast %61 : vector<1x1x32x32xbf16> to vector<32x32xbf16>
    %cst_32 = arith.constant dense<0.000000e+00> : vector<128x32xf32>
    %63 = tpu.matmul %3, %62, %cst_32 {dimension_numbers = #tpu.dot_dimension_numbers<[1], [0], [0], [1], [0, 0, 1, 1], [], []>} : vector<128x32xbf16>, vector<32x32xbf16>, vector<128x32xf32> -> vector<128x32xf32>
    %64 = arith.truncf %63 : vector<128x32xf32> to vector<128x32xbf16>
    %cst_33 = arith.constant dense<0.000000e+00> : vector<128x256xf32>
    %65 = tpu.matmul %64, %4, %cst_33 {dimension_numbers = #tpu.dot_dimension_numbers<[1], [0], [0], [1], [0, 0, 1, 1], [], []>} : vector<128x32xbf16>, vector<32x256xbf16>, vector<128x256xf32> -> vector<128x256xf32>
    %66 = arith.maximumf %49, %65 : vector<128x256xf32>
    %67 = arith.subf %49, %66 : vector<128x256xf32>
    %68 = math.exp %67 : vector<128x256xf32>
    %69 = arith.mulf %55, %68 : vector<128x256xf32>
    %70 = arith.subf %65, %66 : vector<128x256xf32>
    %71 = math.exp %70 : vector<128x256xf32>
    %72 = arith.addf %69, %71 : vector<128x256xf32>
    %c3_i32 = arith.constant 3 : i32
    %73 = vector.broadcast %c3_i32 : i32 to vector<128x256xi32>
    %74 = arith.cmpi eq, %6, %73 : vector<128x256xi32>
    %cst_34 = arith.constant 0.000000e+00 : f32
    %75 = vector.broadcast %cst_34 : f32 to vector<128x256xf32>
    %76 = arith.select %74, %65, %75 : vector<128x256xi1>, vector<128x256xf32>
    %77 = arith.addf %60, %76 : vector<128x256xf32>
    %c0_35 = arith.constant 0 : index
    %c4 = arith.constant 4 : index
    %c0_36 = arith.constant 0 : index
    %c0_37 = arith.constant 0 : index
    %78 = vector.load %arg2[%c0_35, %c4, %c0_36, %c0_37] : memref<1x5x32x32xbf16, #tpu.memory_space<vmem>>, vector<1x1x32x32xbf16>
    %79 = vector.shape_cast %78 : vector<1x1x32x32xbf16> to vector<32x32xbf16>
    %cst_38 = arith.constant dense<0.000000e+00> : vector<128x32xf32>
    %80 = tpu.matmul %3, %79, %cst_38 {dimension_numbers = #tpu.dot_dimension_numbers<[1], [0], [0], [1], [0, 0, 1, 1], [], []>} : vector<128x32xbf16>, vector<32x32xbf16>, vector<128x32xf32> -> vector<128x32xf32>
    %81 = arith.truncf %80 : vector<128x32xf32> to vector<128x32xbf16>
    %cst_39 = arith.constant dense<0.000000e+00> : vector<128x256xf32>
    %82 = tpu.matmul %81, %4, %cst_39 {dimension_numbers = #tpu.dot_dimension_numbers<[1], [0], [0], [1], [0, 0, 1, 1], [], []>} : vector<128x32xbf16>, vector<32x256xbf16>, vector<128x256xf32> -> vector<128x256xf32>
    %83 = arith.maximumf %66, %82 : vector<128x256xf32>
    %84 = arith.subf %66, %83 : vector<128x256xf32>
    %85 = math.exp %84 : vector<128x256xf32>
    %86 = arith.mulf %72, %85 : vector<128x256xf32>
    %87 = arith.subf %82, %83 : vector<128x256xf32>
    %88 = math.exp %87 : vector<128x256xf32>
    %89 = arith.addf %86, %88 : vector<128x256xf32>
    %c4_i32 = arith.constant 4 : i32
    %90 = vector.broadcast %c4_i32 : i32 to vector<128x256xi32>
    %91 = arith.cmpi eq, %6, %90 : vector<128x256xi32>
    %cst_40 = arith.constant 0.000000e+00 : f32
    %92 = vector.broadcast %cst_40 : f32 to vector<128x256xf32>
    %93 = arith.select %91, %82, %92 : vector<128x256xi1>, vector<128x256xf32>
    %94 = arith.addf %77, %93 : vector<128x256xf32>
    %95 = math.log %89 : vector<128x256xf32>
    %96 = arith.addf %95, %83 : vector<128x256xf32>
    %97 = arith.subf %96, %94 : vector<128x256xf32>
    %98 = vector.shape_cast %97 : vector<128x256xf32> to vector<1x128x256xf32>
    %cst_41 = arith.constant dense<0.000000e+00> : vector<1xf32>
    %99 = vector.multi_reduction <add>, %98, %cst_41 [1, 2] : vector<1x128x256xf32> to vector<1xf32>
    %100 = vector.shape_cast %99 : vector<1xf32> to vector<1x1x1xf32>
    %101 = vector.extract %100[0, 0, 0] : f32 from vector<1x1x1xf32>
    %102 = tpu.iota {dimensions = array<i32: 1>} : vector<1x8x128xi32>
    %103 = tpu.iota {dimensions = array<i32: 2>} : vector<1x8x128xi32>
    %c0_42 = arith.constant 0 : index
    %c0_43 = arith.constant 0 : index
    %c0_44 = arith.constant 0 : index
    %104 = vector.load %arg6[%c0_42, %c0_43, %c0_44] : memref<1x8x128xf32, #tpu.memory_space<vmem>>, vector<1x8x128xf32>
    %c0_i32_45 = arith.constant 0 : i32
    %105 = vector.broadcast %c0_i32_45 : i32 to vector<1x8x128xi32>
    %106 = arith.cmpi eq, %102, %105 : vector<1x8x128xi32>
    %c0_i32_46 = arith.constant 0 : i32
    %107 = vector.broadcast %c0_i32_46 : i32 to vector<1x8x128xi32>
    %108 = arith.cmpi eq, %103, %107 : vector<1x8x128xi32>
    %109 = arith.andi %106, %108 : vector<1x8x128xi1>
    %cst_47 = arith.constant 0.000000e+00 : f32
    %110 = vector.broadcast %101 : f32 to vector<1x8x128xf32>
    %111 = vector.broadcast %cst_47 : f32 to vector<1x8x128xf32>
    %112 = arith.select %109, %110, %111 : vector<1x8x128xi1>, vector<1x8x128xf32>
    %113 = arith.addf %104, %112 : vector<1x8x128xf32>
    %c0_48 = arith.constant 0 : index
    %c0_49 = arith.constant 0 : index
    %c0_50 = arith.constant 0 : index
    %114 = vector.load %arg6[%c0_48, %c0_49, %c0_50] : memref<1x8x128xf32, #tpu.memory_space<vmem>>, vector<1x8x128xf32>
    tpu.vector_store %arg6[%c0_48, %c0_49, %c0_50], %113 {strides = array<i32>} : memref<1x8x128xf32, #tpu.memory_space<vmem>>, vector<1x8x128xf32>,
    return
  }
  func.func @transform_0(%arg0: i32, %arg1: i32) -> (i32, i32, i32, i32) {
    %c0_i32 = arith.constant 0 : i32
    %c0_i32_0 = arith.constant 0 : i32
    %c0_i32_1 = arith.constant 0 : i32
    %c0_i32_2 = arith.constant 0 : i32
    return %arg0, %c0_i32, %c0_i32_0, %c0_i32_1 : i32, i32, i32, i32
  }
  func.func @transform_1(%arg0: i32, %arg1: i32) -> (i32, i32) {
    %c0_i32 = arith.constant 0 : i32
    %c0_i32_0 = arith.constant 0 : i32
    return %arg1, %c0_i32 : i32, i32
  }
  func.func @transform_2(%arg0: i32, %arg1: i32) -> (i32, i32) {
    %c0_i32 = arith.constant 0 : i32
    %c0_i32_0 = arith.constant 0 : i32
    %c0_i32_1 = arith.constant 0 : i32
    return %c0_i32, %c0_i32_0 : i32, i32
  }
  func.func @transform_3(%arg0: i32, %arg1: i32) -> (i32, i32, i32) {
    %c0_i32 = arith.constant 0 : i32
    %c0_i32_0 = arith.constant 0 : i32
    return %arg0, %arg1, %c0_i32 : i32, i32, i32
  }
  func.func @transform_4(%arg0: i32, %arg1: i32) -> (i32, i32, i32) {
    %c0_i32 = arith.constant 0 : i32
    %c0_i32_0 = arith.constant 0 : i32
    %c0_i32_1 = arith.constant 0 : i32
    return %arg0, %c0_i32, %c0_i32_0 : i32, i32, i32
  }
}

</mosaic_0001>

<llo_original>
// kernel: tpu_custom_call.1
$region0: #{tpu_custom_call.1}
  #allocation0 [shape = 'u32[]', space=smem, size = 0x4, offset = 0x4, fixed_abs, tag = 'smem constant byte address 0x4 - core index']
  #allocation1 [shape = 'u32[144,128]{1,0:T(1,128)}', space=vmem, size = 0x12000, scoped, tag = 'internal scratch']
  %s0 = inlined_call_operand.hbm [shape: bf16[2,5,32,32], index: 0, kind: input, shape index: {}]
  %s1 = inlined_call_operand.hbm [shape: bf16[256,32], index: 1, kind: input, shape index: {}]
  %s2 = inlined_call_operand.hbm [shape: bf16[32,256], index: 2, kind: input, shape index: {}]
  %s3 = inlined_call_operand.hbm [shape: s32[2,256,256], index: 3, kind: input, shape index: {}]
  %s4 = inlined_call_operand.hbm [shape: f32[2,8,128], index: 4, kind: output, shape index: {}]
  %s5 = sld [smem:[#allocation0]]
  $region69: #{tpu_custom_call.1} parent=0
    _
  %s7 = ssub.s32 1, %s5
  %s8 = scalar_select 0, %s7, %s5
  $region1: #{tpu_custom_call.1} parent=0
    #allocation2 [shape = 'u8[81920]{0}', space=vmem, size = 0x14000, scoped, tag = 'input window, operand 0']
    #allocation3 [shape = 's32[2]{0}', space=sflag, size = 0x8, scoped, tag = 'scoped memory for tpu_custom_call.1']
    #allocation4 [shape = 's32[2]{0}', space=sflag, size = 0x8, scoped, tag = 'scoped memory for tpu_custom_call.1']
    #allocation5 [shape = 'u8[65536]{0}', space=vmem, size = 0x10000, scoped, tag = 'input window, operand 1']
    #allocation6 [shape = 's32[2]{0}', space=sflag, size = 0x8, scoped, tag = 'scoped memory for tpu_custom_call.1']
    #allocation7 [shape = 'u8[16384]{0}', space=vmem, size = 0x4000, scoped, tag = 'input window, operand 2, single buffered']
    #allocation8 [shape = 'u8[262144]{0}', space=vmem, size = 0x40000, scoped, tag = 'input window, operand 3']
    #allocation9 [shape = 's32[2]{0}', space=sflag, size = 0x8, scoped, tag = 'scoped memory for tpu_custom_call.1']
    #allocation10 [shape = 'u8[8192]{0}', space=vmem, size = 0x2000, scoped, tag = 'output window, operand 0']
    %9 = vsyncpa [#allocation3], 0
    %s10 = scalar_lea.sflag [#allocation3], 1
    %11 = vsyncpa %s10, 0
    %12 = vsyncpa [#allocation6], 0
    %s13 = scalar_lea.sflag [#allocation6], 1
    %14 = vsyncpa %s13, 0
    %15 = vsyncpa [#allocation9], 0
    %s16 = scalar_lea.sflag [#allocation9], 1
    %17 = vsyncpa %s16, 0
    %18 = vsyncpa [#allocation4], 0
    %s19 = scalar_lea.sflag [#allocation4], 1
    %20 = vsyncpa %s19, 0
    loop: start=0, step=1, limit=6
    $region2: #{tpu_custom_call.1} parent=1 // loop_pre_header
      _
    $region3: #{tpu_custom_call.1} parent=1 // loop_header
      %s22 = sphi 0, %s26
      %p23 = scmp.ge.s32.totalorder %s22, 6
      %s29 = sphi 0, %s41
      %s30 = sphi 0, %s37
      %s31 = sphi 0, %s29
      %s32 = sphi 0, %s30
      %s33 = sphi 0, %s31
      %s34 = sphi 0, %s32
      %s44 = sphi 0, %s46
      %s47 = sphi 0, %s44
      %s48 = sphi 0, %s47
      %s64 = sphi 0, %s48
      %s70 = sphi 0, %s72
      %s73 = sphi 0, %s70
      %s74 = sphi 0, %s73
      %s90 = sphi 0, %s74
      %s94 = sphi 0, %s94
      %s96 = sphi 0, %s94
      %s97 = sphi 0, %s96
      %s111 = sphi 0, %s97
      %s119 = sphi 0, %s121
      %s122 = sphi 0, %s119
      %s123 = sphi 0, %s122
      %s139 = sphi 0, %s123
      %s145 = sphi 0, %s147
      %s148 = sphi 0, %s145
      %s149 = sphi 0, %s148
      %s165 = sphi 0, %s149
    $region4: #{tpu_custom_call.1} parent=1 // loop_header_branch
      %25 = sbr.rel (%p23) target = $region8
    $region5: #{tpu_custom_call.1} parent=1 // loop_body
      %s27 = ssub.s32 %s22, 1
      %s28 = ssub.s32 %s22, 2
      %s35 = sadd.s32 1, %s30
      %p36 = scmp.ge.s32.totalorder %s35, 2
      %s37 = scalar_select %p36, 0, %s35
      %s38 = sadd.s32 1, %s29
      %s39 = scalar_select %p36, %s38, %s29
      %p40 = scmp.ge.s32.totalorder %s39, 2
      %s41 = scalar_select %p40, 0, %s39
      %s42 = ssub.s32 %s29, %s41
      %p43 = scmp.eq.s32.totalorder %s42, 0
      %s45 = sadd.s32 %s44, 1
      %s46 = scalar_select %p43, %s44, %s45
      %p49 = pneg %p43
      %p50 = scmp.eq.s32.totalorder %s22, 3
      %p51 = por %p49, %p50
      %p52 = scmp.ne.s32.totalorder %s44, %s47
      %p53 = scmp.eq.s32.totalorder %s22, 0
      %p54 = por %p52, %p53
      %p55 = scmp.ne.s32.totalorder %s44, %s47
      %p56 = scmp.eq.s32.totalorder %s27, 3
      %p57 = por %p55, %p56
      %p58 = scmp.ne.s32.totalorder %s47, %s48
      %p59 = scmp.eq.s32.totalorder %s27, 0
      %p60 = por %p58, %p59
      %p61 = scmp.ne.s32.totalorder %s47, %s48
      %p62 = scmp.eq.s32.totalorder %s28, 3
      %p63 = por %p61, %p62
      %p65 = scmp.ne.s32.totalorder %s48, %s64
      %p66 = scmp.eq.s32.totalorder %s28, 0
      %p67 = por %p65, %p66
      %s68 = ssub.s32 %s30, %s37
      %p69 = scmp.eq.s32.totalorder %s68, 0
      %s71 = sadd.s32 %s70, 1
      %s72 = scalar_select %p69, %s70, %s71
      %p75 = pneg %p69
      %p76 = scmp.eq.s32.totalorder %s22, 3
      %p77 = por %p75, %p76
      %p78 = scmp.ne.s32.totalorder %s70, %s73
      %p79 = scmp.eq.s32.totalorder %s22, 0
      %p80 = por %p78, %p79
      %p81 = scmp.ne.s32.totalorder %s70, %s73
      %p82 = scmp.eq.s32.totalorder %s27, 3
      %p83 = por %p81, %p82
      %p84 = scmp.ne.s32.totalorder %s73, %s74
      %p85 = scmp.eq.s32.totalorder %s27, 0
      %p86 = por %p84, %p85
      %p87 = scmp.ne.s32.totalorder %s73, %s74
      %p88 = scmp.eq.s32.totalorder %s28, 3
      %p89 = por %p87, %p88
      %p91 = scmp.ne.s32.totalorder %s74, %s90
      %p92 = scmp.eq.s32.totalorder %s28, 0
      %p93 = por %p91, %p92
      %s95 = sadd.s32 %s94, 1
      %p98 = scmp.eq.s32.totalorder %s22, 3
      %p99 = scmp.ne.s32.totalorder %s94, %s96
      %p100 = scmp.eq.s32.totalorder %s22, 0
      %p101 = por %p99, %p100
      %p102 = scmp.ne.s32.totalorder %s94, %s96
      %p103 = scmp.eq.s32.totalorder %s27, 3
      %p104 = por %p102, %p103
      %p105 = scmp.ne.s32.totalorder %s96, %s97
      %p106 = scmp.eq.s32.totalorder %s27, 0
      %p107 = por %p105, %p106
      %p108 = scmp.ne.s32.totalorder %s96, %s97
      %p109 = scmp.eq.s32.totalorder %s28, 3
      %p110 = por %p108, %p109
      %p112 = scmp.ne.s32.totalorder %s97, %s111
      %p113 = scmp.eq.s32.totalorder %s28, 0
      %p114 = por %p112, %p113
      %s115 = ssub.s32 %s29, %s41
      %s116 = ssub.s32 %s30, %s37
      %s117 = sor.u32 %s115, %s116
      %p118 = scmp.eq.s32.totalorder %s117, 0
      %s120 = sadd.s32 %s119, 1
      %s121 = scalar_select %p118, %s119, %s120
      %p124 = pneg %p118
      %p125 = scmp.eq.s32.totalorder %s22, 3
      %p126 = por %p124, %p125
      %p127 = scmp.ne.s32.totalorder %s119, %s122
      %p128 = scmp.eq.s32.totalorder %s22, 0
      %p129 = por %p127, %p128
      %p130 = scmp.ne.s32.totalorder %s119, %s122
      %p131 = scmp.eq.s32.totalorder %s27, 3
      %p132 = por %p130, %p131
      %p133 = scmp.ne.s32.totalorder %s122, %s123
      %p134 = scmp.eq.s32.totalorder %s27, 0
      %p135 = por %p133, %p134
      %p136 = scmp.ne.s32.totalorder %s122, %s123
      %p137 = scmp.eq.s32.totalorder %s28, 3
      %p138 = por %p136, %p137
      %p140 = scmp.ne.s32.totalorder %s123, %s139
      %p141 = scmp.eq.s32.totalorder %s28, 0
      %p142 = por %p140, %p141
      %s143 = ssub.s32 %s29, %s41
      %p144 = scmp.eq.s32.totalorder %s143, 0
      %s146 = sadd.s32 %s145, 1
      %s147 = scalar_select %p144, %s145, %s146
      %p150 = pneg %p144
      %p151 = scmp.eq.s32.totalorder %s22, 3
      %p152 = por %p150, %p151
      %p153 = scmp.ne.s32.totalorder %s145, %s148
      %p154 = scmp.eq.s32.totalorder %s22, 0
      %p155 = por %p153, %p154
      %p156 = scmp.ne.s32.totalorder %s145, %s148
      %p157 = scmp.eq.s32.totalorder %s27, 3
      %p158 = por %p156, %p157
      %p159 = scmp.ne.s32.totalorder %s148, %s149
      %p160 = scmp.eq.s32.totalorder %s27, 0
      %p161 = por %p159, %p160
      %p162 = scmp.ne.s32.totalorder %s148, %s149
      %p163 = scmp.eq.s32.totalorder %s28, 3
      %p164 = por %p162, %p163
      %p166 = scmp.ne.s32.totalorder %s149, %s165
      %p167 = scmp.eq.s32.totalorder %s28, 0
      %p168 = por %p166, %p167
      %p169 = scmp.le.s32.totalorder 1, %s22
      %p170 = scmp.lt.s32.totalorder %s22, 5
      %p171 = pnand %p169, %p170
      %p172 = pneg %p171
      // Predicated region
      $region9: #{tpu_custom_call.1} parent=5 // pred_check
        _
      $region10: #{tpu_custom_call.1} parent=5 // pred_check_branch
        %174 = sbr.rel (%p171) target = $region12
      $region11: #{tpu_custom_call.1} parent=5 // pred_region
        %s175 = ssub.s32 %s22, 1
        // Predicated region
        $region13: #{tpu_custom_call.1} parent=11 // pred_check
          %p176 = pneg %p107
        $region14: #{tpu_custom_call.1} parent=11 // pred_check_branch
          %178 = sbr.rel (%p176) target = $region16
        $region15: #{tpu_custom_call.1} parent=11 // pred_region
          %s180 = ssub.s32 512, 512
          %181 = vsyncadd [#allocation6], %s180
          %s182 = sshll.u32 [#allocation7], 4
          %s183 = int_to_ptr.vmem [resolvable:$true] %s182
          %188 = dma.hbm_to_vmem [thread:$0]  %s2, 512, %s183, [#allocation6], 128, 128, 8
        $region16: #{tpu_custom_call.1} parent=11 // pred_fallthru
          _
      $region12: #{tpu_custom_call.1} parent=5 // pred_fallthru
        _
      %p189 = scmp.lt.s32.totalorder %s22, 4
      // Predicated region
      $region17: #{tpu_custom_call.1} parent=5 // pred_check
        %p190 = pneg %p189
      $region18: #{tpu_custom_call.1} parent=5 // pred_check_branch
        %192 = sbr.rel (%p190) target = $region20
      $region19: #{tpu_custom_call.1} parent=5 // pred_region
        // Predicated region
        $region21: #{tpu_custom_call.1} parent=19 // pred_check
          %p193 = pneg %p54
        $region22: #{tpu_custom_call.1} parent=19 // pred_check_branch
          %195 = sbr.rel (%p193) target = $region24
        $region23: #{tpu_custom_call.1} parent=19 // pred_region
          %s196 = sand.u32 %s44, 1
          %s197 = scalar_lea.sflag [#allocation3], %s196
          %s198 = sand.u32 %s44, 1
          %s199 = smul.addr %s198, 80
          %s200 = scalar_lea.vmem [#allocation2], %s199
          %s202 = ssub.s32 1280, 1280
          %203 = vsyncadd %s197, %s202
          %s204 = smul.addr %s29, 20
          %s205 = smul.addr %s204, 64
          %s206 = scalar_lea.hbm %s0, %s205
          %s207 = sshll.u32 %s200, 4
          %s208 = int_to_ptr.vmem [resolvable:$true] %s207
          %213 = dma.hbm_to_vmem [thread:$0]  %s206, 1280, %s208, %s197, 64, 64, 4
        $region24: #{tpu_custom_call.1} parent=19 // pred_fallthru
          _
        // Predicated region
        $region25: #{tpu_custom_call.1} parent=19 // pred_check
          %p214 = pneg %p80
        $region26: #{tpu_custom_call.1} parent=19 // pred_check_branch
          %216 = sbr.rel (%p214) target = $region28
        $region27: #{tpu_custom_call.1} parent=19 // pred_region
          %s217 = sand.u32 %s22, 1
          %s218 = scalar_lea.sflag [#allocation6], %s217
          %s219 = sand.u32 %s70, 1
          %s220 = smul.addr %s219, 64
          %s221 = scalar_lea.vmem [#allocation5], %s220
          %s222 = smul.u32 16, %s30
          %s224 = ssub.s32 1024, 1024
          %225 = vsyncadd %s218, %s224
          %s226 = smul.addr %s222, 64
          %s227 = scalar_lea.hbm %s1, %s226
          %s228 = sshll.u32 %s221, 4
          %s229 = int_to_ptr.vmem [resolvable:$true] %s228
          %234 = dma.hbm_to_vmem [thread:$0]  %s227, 1024, %s229, %s218, 64, 64, 4
        $region28: #{tpu_custom_call.1} parent=19 // pred_fallthru
          _
        // Predicated region
        $region29: #{tpu_custom_call.1} parent=19 // pred_check
          %p235 = pneg %p129
        $region30: #{tpu_custom_call.1} parent=19 // pred_check_branch
          %237 = sbr.rel (%p235) target = $region32
        $region31: #{tpu_custom_call.1} parent=19 // pred_region
          %s238 = sand.u32 %s119, 1
          %s239 = scalar_lea.sflag [#allocation9], %s238
          %s240 = sand.u32 %s119, 1
          %s241 = smul.addr %s240, 256
          %s242 = scalar_lea.vmem [#allocation8], %s241
          %s243 = smul.u32 16, %s30
          %s245 = ssub.s32 4096, 4096
          %246 = vsyncadd %s239, %s245
          %s247 = smul.addr %s243, 2
          %s248 = smul.addr %s29, 64
          %s249 = sadd.s32 %s247, %s248
          %s250 = smul.addr %s249, 128
          %s251 = scalar_lea.hbm %s3, %s250
          %s252 = sshll.u32 %s242, 4
          %s253 = int_to_ptr.vmem [resolvable:$true] %s252
          %258 = dma.hbm_to_vmem [thread:$0]  %s251, 4096, %s253, %s239, 256, 256, 16
        $region32: #{tpu_custom_call.1} parent=19 // pred_fallthru
          _
      $region20: #{tpu_custom_call.1} parent=5 // pred_fallthru
        _
      %p259 = scmp.le.s32.totalorder 1, %s22
      %p260 = scmp.lt.s32.totalorder %s22, 5
      %p261 = pnand %p259, %p260
      %p262 = pneg %p261
      // Predicated region
      $region33: #{tpu_custom_call.1} parent=5 // pred_check
        _
      $region34: #{tpu_custom_call.1} parent=5 // pred_check_branch
        %264 = sbr.rel (%p261) target = $region36
      $region35: #{tpu_custom_call.1} parent=5 // pred_region
        %s265 = ssub.s32 %s22, 1
        %s266 = sand.u32 %s47, 1
        %s267 = scalar_lea.sflag [#allocation3], %s266
        %s268 = sand.u32 %s47, 1
        %s269 = smul.addr %s268, 80
        %s270 = scalar_lea.vmem [#allocation2], %s269
        // Predicated region
        $region37: #{tpu_custom_call.1} parent=35 // pred_check
          %p271 = pneg %p60
        $region38: #{tpu_custom_call.1} parent=35 // pred_check_branch
          %273 = sbr.rel (%p271) target = $region40
        $region39: #{tpu_custom_call.1} parent=35 // pred_region
          %274 = dma.done %s267, 1280
        $region40: #{tpu_custom_call.1} parent=35 // pred_fallthru
          _
        %s275 = sand.u32 %s27, 1
        %s276 = scalar_lea.sflag [#allocation6], %s275
        %s277 = sand.u32 %s73, 1
        %s278 = smul.addr %s277, 64
        %s279 = scalar_lea.vmem [#allocation5], %s278
        // Predicated region
        $region41: #{tpu_custom_call.1} parent=35 // pred_check
          %p280 = pneg %p86
        $region42: #{tpu_custom_call.1} parent=35 // pred_check_branch
          %282 = sbr.rel (%p280) target = $region44
        $region43: #{tpu_custom_call.1} parent=35 // pred_region
          %283 = dma.done %s276, 1024
        $region44: #{tpu_custom_call.1} parent=35 // pred_fallthru
          _
        // Predicated region
        $region45: #{tpu_custom_call.1} parent=35 // pred_check
          %p284 = pneg %p107
        $region46: #{tpu_custom_call.1} parent=35 // pred_check_branch
          %286 = sbr.rel (%p284) target = $region48
        $region47: #{tpu_custom_call.1} parent=35 // pred_region
          %287 = dma.done [#allocation6], 512
        $region48: #{tpu_custom_call.1} parent=35 // pred_fallthru
          _
        %s288 = sand.u32 %s122, 1
        %s289 = scalar_lea.sflag [#allocation9], %s288
        %s290 = sand.u32 %s122, 1
        %s291 = smul.addr %s290, 256
        %s292 = scalar_lea.vmem [#allocation8], %s291
        // Predicated region
        $region49: #{tpu_custom_call.1} parent=35 // pred_check
          %p293 = pneg %p135
        $region50: #{tpu_custom_call.1} parent=35 // pred_check_branch
          %295 = sbr.rel (%p293) target = $region52
        $region51: #{tpu_custom_call.1} parent=35 // pred_region
          %296 = dma.done %s289, 4096
        $region52: #{tpu_custom_call.1} parent=35 // pred_fallthru
          _
        %s297 = sand.u32 %s47, 1
        %s298 = scalar_lea.sflag [#allocation3], %s297
        %s299 = sand.u32 %s47, 1
        %s300 = smul.addr %s299, 80
        %s301 = scalar_lea.vmem [#allocation2], %s300
        %p302 = pneg %p60
        %p303 = pneg %p57
        %s304 = sand.u32 %s27, 1
        %s305 = scalar_lea.sflag [#allocation6], %s304
        %s306 = sand.u32 %s73, 1
        %s307 = smul.addr %s306, 64
        %s308 = scalar_lea.vmem [#allocation5], %s307
        %p309 = pneg %p86
        %p310 = pneg %p83
        %p311 = pneg %p107
        %p312 = pneg %p104
        %s313 = sand.u32 %s122, 1
        %s314 = scalar_lea.sflag [#allocation9], %s313
        %s315 = sand.u32 %s122, 1
        %s316 = smul.addr %s315, 256
        %s317 = scalar_lea.vmem [#allocation8], %s316
        %p318 = pneg %p135
        %p319 = pneg %p132
        %p320 = pneg %p161
        %p321 = pneg %p158
        %s322 = sand.u32 %s148, 1
        %s323 = scalar_lea.sflag [#allocation4], %s322
        %s324 = sand.u32 %s148, 1
        %s325 = smul.addr %s324, 8
        %s326 = scalar_lea.vmem [#allocation10], %s325
        %s327 = smul.u32 16, %s32
        %s328 = smul.u32 16, %s32
        %p330 = scmp.eq.s32.totalorder %s32, 0
        // Predicated region
        $region53: #{tpu_custom_call.1} parent=35 // pred_check
          %p331 = pneg %p330
        $region54: #{tpu_custom_call.1} parent=35 // pred_check_branch
          %333 = sbr.rel (%p331) target = $region56
        $region55: #{tpu_custom_call.1} parent=35 // pred_region
          %334 = vst [vmem:[%s326] sm:$0xff] 0.0
        $region56: #{tpu_custom_call.1} parent=35 // pred_fallthru
          _
        %v335 = vld [vmem:[%s279] sm:$0xf]
        %v336 = vld [vmem:[%s279 + $0x4] sm:$0xf]
        %v337 = vld [vmem:[%s279 + $0x8] sm:$0xf]
        %v338 = vld [vmem:[%s279 + $0xc] sm:$0xf]
        %v339 = vld [vmem:[%s279 + $0x10] sm:$0xf]
        %v340 = vld [vmem:[%s279 + $0x14] sm:$0xf]
        %v341 = vld [vmem:[%s279 + $0x18] sm:$0xf]
        %v342 = vld [vmem:[%s279 + $0x1c] sm:$0xf]
        %v343 = vld [vmem:[%s279 + $0x20] sm:$0xf]
        %v344 = vld [vmem:[%s279 + $0x24] sm:$0xf]
        %v345 = vld [vmem:[%s279 + $0x28] sm:$0xf]
        %v346 = vld [vmem:[%s279 + $0x2c] sm:$0xf]
        %v347 = vld [vmem:[%s279 + $0x30] sm:$0xf]
        %v348 = vld [vmem:[%s279 + $0x34] sm:$0xf]
        %v349 = vld [vmem:[%s279 + $0x38] sm:$0xf]
        %v350 = vld [vmem:[%s279 + $0x3c] sm:$0xf]
        %v351 = vld [vmem:[#allocation7] sm:$0xff]
        %v352 = vld [vmem:[#allocation7 + $0x8] sm:$0xff]
        %v353 = vld [vmem:[#allocation7 + $0x10] sm:$0xff]
        %v354 = vld [vmem:[#allocation7 + $0x18] sm:$0xff]
        %v355 = vld [vmem:[%s292] sm:$0xff]
        %v356 = vld [vmem:[%s292 + $0x8] sm:$0xff]
        %v357 = vld [vmem:[%s292 + $0x10] sm:$0xff]
        %v358 = vld [vmem:[%s292 + $0x18] sm:$0xff]
        %v359 = vld [vmem:[%s292 + $0x20] sm:$0xff]
        %v360 = vld [vmem:[%s292 + $0x28] sm:$0xff]
        %v361 = vld [vmem:[%s292 + $0x30] sm:$0xff]
        %v362 = vld [vmem:[%s292 + $0x38] sm:$0xff]
        %v363 = vld [vmem:[%s292 + $0x40] sm:$0xff]
        %v364 = vld [vmem:[%s292 + $0x48] sm:$0xff]
        %v365 = vld [vmem:[%s292 + $0x50] sm:$0xff]
        %v366 = vld [vmem:[%s292 + $0x58] sm:$0xff]
        %v367 = vld [vmem:[%s292 + $0x60] sm:$0xff]
        %v368 = vld [vmem:[%s292 + $0x68] sm:$0xff]
        %v369 = vld [vmem:[%s292 + $0x70] sm:$0xff]
        %v370 = vld [vmem:[%s292 + $0x78] sm:$0xff]
        %v371 = vld [vmem:[%s292 + $0x80] sm:$0xff]
        %v372 = vld [vmem:[%s292 + $0x88] sm:$0xff]
        %v373 = vld [vmem:[%s292 + $0x90] sm:$0xff]
        %v374 = vld [vmem:[%s292 + $0x98] sm:$0xff]
        %v375 = vld [vmem:[%s292 + $0xa0] sm:$0xff]
        %v376 = vld [vmem:[%s292 + $0xa8] sm:$0xff]
        %v377 = vld [vmem:[%s292 + $0xb0] sm:$0xff]
        %v378 = vld [vmem:[%s292 + $0xb8] sm:$0xff]
        %v379 = vld [vmem:[%s292 + $0xc0] sm:$0xff]
        %v380 = vld [vmem:[%s292 + $0xc8] sm:$0xff]
        %v381 = vld [vmem:[%s292 + $0xd0] sm:$0xff]
        %v382 = vld [vmem:[%s292 + $0xd8] sm:$0xff]
        %v383 = vld [vmem:[%s292 + $0xe0] sm:$0xff]
        %v384 = vld [vmem:[%s292 + $0xe8] sm:$0xff]
        %v385 = vld [vmem:[%s292 + $0xf0] sm:$0xff]
        %v386 = vld [vmem:[%s292 + $0xf8] sm:$0xff]
        %v387 = vld [vmem:[%s270] sm:$0xf]
        %v388 = vld [vmem:[%s270 + $0x4] sm:$0xf]
        %v389 = vld [vmem:[%s270 + $0x8] sm:$0xf]
        %v390 = vld [vmem:[%s270 + $0xc] sm:$0xf]
        %v407 = vunpack.c.l.b16 %v335
        %v408 = vunpack.c.l.b16 %v336
        %v409 = vunpack.c.l.b16 %v337
        %v410 = vunpack.c.l.b16 %v338
        %v411 = vunpack.c.l.b16 %v339
        %v412 = vunpack.c.l.b16 %v340
        %v413 = vunpack.c.l.b16 %v341
        %v414 = vunpack.c.l.b16 %v342
        %v415 = vunpack.c.l.b16 %v343
        %v416 = vunpack.c.l.b16 %v344
        %v417 = vunpack.c.l.b16 %v345
        %v418 = vunpack.c.l.b16 %v346
        %v419 = vunpack.c.l.b16 %v347
        %v420 = vunpack.c.l.b16 %v348
        %v421 = vunpack.c.l.b16 %v349
        %v422 = vunpack.c.l.b16 %v350
        %v423 = vpack.c.b16 %v408, %v407
        %v424 = vpack.c.b16 %v410, %v409
        %v425 = vpack.c.b16 %v412, %v411
        %v426 = vpack.c.b16 %v414, %v413
        %v427 = vpack.c.b16 %v416, %v415
        %v428 = vpack.c.b16 %v418, %v417
        %v429 = vpack.c.b16 %v420, %v419
        %v430 = vpack.c.b16 %v422, %v421
        %v435 = vunpack.c.l.b16 %v387
        %v436 = vunpack.c.l.b16 %v388
        %v437 = vunpack.c.l.b16 %v389
        %v438 = vunpack.c.l.b16 %v390
        %v439 = vpack.c.b16 %v436, %v435
        %v440 = vpack.c.b16 %v438, %v437
        %vm443 = vcmask 261120
        %v445 = vsel %vm443, %v423, 0
        %v448 = vsel %vm443, %v424, 0
        %v451 = vsel %vm443, %v425, 0
        %v454 = vsel %vm443, %v426, 0
        %v457 = vsel %vm443, %v427, 0
        %v460 = vsel %vm443, %v428, 0
        %v463 = vsel %vm443, %v429, 0
        %v466 = vsel %vm443, %v430, 0
        %468 = vmatprep.subr.bf16.mxu0 0
        %469 = vmatpush1.bf16.msra.mxu0 %v439
        %470 = vmatprep.subr.bf16.mxu0 0
        %471 = vmatpush1.bf16.msra.mxu0 %v440
        %472 = vmatprep.subr.bf16.mxu0 0
        %473 = vmatpush1.bf16.msra.mxu0 0
        %474 = vmatprep.subr.bf16.mxu0 0
        %475 = vmatpush1.bf16.msra.mxu0 0
        %476 = vmatprep.subr.bf16.mxu0 0
        %477 = vmatpush1.bf16.msra.mxu0 0
        %478 = vmatprep.subr.bf16.mxu0 0
        %479 = vmatpush1.bf16.msra.mxu0 0
        %480 = vmatprep.subr.bf16.mxu0 0
        %481 = vmatpush1.bf16.msra.mxu0 0
        %482 = vmatprep.subr.bf16.mxu0 0
        %483 = vmatpush1.bf16.msra.mxu0 0
        %484 = vmatprep.subr.bf16.mxu0 0
        %485 = vmatpush1.bf16.msra.mxu0 0
        %486 = vmatprep.subr.bf16.mxu0 0
        %487 = vmatpush1.bf16.msra.mxu0 0
        %488 = vmatprep.subr.bf16.mxu0 0
        %489 = vmatpush1.bf16.msra.mxu0 0
        %490 = vmatprep.subr.bf16.mxu0 0
        %491 = vmatpush1.bf16.msra.mxu0 0
        %492 = vmatprep.subr.bf16.mxu0 0
        %493 = vmatpush1.bf16.msra.mxu0 0
        %494 = vmatprep.subr.bf16.mxu0 0
        %495 = vmatpush1.bf16.msra.mxu0 0
        %496 = vmatprep.subr.bf16.mxu0 0
        %497 = vmatpush1.bf16.msra.mxu0 0
        %498 = vmatprep.subr.bf16.mxu0 0
        %499 = vmatpush1.bf16.msra.mxu0 0
        %500 = vmatprep.mubr.bf16.mxu0 0
        %501 = vmatmul.mubr.bf16.gmra.mrb[0].mxu0 %v445
        %v502 = vpop.f32.mrb[0].mxu0
        %v503 = vadd.f32 0.0, %v502
        %v504 = vpop.f32.mrb[0].mxu0
        %v505 = vpop.f32.mrb[0].mxu0
        %v506 = vadd.f32 0.0, %v505
        %v507 = vpop.f32.mrb[0].mxu0
        %508 = vmatprep.mubr.bf16.mxu0 0
        %509 = vmatmul.mubr.bf16.gmra.mrb[0].mxu0 %v448
        %v510 = vpop.f32.mrb[0].mxu0
        %v511 = vadd.f32 0.0, %v510
        %v512 = vpop.f32.mrb[0].mxu0
        %v513 = vpop.f32.mrb[0].mxu0
        %v514 = vadd.f32 0.0, %v513
        %v515 = vpop.f32.mrb[0].mxu0
        %516 = vmatprep.mubr.bf16.mxu0 0
        %517 = vmatmul.mubr.bf16.gmra.mrb[0].mxu0 %v451
        %v518 = vpop.f32.mrb[0].mxu0
        %v519 = vadd.f32 0.0, %v518
        %v520 = vpop.f32.mrb[0].mxu0
        %v521 = vpop.f32.mrb[0].mxu0
        %v522 = vadd.f32 0.0, %v521
        %v523 = vpop.f32.mrb[0].mxu0
        %524 = vmatprep.mubr.bf16.mxu0 0
        %525 = vmatmul.mubr.bf16.gmra.mrb[0].mxu0 %v454
        %v526 = vpop.f32.mrb[0].mxu0
        %v527 = vadd.f32 0.0, %v526
        %v528 = vpop.f32.mrb[0].mxu0
        %v529 = vpop.f32.mrb[0].mxu0
        %v530 = vadd.f32 0.0, %v529
        %v531 = vpop.f32.mrb[0].mxu0
        %532 = vmatprep.mubr.bf16.mxu0 0
        %533 = vmatmul.mubr.bf16.gmra.mrb[0].mxu0 %v457
        %v534 = vpop.f32.mrb[0].mxu0
        %v535 = vadd.f32 0.0, %v534
        %v536 = vpop.f32.mrb[0].mxu0
        %v537 = vpop.f32.mrb[0].mxu0
        %v538 = vadd.f32 0.0, %v537
        %v539 = vpop.f32.mrb[0].mxu0
        %540 = vmatprep.mubr.bf16.mxu0 0
        %541 = vmatmul.mubr.bf16.gmra.mrb[0].mxu0 %v460
        %v542 = vpop.f32.mrb[0].mxu0
        %v543 = vadd.f32 0.0, %v542
        %v544 = vpop.f32.mrb[0].mxu0
        %v545 = vpop.f32.mrb[0].mxu0
        %v546 = vadd.f32 0.0, %v545
        %v547 = vpop.f32.mrb[0].mxu0
        %548 = vmatprep.mubr.bf16.mxu0 0
        %549 = vmatmul.mubr.bf16.gmra.mrb[0].mxu0 %v463
        %v550 = vpop.f32.mrb[0].mxu0
        %v551 = vadd.f32 0.0, %v550
        %v552 = vpop.f32.mrb[0].mxu0
        %v553 = vpop.f32.mrb[0].mxu0
        %v554 = vadd.f32 0.0, %v553
        %v555 = vpop.f32.mrb[0].mxu0
        %556 = vmatprep.mubr.bf16.mxu0 0
        %557 = vmatmul.mubr.bf16.gmra.mrb[0].mxu0 %v466
        %v558 = vpop.f32.mrb[0].mxu0
        %v559 = vadd.f32 0.0, %v558
        %v560 = vpop.f32.mrb[0].mxu0
        %v561 = vpop.f32.mrb[0].mxu0
        %v562 = vadd.f32 0.0, %v561
        %v563 = vpop.f32.mrb[0].mxu0
        %564 = vdwg.mxu0
        %v565 = vpack.c.bf16 %v506, %v503
        %v566 = vpack.c.bf16 %v514, %v511
        %v567 = vpack.c.bf16 %v522, %v519
        %v568 = vpack.c.bf16 %v530, %v527
        %v569 = vpack.c.bf16 %v538, %v535
        %v570 = vpack.c.bf16 %v546, %v543
        %v571 = vpack.c.bf16 %v554, %v551
        %v572 = vpack.c.bf16 %v562, %v559
        %v577 = vunpack.c.l.b16 %v351
        %v578 = vunpack.c.h.b16 %v351
        %v579 = vunpack.c.l.b16 %v352
        %v580 = vunpack.c.h.b16 %v352
        %v581 = vunpack.c.l.b16 %v353
        %v582 = vunpack.c.h.b16 %v353
        %v583 = vunpack.c.l.b16 %v354
        %v584 = vunpack.c.h.b16 %v354
        %v585 = vpack.c.b16 %v579, %v577
        %v586 = vpack.c.b16 %v580, %v578
        %v587 = vpack.c.b16 %v583, %v581
        %v588 = vpack.c.b16 %v584, %v582
        %v594 = vsel %vm443, %v565, 0
        %v597 = vsel %vm443, %v566, 0
        %v600 = vsel %vm443, %v567, 0
        %v603 = vsel %vm443, %v568, 0
        %v606 = vsel %vm443, %v569, 0
        %v609 = vsel %vm443, %v570, 0
        %v612 = vsel %vm443, %v571, 0
        %v615 = vsel %vm443, %v572, 0
        %617 = vmatprep.subr.bf16.mxu0 %v586
        %618 = vmatpush1.bf16.msra.mxu0 %v585
        %619 = vmatprep.subr.bf16.mxu0 %v588
        %620 = vmatpush1.bf16.msra.mxu0 %v587
        %621 = vmatprep.subr.bf16.mxu0 0
        %622 = vmatpush1.bf16.msra.mxu0 0
        %623 = vmatprep.subr.bf16.mxu0 0
        %624 = vmatpush1.bf16.msra.mxu0 0
        %625 = vmatprep.subr.bf16.mxu0 0
        %626 = vmatpush1.bf16.msra.mxu0 0
        %627 = vmatprep.subr.bf16.mxu0 0
        %628 = vmatpush1.bf16.msra.mxu0 0
        %629 = vmatprep.subr.bf16.mxu0 0
        %630 = vmatpush1.bf16.msra.mxu0 0
        %631 = vmatprep.subr.bf16.mxu0 0
        %632 = vmatpush1.bf16.msra.mxu0 0
        %633 = vmatprep.subr.bf16.mxu0 0
        %634 = vmatpush1.bf16.msra.mxu0 0
        %635 = vmatprep.subr.bf16.mxu0 0
        %636 = vmatpush1.bf16.msra.mxu0 0
        %637 = vmatprep.subr.bf16.mxu0 0
        %638 = vmatpush1.bf16.msra.mxu0 0
        %639 = vmatprep.subr.bf16.mxu0 0
        %640 = vmatpush1.bf16.msra.mxu0 0
        %641 = vmatprep.subr.bf16.mxu0 0
        %642 = vmatpush1.bf16.msra.mxu0 0
        %643 = vmatprep.subr.bf16.mxu0 0
        %644 = vmatpush1.bf16.msra.mxu0 0
        %645 = vmatprep.subr.bf16.mxu0 0
        %646 = vmatpush1.bf16.msra.mxu0 0
        %647 = vmatprep.subr.bf16.mxu0 0
        %648 = vmatpush1.bf16.msra.mxu0 0
        %649 = vmatprep.mubr.bf16.mxu0 0
        %650 = vmatmul.mubr.bf16.gmra.mrb[0].mxu0 %v594
        %v651 = vpop.f32.mrb[0].mxu0
        %v652 = vadd.f32 0.0, %v651
        %v653 = vpop.f32.mrb[0].mxu0
        %v654 = vadd.f32 0.0, %v653
        %v655 = vpop.f32.mrb[0].mxu0
        %v656 = vadd.f32 0.0, %v655
        %v657 = vpop.f32.mrb[0].mxu0
        %v658 = vadd.f32 0.0, %v657
        %659 = vmatprep.mubr.bf16.mxu0 0
        %660 = vmatmul.mubr.bf16.gmra.mrb[0].mxu0 %v597
        %v661 = vpop.f32.mrb[0].mxu0
        %v662 = vadd.f32 0.0, %v661
        %v663 = vpop.f32.mrb[0].mxu0
        %v664 = vadd.f32 0.0, %v663
        %v665 = vpop.f32.mrb[0].mxu0
        %v666 = vadd.f32 0.0, %v665
        %v667 = vpop.f32.mrb[0].mxu0
        %v668 = vadd.f32 0.0, %v667
        %669 = vmatprep.mubr.bf16.mxu0 0
        %670 = vmatmul.mubr.bf16.gmra.mrb[0].mxu0 %v600
        %v671 = vpop.f32.mrb[0].mxu0
        %v672 = vadd.f32 0.0, %v671
        %v673 = vpop.f32.mrb[0].mxu0
        %v674 = vadd.f32 0.0, %v673
        %v675 = vpop.f32.mrb[0].mxu0
        %v676 = vadd.f32 0.0, %v675
        %v677 = vpop.f32.mrb[0].mxu0
        %v678 = vadd.f32 0.0, %v677
        %679 = vmatprep.mubr.bf16.mxu0 0
        %680 = vmatmul.mubr.bf16.gmra.mrb[0].mxu0 %v603
        %v681 = vpop.f32.mrb[0].mxu0
        %v682 = vadd.f32 0.0, %v681
        %v683 = vpop.f32.mrb[0].mxu0
        %v684 = vadd.f32 0.0, %v683
        %v685 = vpop.f32.mrb[0].mxu0
        %v686 = vadd.f32 0.0, %v685
        %v687 = vpop.f32.mrb[0].mxu0
        %v688 = vadd.f32 0.0, %v687
        %689 = vmatprep.mubr.bf16.mxu0 0
        %690 = vmatmul.mubr.bf16.gmra.mrb[0].mxu0 %v606
        %v691 = vpop.f32.mrb[0].mxu0
        %v692 = vadd.f32 0.0, %v691
        %v693 = vpop.f32.mrb[0].mxu0
        %v694 = vadd.f32 0.0, %v693
        %v695 = vpop.f32.mrb[0].mxu0
        %v696 = vadd.f32 0.0, %v695
        %v697 = vpop.f32.mrb[0].mxu0
        %v698 = vadd.f32 0.0, %v697
        %699 = vmatprep.mubr.bf16.mxu0 0
        %700 = vmatmul.mubr.bf16.gmra.mrb[0].mxu0 %v609
        %v701 = vpop.f32.mrb[0].mxu0
        %v702 = vadd.f32 0.0, %v701
        %v703 = vpop.f32.mrb[0].mxu0
        %v704 = vadd.f32 0.0, %v703
        %v705 = vpop.f32.mrb[0].mxu0
        %v706 = vadd.f32 0.0, %v705
        %v707 = vpop.f32.mrb[0].mxu0
        %v708 = vadd.f32 0.0, %v707
        %709 = vmatprep.mubr.bf16.mxu0 0
        %710 = vmatmul.mubr.bf16.gmra.mrb[0].mxu0 %v612
        %v711 = vpop.f32.mrb[0].mxu0
        %v712 = vadd.f32 0.0, %v711
        %v713 = vpop.f32.mrb[0].mxu0
        %v714 = vadd.f32 0.0, %v713
        %v715 = vpop.f32.mrb[0].mxu0
        %v716 = vadd.f32 0.0, %v715
        %v717 = vpop.f32.mrb[0].mxu0
        %v718 = vadd.f32 0.0, %v717
        %719 = vmatprep.mubr.bf16.mxu0 0
        %720 = vmatmul.mubr.bf16.gmra.mrb[0].mxu0 %v615
        %v721 = vpop.f32.mrb[0].mxu0
        %v722 = vadd.f32 0.0, %v721
        %v723 = vpop.f32.mrb[0].mxu0
        %v724 = vadd.f32 0.0, %v723
        %v725 = vpop.f32.mrb[0].mxu0
        %v726 = vadd.f32 0.0, %v725
        %v727 = vpop.f32.mrb[0].mxu0
        %v728 = vadd.f32 0.0, %v727
        %729 = vdwg.mxu0
        %v730 = vmax.f32 %v652, -1e+30
        %v731 = vmax.f32 %v654, -1e+30
        %v732 = vmax.f32 %v656, -1e+30
        %v733 = vmax.f32 %v658, -1e+30
        %v734 = vmax.f32 %v662, -1e+30
        %v735 = vmax.f32 %v664, -1e+30
        %v736 = vmax.f32 %v666, -1e+30
        %v737 = vmax.f32 %v668, -1e+30
        %v738 = vmax.f32 %v672, -1e+30
        %v739 = vmax.f32 %v674, -1e+30
        %v740 = vmax.f32 %v676, -1e+30
        %v741 = vmax.f32 %v678, -1e+30
        %v742 = vmax.f32 %v682, -1e+30
        %v743 = vmax.f32 %v684, -1e+30
        %v744 = vmax.f32 %v686, -1e+30
        %v745 = vmax.f32 %v688, -1e+30
        %v746 = vmax.f32 %v692, -1e+30
        %v747 = vmax.f32 %v694, -1e+30
        %v748 = vmax.f32 %v696, -1e+30
        %v749 = vmax.f32 %v698, -1e+30
        %v750 = vmax.f32 %v702, -1e+30
        %v751 = vmax.f32 %v704, -1e+30
        %v752 = vmax.f32 %v706, -1e+30
        %v753 = vmax.f32 %v708, -1e+30
        %v754 = vmax.f32 %v712, -1e+30
        %v755 = vmax.f32 %v714, -1e+30
        %v756 = vmax.f32 %v716, -1e+30
        %v757 = vmax.f32 %v718, -1e+30
        %v758 = vmax.f32 %v722, -1e+30
        %v759 = vmax.f32 %v724, -1e+30
        %v760 = vmax.f32 %v726, -1e+30
        %v761 = vmax.f32 %v728, -1e+30
        %v762 = vsub.f32 -1e+30, %v730
        %v763 = vsub.f32 -1e+30, %v731
        %v764 = vsub.f32 -1e+30, %v732
        %v765 = vsub.f32 -1e+30, %v733
        %v766 = vsub.f32 -1e+30, %v734
        %v767 = vsub.f32 -1e+30, %v735
        %v768 = vsub.f32 -1e+30, %v736
        %v769 = vsub.f32 -1e+30, %v737
        %v770 = vsub.f32 -1e+30, %v738
        %v771 = vsub.f32 -1e+30, %v739
        %v772 = vsub.f32 -1e+30, %v740
        %v773 = vsub.f32 -1e+30, %v741
        %v774 = vsub.f32 -1e+30, %v742
        %v775 = vsub.f32 -1e+30, %v743
        %v776 = vsub.f32 -1e+30, %v744
        %v777 = vsub.f32 -1e+30, %v745
        %v778 = vsub.f32 -1e+30, %v746
        %v779 = vsub.f32 -1e+30, %v747
        %v780 = vsub.f32 -1e+30, %v748
        %v781 = vsub.f32 -1e+30, %v749
        %v782 = vsub.f32 -1e+30, %v750
        %v783 = vsub.f32 -1e+30, %v751
        %v784 = vsub.f32 -1e+30, %v752
        %v785 = vsub.f32 -1e+30, %v753
        %v786 = vsub.f32 -1e+30, %v754
        %v787 = vsub.f32 -1e+30, %v755
        %v788 = vsub.f32 -1e+30, %v756
        %v789 = vsub.f32 -1e+30, %v757
        %v790 = vsub.f32 -1e+30, %v758
        %v791 = vsub.f32 -1e+30, %v759
        %v792 = vsub.f32 -1e+30, %v760
        %v793 = vsub.f32 -1e+30, %v761
        %v794 = vmul.f32 %v762, 1.442695
        %v795 = vpow.pop %v794
        %v796 = vmul.f32 %v763, 1.442695
        %v797 = vpow.pop %v796
        %v798 = vmul.f32 %v764, 1.442695
        %v799 = vpow.pop %v798
        %v800 = vmul.f32 %v765, 1.442695
        %v801 = vpow.pop %v800
        %v802 = vmul.f32 %v766, 1.442695
        %v803 = vpow.pop %v802
        %v804 = vmul.f32 %v767, 1.442695
        %v805 = vpow.pop %v804
        %v806 = vmul.f32 %v768, 1.442695
        %v807 = vpow.pop %v806
        %v808 = vmul.f32 %v769, 1.442695
        %v809 = vpow.pop %v808
        %v810 = vmul.f32 %v770, 1.442695
        %v811 = vpow.pop %v810
        %v812 = vmul.f32 %v771, 1.442695
        %v813 = vpow.pop %v812
        %v814 = vmul.f32 %v772, 1.442695
        %v815 = vpow.pop %v814
        %v816 = vmul.f32 %v773, 1.442695
        %v817 = vpow.pop %v816
        %v818 = vmul.f32 %v774, 1.442695
        %v819 = vpow.pop %v818
        %v820 = vmul.f32 %v775, 1.442695
        %v821 = vpow.pop %v820
        %v822 = vmul.f32 %v776, 1.442695
        %v823 = vpow.pop %v822
        %v824 = vmul.f32 %v777, 1.442695
        %v825 = vpow.pop %v824
        %v826 = vmul.f32 %v778, 1.442695
        %v827 = vpow.pop %v826
        %v828 = vmul.f32 %v779, 1.442695
        %v829 = vpow.pop %v828
        %v830 = vmul.f32 %v780, 1.442695
        %v831 = vpow.pop %v830
        %v832 = vmul.f32 %v781, 1.442695
        %v833 = vpow.pop %v832
        %v834 = vmul.f32 %v782, 1.442695
        %v835 = vpow.pop %v834
        %v836 = vmul.f32 %v783, 1.442695
        %v837 = vpow.pop %v836
        %v838 = vmul.f32 %v784, 1.442695
        %v839 = vpow.pop %v838
        %v840 = vmul.f32 %v785, 1.442695
        %v841 = vpow.pop %v840
        %v842 = vmul.f32 %v786, 1.442695
        %v843 = vpow.pop %v842
        %v844 = vmul.f32 %v787, 1.442695
        %v845 = vpow.pop %v844
        %v846 = vmul.f32 %v788, 1.442695
        %v847 = vpow.pop %v846
        %v848 = vmul.f32 %v789, 1.442695
        %v849 = vpow.pop %v848
        %v850 = vmul.f32 %v790, 1.442695
        %v851 = vpow.pop %v850
        %v852 = vmul.f32 %v791, 1.442695
        %v853 = vpow.pop %v852
        %v854 = vmul.f32 %v792, 1.442695
        %v855 = vpow.pop %v854
        %v856 = vmul.f32 %v793, 1.442695
        %v857 = vpow.pop %v856
        %v858 = vmul.f32 %v795, 0.0
        %v859 = vmul.f32 %v797, 0.0
        %v860 = vmul.f32 %v799, 0.0
        %v861 = vmul.f32 %v801, 0.0
        %v862 = vmul.f32 %v803, 0.0
        %v863 = vmul.f32 %v805, 0.0
        %v864 = vmul.f32 %v807, 0.0
        %v865 = vmul.f32 %v809, 0.0
        %v866 = vmul.f32 %v811, 0.0
        %v867 = vmul.f32 %v813, 0.0
        %v868 = vmul.f32 %v815, 0.0
        %v869 = vmul.f32 %v817, 0.0
        %v870 = vmul.f32 %v819, 0.0
        %v871 = vmul.f32 %v821, 0.0
        %v872 = vmul.f32 %v823, 0.0
        %v873 = vmul.f32 %v825, 0.0
        %v874 = vmul.f32 %v827, 0.0
        %v875 = vmul.f32 %v829, 0.0
        %v876 = vmul.f32 %v831, 0.0
        %v877 = vmul.f32 %v833, 0.0
        %v878 = vmul.f32 %v835, 0.0
        %v879 = vmul.f32 %v837, 0.0
        %v880 = vmul.f32 %v839, 0.0
        %v881 = vmul.f32 %v841, 0.0
        %v882 = vmul.f32 %v843, 0.0
        %v883 = vmul.f32 %v845, 0.0
        %v884 = vmul.f32 %v847, 0.0
        %v885 = vmul.f32 %v849, 0.0
        %v886 = vmul.f32 %v851, 0.0
        %v887 = vmul.f32 %v853, 0.0
        %v888 = vmul.f32 %v855, 0.0
        %v889 = vmul.f32 %v857, 0.0
        %v890 = vsub.f32 %v652, %v730
        %v891 = vsub.f32 %v654, %v731
        %v892 = vsub.f32 %v656, %v732
        %v893 = vsub.f32 %v658, %v733
        %v894 = vsub.f32 %v662, %v734
        %v895 = vsub.f32 %v664, %v735
        %v896 = vsub.f32 %v666, %v736
        %v897 = vsub.f32 %v668, %v737
        %v898 = vsub.f32 %v672, %v738
        %v899 = vsub.f32 %v674, %v739
        %v900 = vsub.f32 %v676, %v740
        %v901 = vsub.f32 %v678, %v741
        %v902 = vsub.f32 %v682, %v742
        %v903 = vsub.f32 %v684, %v743
        %v904 = vsub.f32 %v686, %v744
        %v905 = vsub.f32 %v688, %v745
        %v906 = vsub.f32 %v692, %v746
        %v907 = vsub.f32 %v694, %v747
        %v908 = vsub.f32 %v696, %v748
        %v909 = vsub.f32 %v698, %v749
        %v910 = vsub.f32 %v702, %v750
        %v911 = vsub.f32 %v704, %v751
        %v912 = vsub.f32 %v706, %v752
        %v913 = vsub.f32 %v708, %v753
        %v914 = vsub.f32 %v712, %v754
        %v915 = vsub.f32 %v714, %v755
        %v916 = vsub.f32 %v716, %v756
        %v917 = vsub.f32 %v718, %v757
        %v918 = vsub.f32 %v722, %v758
        %v919 = vsub.f32 %v724, %v759
        %v920 = vsub.f32 %v726, %v760
        %v921 = vsub.f32 %v728, %v761
        %v922 = vmul.f32 %v890, 1.442695
        %v923 = vpow.pop %v922
        %v924 = vmul.f32 %v891, 1.442695
        %v925 = vpow.pop %v924
        %v926 = vmul.f32 %v892, 1.442695
        %v927 = vpow.pop %v926
        %v928 = vmul.f32 %v893, 1.442695
        %v929 = vpow.pop %v928
        %v930 = vmul.f32 %v894, 1.442695
        %v931 = vpow.pop %v930
        %v932 = vmul.f32 %v895, 1.442695
        %v933 = vpow.pop %v932
        %v934 = vmul.f32 %v896, 1.442695
        %v935 = vpow.pop %v934
        %v936 = vmul.f32 %v897, 1.442695
        %v937 = vpow.pop %v936
        %v938 = vmul.f32 %v898, 1.442695
        %v939 = vpow.pop %v938
        %v940 = vmul.f32 %v899, 1.442695
        %v941 = vpow.pop %v940
        %v942 = vmul.f32 %v900, 1.442695
        %v943 = vpow.pop %v942
        %v944 = vmul.f32 %v901, 1.442695
        %v945 = vpow.pop %v944
        %v946 = vmul.f32 %v902, 1.442695
        %v947 = vpow.pop %v946
        %v948 = vmul.f32 %v903, 1.442695
        %v949 = vpow.pop %v948
        %v950 = vmul.f32 %v904, 1.442695
        %v951 = vpow.pop %v950
        %v952 = vmul.f32 %v905, 1.442695
        %v953 = vpow.pop %v952
        %v954 = vmul.f32 %v906, 1.442695
        %v955 = vpow.pop %v954
        %v956 = vmul.f32 %v907, 1.442695
        %v957 = vpow.pop %v956
        %v958 = vmul.f32 %v908, 1.442695
        %v959 = vpow.pop %v958
        %v960 = vmul.f32 %v909, 1.442695
        %v961 = vpow.pop %v960
        %v962 = vmul.f32 %v910, 1.442695
        %v963 = vpow.pop %v962
        %v964 = vmul.f32 %v911, 1.442695
        %v965 = vpow.pop %v964
        %v966 = vmul.f32 %v912, 1.442695
        %v967 = vpow.pop %v966
        %v968 = vmul.f32 %v913, 1.442695
        %v969 = vpow.pop %v968
        %v970 = vmul.f32 %v914, 1.442695
        %v971 = vpow.pop %v970
        %v972 = vmul.f32 %v915, 1.442695
        %v973 = vpow.pop %v972
        %v974 = vmul.f32 %v916, 1.442695
        %v975 = vpow.pop %v974
        %v976 = vmul.f32 %v917, 1.442695
        %v977 = vpow.pop %v976
        %v978 = vmul.f32 %v918, 1.442695
        %v979 = vpow.pop %v978
        %v980 = vmul.f32 %v919, 1.442695
        %v981 = vpow.pop %v980
        %v982 = vmul.f32 %v920, 1.442695
        %v983 = vpow.pop %v982
        %v984 = vmul.f32 %v921, 1.442695
        %v985 = vpow.pop %v984
        %v986 = vadd.f32 %v858, %v923
        %v987 = vadd.f32 %v859, %v925
        %v988 = vadd.f32 %v860, %v927
        %v989 = vadd.f32 %v861, %v929
        %v990 = vadd.f32 %v862, %v931
        %v991 = vadd.f32 %v863, %v933
        %v992 = vadd.f32 %v864, %v935
        %v993 = vadd.f32 %v865, %v937
        %v994 = vadd.f32 %v866, %v939
        %v995 = vadd.f32 %v867, %v941
        %v996 = vadd.f32 %v868, %v943
        %v997 = vadd.f32 %v869, %v945
        %v998 = vadd.f32 %v870, %v947
        %v999 = vadd.f32 %v871, %v949
        %v1000 = vadd.f32 %v872, %v951
        %v1001 = vadd.f32 %v873, %v953
        %v1002 = vadd.f32 %v874, %v955
        %v1003 = vadd.f32 %v875, %v957
        %v1004 = vadd.f32 %v876, %v959
        %v1005 = vadd.f32 %v877, %v961
        %v1006 = vadd.f32 %v878, %v963
        %v1007 = vadd.f32 %v879, %v965
        %v1008 = vadd.f32 %v880, %v967
        %v1009 = vadd.f32 %v881, %v969
        %v1010 = vadd.f32 %v882, %v971
        %v1011 = vadd.f32 %v883, %v973
        %v1012 = vadd.f32 %v884, %v975
        %v1013 = vadd.f32 %v885, %v977
        %v1014 = vadd.f32 %v886, %v979
        %v1015 = vadd.f32 %v887, %v981
        %v1016 = vadd.f32 %v888, %v983
        %v1017 = vadd.f32 %v889, %v985
        %vm1018 = vcmp.eq.s32.totalorder %v355, 0
        %vm1019 = vcmp.eq.s32.totalorder %v356, 0
        %vm1020 = vcmp.eq.s32.totalorder %v357, 0
        %vm1021 = vcmp.eq.s32.totalorder %v358, 0
        %vm1022 = vcmp.eq.s32.totalorder %v359, 0
        %vm1023 = vcmp.eq.s32.totalorder %v360, 0
        %vm1024 = vcmp.eq.s32.totalorder %v361, 0
        %vm1025 = vcmp.eq.s32.totalorder %v362, 0
        %vm1026 = vcmp.eq.s32.totalorder %v363, 0
        %vm1027 = vcmp.eq.s32.totalorder %v364, 0
        %vm1028 = vcmp.eq.s32.totalorder %v365, 0
        %vm1029 = vcmp.eq.s32.totalorder %v366, 0
        %vm1030 = vcmp.eq.s32.totalorder %v367, 0
        %vm1031 = vcmp.eq.s32.totalorder %v368, 0
        %vm1032 = vcmp.eq.s32.totalorder %v369, 0
        %vm1033 = vcmp.eq.s32.totalorder %v370, 0
        %vm1034 = vcmp.eq.s32.totalorder %v371, 0
        %vm1035 = vcmp.eq.s32.totalorder %v372, 0
        %vm1036 = vcmp.eq.s32.totalorder %v373, 0
        %vm1037 = vcmp.eq.s32.totalorder %v374, 0
        %vm1038 = vcmp.eq.s32.totalorder %v375, 0
        %vm1039 = vcmp.eq.s32.totalorder %v376, 0
        %vm1040 = vcmp.eq.s32.totalorder %v377, 0
        %vm1041 = vcmp.eq.s32.totalorder %v378, 0
        %vm1042 = vcmp.eq.s32.totalorder %v379, 0
        %vm1043 = vcmp.eq.s32.totalorder %v380, 0
        %vm1044 = vcmp.eq.s32.totalorder %v381, 0
        %vm1045 = vcmp.eq.s32.totalorder %v382, 0
        %vm1046 = vcmp.eq.s32.totalorder %v383, 0
        %vm1047 = vcmp.eq.s32.totalorder %v384, 0
        %vm1048 = vcmp.eq.s32.totalorder %v385, 0
        %vm1049 = vcmp.eq.s32.totalorder %v386, 0
        %v1050 = vsel %vm1018, %v652, 0.0
        %v1051 = vsel %vm1019, %v654, 0.0
        %v1052 = vsel %vm1020, %v656, 0.0
        %v1053 = vsel %vm1021, %v658, 0.0
        %v1054 = vsel %vm1022, %v662, 0.0
        %v1055 = vsel %vm1023, %v664, 0.0
        %v1056 = vsel %vm1024, %v666, 0.0
        %v1057 = vsel %vm1025, %v668, 0.0
        %v1058 = vsel %vm1026, %v672, 0.0
        %v1059 = vsel %vm1027, %v674, 0.0
        %v1060 = vsel %vm1028, %v676, 0.0
        %v1061 = vsel %vm1029, %v678, 0.0
        %v1062 = vsel %vm1030, %v682, 0.0
        %v1063 = vsel %vm1031, %v684, 0.0
        %v1064 = vsel %vm1032, %v686, 0.0
        %v1065 = vsel %vm1033, %v688, 0.0
        %v1066 = vsel %vm1034, %v692, 0.0
        %v1067 = vsel %vm1035, %v694, 0.0
        %v1068 = vsel %vm1036, %v696, 0.0
        %v1069 = vsel %vm1037, %v698, 0.0
        %v1070 = vsel %vm1038, %v702, 0.0
        %v1071 = vsel %vm1039, %v704, 0.0
        %v1072 = vsel %vm1040, %v706, 0.0
        %v1073 = vsel %vm1041, %v708, 0.0
        %v1074 = vsel %vm1042, %v712, 0.0
        %v1075 = vsel %vm1043, %v714, 0.0
        %v1076 = vsel %vm1044, %v716, 0.0
        %v1077 = vsel %vm1045, %v718, 0.0
        %v1078 = vsel %vm1046, %v722, 0.0
        %v1079 = vsel %vm1047, %v724, 0.0
        %v1080 = vsel %vm1048, %v726, 0.0
        %v1081 = vsel %vm1049, %v728, 0.0
        %v1082 = vadd.f32 %v1050, 0.0
        %v1083 = vadd.f32 %v1051, 0.0
        %v1084 = vadd.f32 %v1052, 0.0
        %v1085 = vadd.f32 %v1053, 0.0
        %v1086 = vadd.f32 %v1054, 0.0
        %v1087 = vadd.f32 %v1055, 0.0
        %v1088 = vadd.f32 %v1056, 0.0
        %v1089 = vadd.f32 %v1057, 0.0
        %v1090 = vadd.f32 %v1058, 0.0
        %v1091 = vadd.f32 %v1059, 0.0
        %v1092 = vadd.f32 %v1060, 0.0
        %v1093 = vadd.f32 %v1061, 0.0
        %v1094 = vadd.f32 %v1062, 0.0
        %v1095 = vadd.f32 %v1063, 0.0
        %v1096 = vadd.f32 %v1064, 0.0
        %v1097 = vadd.f32 %v1065, 0.0
        %v1098 = vadd.f32 %v1066, 0.0
        %v1099 = vadd.f32 %v1067, 0.0
        %v1100 = vadd.f32 %v1068, 0.0
        %v1101 = vadd.f32 %v1069, 0.0
        %v1102 = vadd.f32 %v1070, 0.0
        %v1103 = vadd.f32 %v1071, 0.0
        %v1104 = vadd.f32 %v1072, 0.0
        %v1105 = vadd.f32 %v1073, 0.0
        %v1106 = vadd.f32 %v1074, 0.0
        %v1107 = vadd.f32 %v1075, 0.0
        %v1108 = vadd.f32 %v1076, 0.0
        %v1109 = vadd.f32 %v1077, 0.0
        %v1110 = vadd.f32 %v1078, 0.0
        %v1111 = vadd.f32 %v1079, 0.0
        %v1112 = vadd.f32 %v1080, 0.0
        %v1113 = vadd.f32 %v1081, 0.0
        %s1114 = scalar_lea.vmem %s270, 16 [#allocation2]
        %v1115 = vld [vmem:[%s1114] sm:$0xf]
        %v1116 = vld [vmem:[%s1114 + $0x4] sm:$0xf]
        %v1117 = vld [vmem:[%s1114 + $0x8] sm:$0xf]
        %v1118 = vld [vmem:[%s1114 + $0xc] sm:$0xf]
        %v1123 = vunpack.c.l.b16 %v1115
        %v1124 = vunpack.c.l.b16 %v1116
        %v1125 = vunpack.c.l.b16 %v1117
        %v1126 = vunpack.c.l.b16 %v1118
        %v1127 = vpack.c.b16 %v1124, %v1123
        %v1128 = vpack.c.b16 %v1126, %v1125
        %1131 = vmatprep.subr.bf16.mxu0 0
        %1132 = vmatpush1.bf16.msra.mxu0 %v1127
        %1133 = vmatprep.subr.bf16.mxu0 0
        %1134 = vmatpush1.bf16.msra.mxu0 %v1128
        %1135 = vmatprep.subr.bf16.mxu0 0
        %1136 = vmatpush1.bf16.msra.mxu0 0
        %1137 = vmatprep.subr.bf16.mxu0 0
        %1138 = vmatpush1.bf16.msra.mxu0 0
        %1139 = vmatprep.subr.bf16.mxu0 0
        %1140 = vmatpush1.bf16.msra.mxu0 0
        %1141 = vmatprep.subr.bf16.mxu0 0
        %1142 = vmatpush1.bf16.msra.mxu0 0
        %1143 = vmatprep.subr.bf16.mxu0 0
        %1144 = vmatpush1.bf16.msra.mxu0 0
        %1145 = vmatprep.subr.bf16.mxu0 0
        %1146 = vmatpush1.bf16.msra.mxu0 0
        %1147 = vmatprep.subr.bf16.mxu0 0
        %1148 = vmatpush1.bf16.msra.mxu0 0
        %1149 = vmatprep.subr.bf16.mxu0 0
        %1150 = vmatpush1.bf16.msra.mxu0 0
        %1151 = vmatprep.subr.bf16.mxu0 0
        %1152 = vmatpush1.bf16.msra.mxu0 0
        %1153 = vmatprep.subr.bf16.mxu0 0
        %1154 = vmatpush1.bf16.msra.mxu0 0
        %1155 = vmatprep.subr.bf16.mxu0 0
        %1156 = vmatpush1.bf16.msra.mxu0 0
        %1157 = vmatprep.subr.bf16.mxu0 0
        %1158 = vmatpush1.bf16.msra.mxu0 0
        %1159 = vmatprep.subr.bf16.mxu0 0
        %1160 = vmatpush1.bf16.msra.mxu0 0
        %1161 = vmatprep.subr.bf16.mxu0 0
        %1162 = vmatpush1.bf16.msra.mxu0 0
        %1163 = vmatprep.mubr.bf16.mxu0 0
        %1164 = vmatmul.mubr.bf16.gmra.mrb[0].mxu0 %v445
        %v1165 = vpop.f32.mrb[0].mxu0
        %v1166 = vadd.f32 0.0, %v1165
        %v1167 = vpop.f32.mrb[0].mxu0
        %v1168 = vpop.f32.mrb[0].mxu0
        %v1169 = vadd.f32 0.0, %v1168
        %v1170 = vpop.f32.mrb[0].mxu0
        %1171 = vmatprep.mubr.bf16.mxu0 0
        %1172 = vmatmul.mubr.bf16.gmra.mrb[0].mxu0 %v448
        %v1173 = vpop.f32.mrb[0].mxu0
        %v1174 = vadd.f32 0.0, %v1173
        %v1175 = vpop.f32.mrb[0].mxu0
        %v1176 = vpop.f32.mrb[0].mxu0
        %v1177 = vadd.f32 0.0, %v1176
        %v1178 = vpop.f32.mrb[0].mxu0
        %1179 = vmatprep.mubr.bf16.mxu0 0
        %1180 = vmatmul.mubr.bf16.gmra.mrb[0].mxu0 %v451
        %v1181 = vpop.f32.mrb[0].mxu0
        %v1182 = vadd.f32 0.0, %v1181
        %v1183 = vpop.f32.mrb[0].mxu0
        %v1184 = vpop.f32.mrb[0].mxu0
        %v1185 = vadd.f32 0.0, %v1184
        %v1186 = vpop.f32.mrb[0].mxu0
        %1187 = vmatprep.mubr.bf16.mxu0 0
        %1188 = vmatmul.mubr.bf16.gmra.mrb[0].mxu0 %v454
        %v1189 = vpop.f32.mrb[0].mxu0
        %v1190 = vadd.f32 0.0, %v1189
        %v1191 = vpop.f32.mrb[0].mxu0
        %v1192 = vpop.f32.mrb[0].mxu0
        %v1193 = vadd.f32 0.0, %v1192
        %v1194 = vpop.f32.mrb[0].mxu0
        %1195 = vmatprep.mubr.bf16.mxu0 0
        %1196 = vmatmul.mubr.bf16.gmra.mrb[0].mxu0 %v457
        %v1197 = vpop.f32.mrb[0].mxu0
        %v1198 = vadd.f32 0.0, %v1197
        %v1199 = vpop.f32.mrb[0].mxu0
        %v1200 = vpop.f32.mrb[0].mxu0
        %v1201 = vadd.f32 0.0, %v1200
        %v1202 = vpop.f32.mrb[0].mxu0
        %1203 = vmatprep.mubr.bf16.mxu0 0
        %1204 = vmatmul.mubr.bf16.gmra.mrb[0].mxu0 %v460
        %v1205 = vpop.f32.mrb[0].mxu0
        %v1206 = vadd.f32 0.0, %v1205
        %v1207 = vpop.f32.mrb[0].mxu0
        %v1208 = vpop.f32.mrb[0].mxu0
        %v1209 = vadd.f32 0.0, %v1208
        %v1210 = vpop.f32.mrb[0].mxu0
        %1211 = vmatprep.mubr.bf16.mxu0 0
        %1212 = vmatmul.mubr.bf16.gmra.mrb[0].mxu0 %v463
        %v1213 = vpop.f32.mrb[0].mxu0
        %v1214 = vadd.f32 0.0, %v1213
        %v1215 = vpop.f32.mrb[0].mxu0
        %v1216 = vpop.f32.mrb[0].mxu0
        %v1217 = vadd.f32 0.0, %v1216
        %v1218 = vpop.f32.mrb[0].mxu0
        %1219 = vmatprep.mubr.bf16.mxu0 0
        %1220 = vmatmul.mubr.bf16.gmra.mrb[0].mxu0 %v466
        %v1221 = vpop.f32.mrb[0].mxu0
        %v1222 = vadd.f32 0.0, %v1221
        %v1223 = vpop.f32.mrb[0].mxu0
        %v1224 = vpop.f32.mrb[0].mxu0
        %v1225 = vadd.f32 0.0, %v1224
        %v1226 = vpop.f32.mrb[0].mxu0
        %1227 = vdwg.mxu0
        %v1228 = vpack.c.bf16 %v1169, %v1166
        %v1229 = vpack.c.bf16 %v1177, %v1174
        %v1230 = vpack.c.bf16 %v1185, %v1182
        %v1231 = vpack.c.bf16 %v1193, %v1190
        %v1232 = vpack.c.bf16 %v1201, %v1198
        %v1233 = vpack.c.bf16 %v1209, %v1206
        %v1234 = vpack.c.bf16 %v1217, %v1214
        %v1235 = vpack.c.bf16 %v1225, %v1222
        %v1237 = vsel %vm443, %v1228, 0
        %v1240 = vsel %vm443, %v1229, 0
        %v1243 = vsel %vm443, %v1230, 0
        %v1246 = vsel %vm443, %v1231, 0
        %v1249 = vsel %vm443, %v1232, 0
        %v1252 = vsel %vm443, %v1233, 0
        %v1255 = vsel %vm443, %v1234, 0
        %v1258 = vsel %vm443, %v1235, 0
        %1260 = vmatprep.subr.bf16.mxu0 %v586
        %1261 = vmatpush1.bf16.msra.mxu0 %v585
        %1262 = vmatprep.subr.bf16.mxu0 %v588
        %1263 = vmatpush1.bf16.msra.mxu0 %v587
        %1264 = vmatprep.subr.bf16.mxu0 0
        %1265 = vmatpush1.bf16.msra.mxu0 0
        %1266 = vmatprep.subr.bf16.mxu0 0
        %1267 = vmatpush1.bf16.msra.mxu0 0
        %1268 = vmatprep.subr.bf16.mxu0 0
        %1269 = vmatpush1.bf16.msra.mxu0 0
        %1270 = vmatprep.subr.bf16.mxu0 0
        %1271 = vmatpush1.bf16.msra.mxu0 0
        %1272 = vmatprep.subr.bf16.mxu0 0
        %1273 = vmatpush1.bf16.msra.mxu0 0
        %1274 = vmatprep.subr.bf16.mxu0 0
        %1275 = vmatpush1.bf16.msra.mxu0 0
        %1276 = vmatprep.subr.bf16.mxu0 0
        %1277 = vmatpush1.bf16.msra.mxu0 0
        %1278 = vmatprep.subr.bf16.mxu0 0
        %1279 = vmatpush1.bf16.msra.mxu0 0
        %1280 = vmatprep.subr.bf16.mxu0 0
        %1281 = vmatpush1.bf16.msra.mxu0 0
        %1282 = vmatprep.subr.bf16.mxu0 0
        %1283 = vmatpush1.bf16.msra.mxu0 0
        %1284 = vmatprep.subr.bf16.mxu0 0
        %1285 = vmatpush1.bf16.msra.mxu0 0
        %1286 = vmatprep.subr.bf16.mxu0 0
        %1287 = vmatpush1.bf16.msra.mxu0 0
        %1288 = vmatprep.subr.bf16.mxu0 0
        %1289 = vmatpush1.bf16.msra.mxu0 0
        %1290 = vmatprep.subr.bf16.mxu0 0
        %1291 = vmatpush1.bf16.msra.mxu0 0
        %1292 = vmatprep.mubr.bf16.mxu0 0
        %1293 = vmatmul.mubr.bf16.gmra.mrb[0].mxu0 %v1237
        %v1294 = vpop.f32.mrb[0].mxu0
        %v1295 = vadd.f32 0.0, %v1294
        %v1296 = vpop.f32.mrb[0].mxu0
        %v1297 = vadd.f32 0.0, %v1296
        %v1298 = vpop.f32.mrb[0].mxu0
        %v1299 = vadd.f32 0.0, %v1298
        %v1300 = vpop.f32.mrb[0].mxu0
        %v1301 = vadd.f32 0.0, %v1300
        %1302 = vmatprep.mubr.bf16.mxu0 0
        %1303 = vmatmul.mubr.bf16.gmra.mrb[0].mxu0 %v1240
        %v1304 = vpop.f32.mrb[0].mxu0
        %v1305 = vadd.f32 0.0, %v1304
        %v1306 = vpop.f32.mrb[0].mxu0
        %v1307 = vadd.f32 0.0, %v1306
        %v1308 = vpop.f32.mrb[0].mxu0
        %v1309 = vadd.f32 0.0, %v1308
        %v1310 = vpop.f32.mrb[0].mxu0
        %v1311 = vadd.f32 0.0, %v1310
        %1312 = vmatprep.mubr.bf16.mxu0 0
        %1313 = vmatmul.mubr.bf16.gmra.mrb[0].mxu0 %v1243
        %v1314 = vpop.f32.mrb[0].mxu0
        %v1315 = vadd.f32 0.0, %v1314
        %v1316 = vpop.f32.mrb[0].mxu0
        %v1317 = vadd.f32 0.0, %v1316
        %v1318 = vpop.f32.mrb[0].mxu0
        %v1319 = vadd.f32 0.0, %v1318
        %v1320 = vpop.f32.mrb[0].mxu0
        %v1321 = vadd.f32 0.0, %v1320
        %1322 = vmatprep.mubr.bf16.mxu0 0
        %1323 = vmatmul.mubr.bf16.gmra.mrb[0].mxu0 %v1246
        %v1324 = vpop.f32.mrb[0].mxu0
        %v1325 = vadd.f32 0.0, %v1324
        %v1326 = vpop.f32.mrb[0].mxu0
        %v1327 = vadd.f32 0.0, %v1326
        %v1328 = vpop.f32.mrb[0].mxu0
        %v1329 = vadd.f32 0.0, %v1328
        %v1330 = vpop.f32.mrb[0].mxu0
        %v1331 = vadd.f32 0.0, %v1330
        %1332 = vmatprep.mubr.bf16.mxu0 0
        %1333 = vmatmul.mubr.bf16.gmra.mrb[0].mxu0 %v1249
        %v1334 = vpop.f32.mrb[0].mxu0
        %v1335 = vadd.f32 0.0, %v1334
        %v1336 = vpop.f32.mrb[0].mxu0
        %v1337 = vadd.f32 0.0, %v1336
        %v1338 = vpop.f32.mrb[0].mxu0
        %v1339 = vadd.f32 0.0, %v1338
        %v1340 = vpop.f32.mrb[0].mxu0
        %v1341 = vadd.f32 0.0, %v1340
        %1342 = vmatprep.mubr.bf16.mxu0 0
        %1343 = vmatmul.mubr.bf16.gmra.mrb[0].mxu0 %v1252
        %v1344 = vpop.f32.mrb[0].mxu0
        %v1345 = vadd.f32 0.0, %v1344
        %v1346 = vpop.f32.mrb[0].mxu0
        %v1347 = vadd.f32 0.0, %v1346
        %v1348 = vpop.f32.mrb[0].mxu0
        %v1349 = vadd.f32 0.0, %v1348
        %v1350 = vpop.f32.mrb[0].mxu0
        %v1351 = vadd.f32 0.0, %v1350
        %1352 = vmatprep.mubr.bf16.mxu0 0
        %1353 = vmatmul.mubr.bf16.gmra.mrb[0].mxu0 %v1255
        %v1354 = vpop.f32.mrb[0].mxu0
        %v1355 = vadd.f32 0.0, %v1354
        %v1356 = vpop.f32.mrb[0].mxu0
        %v1357 = vadd.f32 0.0, %v1356
        %v1358 = vpop.f32.mrb[0].mxu0
        %v1359 = vadd.f32 0.0, %v1358
        %v1360 = vpop.f32.mrb[0].mxu0
        %v1361 = vadd.f32 0.0, %v1360
        %1362 = vmatprep.mubr.bf16.mxu0 0
        %1363 = vmatmul.mubr.bf16.gmra.mrb[0].mxu0 %v1258
        %v1364 = vpop.f32.mrb[0].mxu0
        %v1365 = vadd.f32 0.0, %v1364
        %v1366 = vpop.f32.mrb[0].mxu0
        %v1367 = vadd.f32 0.0, %v1366
        %v1368 = vpop.f32.mrb[0].mxu0
        %v1369 = vadd.f32 0.0, %v1368
        %v1370 = vpop.f32.mrb[0].mxu0
        %v1371 = vadd.f32 0.0, %v1370
        %1372 = vdwg.mxu0
        %v1373 = vmax.f32 %v730, %v1295
        %v1374 = vmax.f32 %v731, %v1297
        %v1375 = vmax.f32 %v732, %v1299
        %v1376 = vmax.f32 %v733, %v1301
        %v1377 = vmax.f32 %v734, %v1305
        %v1378 = vmax.f32 %v735, %v1307
        %v1379 = vmax.f32 %v736, %v1309
        %v1380 = vmax.f32 %v737, %v1311
        %v1381 = vmax.f32 %v738, %v1315
        %v1382 = vmax.f32 %v739, %v1317
        %v1383 = vmax.f32 %v740, %v1319
        %v1384 = vmax.f32 %v741, %v1321
        %v1385 = vmax.f32 %v742, %v1325
        %v1386 = vmax.f32 %v743, %v1327
        %v1387 = vmax.f32 %v744, %v1329
        %v1388 = vmax.f32 %v745, %v1331
        %v1389 = vmax.f32 %v746, %v1335
        %v1390 = vmax.f32 %v747, %v1337
        %v1391 = vmax.f32 %v748, %v1339
        %v1392 = vmax.f32 %v749, %v1341
        %v1393 = vmax.f32 %v750, %v1345
        %v1394 = vmax.f32 %v751, %v1347
        %v1395 = vmax.f32 %v752, %v1349
        %v1396 = vmax.f32 %v753, %v1351
        %v1397 = vmax.f32 %v754, %v1355
        %v1398 = vmax.f32 %v755, %v1357
        %v1399 = vmax.f32 %v756, %v1359
        %v1400 = vmax.f32 %v757, %v1361
        %v1401 = vmax.f32 %v758, %v1365
        %v1402 = vmax.f32 %v759, %v1367
        %v1403 = vmax.f32 %v760, %v1369
        %v1404 = vmax.f32 %v761, %v1371
        %v1405 = vsub.f32 %v730, %v1373
        %v1406 = vsub.f32 %v731, %v1374
        %v1407 = vsub.f32 %v732, %v1375
        %v1408 = vsub.f32 %v733, %v1376
        %v1409 = vsub.f32 %v734, %v1377
        %v1410 = vsub.f32 %v735, %v1378
        %v1411 = vsub.f32 %v736, %v1379
        %v1412 = vsub.f32 %v737, %v1380
        %v1413 = vsub.f32 %v738, %v1381
        %v1414 = vsub.f32 %v739, %v1382
        %v1415 = vsub.f32 %v740, %v1383
        %v1416 = vsub.f32 %v741, %v1384
        %v1417 = vsub.f32 %v742, %v1385
        %v1418 = vsub.f32 %v743, %v1386
        %v1419 = vsub.f32 %v744, %v1387
        %v1420 = vsub.f32 %v745, %v1388
        %v1421 = vsub.f32 %v746, %v1389
        %v1422 = vsub.f32 %v747, %v1390
        %v1423 = vsub.f32 %v748, %v1391
        %v1424 = vsub.f32 %v749, %v1392
        %v1425 = vsub.f32 %v750, %v1393
        %v1426 = vsub.f32 %v751, %v1394
        %v1427 = vsub.f32 %v752, %v1395
        %v1428 = vsub.f32 %v753, %v1396
        %v1429 = vsub.f32 %v754, %v1397
        %v1430 = vsub.f32 %v755, %v1398
        %v1431 = vsub.f32 %v756, %v1399
        %v1432 = vsub.f32 %v757, %v1400
        %v1433 = vsub.f32 %v758, %v1401
        %v1434 = vsub.f32 %v759, %v1402
        %v1435 = vsub.f32 %v760, %v1403
        %v1436 = vsub.f32 %v761, %v1404
        %v1437 = vmul.f32 %v1405, 1.442695
        %v1438 = vpow.pop %v1437
        %v1439 = vmul.f32 %v1406, 1.442695
        %v1440 = vpow.pop %v1439
        %v1441 = vmul.f32 %v1407, 1.442695
        %v1442 = vpow.pop %v1441
        %v1443 = vmul.f32 %v1408, 1.442695
        %v1444 = vpow.pop %v1443
        %v1445 = vmul.f32 %v1409, 1.442695
        %v1446 = vpow.pop %v1445
        %v1447 = vmul.f32 %v1410, 1.442695
        %v1448 = vpow.pop %v1447
        %v1449 = vmul.f32 %v1411, 1.442695
        %v1450 = vpow.pop %v1449
        %v1451 = vmul.f32 %v1412, 1.442695
        %v1452 = vpow.pop %v1451
        %v1453 = vmul.f32 %v1413, 1.442695
        %v1454 = vpow.pop %v1453
        %v1455 = vmul.f32 %v1414, 1.442695
        %v1456 = vpow.pop %v1455
        %v1457 = vmul.f32 %v1415, 1.442695
        %v1458 = vpow.pop %v1457
        %v1459 = vmul.f32 %v1416, 1.442695
        %v1460 = vpow.pop %v1459
        %v1461 = vmul.f32 %v1417, 1.442695
        %v1462 = vpow.pop %v1461
        %v1463 = vmul.f32 %v1418, 1.442695
        %v1464 = vpow.pop %v1463
        %v1465 = vmul.f32 %v1419, 1.442695
        %v1466 = vpow.pop %v1465
        %v1467 = vmul.f32 %v1420, 1.442695
        %v1468 = vpow.pop %v1467
        %v1469 = vmul.f32 %v1421, 1.442695
        %v1470 = vpow.pop %v1469
        %v1471 = vmul.f32 %v1422, 1.442695
        %v1472 = vpow.pop %v1471
        %v1473 = vmul.f32 %v1423, 1.442695
        %v1474 = vpow.pop %v1473
        %v1475 = vmul.f32 %v1424, 1.442695
        %v1476 = vpow.pop %v1475
        %v1477 = vmul.f32 %v1425, 1.442695
        %v1478 = vpow.pop %v1477
        %v1479 = vmul.f32 %v1426, 1.442695
        %v1480 = vpow.pop %v1479
        %v1481 = vmul.f32 %v1427, 1.442695
        %v1482 = vpow.pop %v1481
        %v1483 = vmul.f32 %v1428, 1.442695
        %v1484 = vpow.pop %v1483
        %v1485 = vmul.f32 %v1429, 1.442695
        %v1486 = vpow.pop %v1485
        %v1487 = vmul.f32 %v1430, 1.442695
        %v1488 = vpow.pop %v1487
        %v1489 = vmul.f32 %v1431, 1.442695
        %v1490 = vpow.pop %v1489
        %v1491 = vmul.f32 %v1432, 1.442695
        %v1492 = vpow.pop %v1491
        %v1493 = vmul.f32 %v1433, 1.442695
        %v1494 = vpow.pop %v1493
        %v1495 = vmul.f32 %v1434, 1.442695
        %v1496 = vpow.pop %v1495
        %v1497 = vmul.f32 %v1435, 1.442695
        %v1498 = vpow.pop %v1497
        %v1499 = vmul.f32 %v1436, 1.442695
        %v1500 = vpow.pop %v1499
        %v1501 = vmul.f32 %v986, %v1438
        %v1502 = vmul.f32 %v987, %v1440
        %v1503 = vmul.f32 %v988, %v1442
        %v1504 = vmul.f32 %v989, %v1444
        %v1505 = vmul.f32 %v990, %v1446
        %v1506 = vmul.f32 %v991, %v1448
        %v1507 = vmul.f32 %v992, %v1450
        %v1508 = vmul.f32 %v993, %v1452
        %v1509 = vmul.f32 %v994, %v1454
        %v1510 = vmul.f32 %v995, %v1456
        %v1511 = vmul.f32 %v996, %v1458
        %v1512 = vmul.f32 %v997, %v1460
        %v1513 = vmul.f32 %v998, %v1462
        %v1514 = vmul.f32 %v999, %v1464
        %v1515 = vmul.f32 %v1000, %v1466
        %v1516 = vmul.f32 %v1001, %v1468
        %v1517 = vmul.f32 %v1002, %v1470
        %v1518 = vmul.f32 %v1003, %v1472
        %v1519 = vmul.f32 %v1004, %v1474
        %v1520 = vmul.f32 %v1005, %v1476
        %v1521 = vmul.f32 %v1006, %v1478
        %v1522 = vmul.f32 %v1007, %v1480
        %v1523 = vmul.f32 %v1008, %v1482
        %v1524 = vmul.f32 %v1009, %v1484
        %v1525 = vmul.f32 %v1010, %v1486
        %v1526 = vmul.f32 %v1011, %v1488
        %v1527 = vmul.f32 %v1012, %v1490
        %v1528 = vmul.f32 %v1013, %v1492
        %v1529 = vmul.f32 %v1014, %v1494
        %v1530 = vmul.f32 %v1015, %v1496
        %v1531 = vmul.f32 %v1016, %v1498
        %v1532 = vmul.f32 %v1017, %v1500
        %v1533 = vsub.f32 %v1295, %v1373
        %v1534 = vsub.f32 %v1297, %v1374
        %v1535 = vsub.f32 %v1299, %v1375
        %v1536 = vsub.f32 %v1301, %v1376
        %v1537 = vsub.f32 %v1305, %v1377
        %v1538 = vsub.f32 %v1307, %v1378
        %v1539 = vsub.f32 %v1309, %v1379
        %v1540 = vsub.f32 %v1311, %v1380
        %v1541 = vsub.f32 %v1315, %v1381
        %v1542 = vsub.f32 %v1317, %v1382
        %v1543 = vsub.f32 %v1319, %v1383
        %v1544 = vsub.f32 %v1321, %v1384
        %v1545 = vsub.f32 %v1325, %v1385
        %v1546 = vsub.f32 %v1327, %v1386
        %v1547 = vsub.f32 %v1329, %v1387
        %v1548 = vsub.f32 %v1331, %v1388
        %v1549 = vsub.f32 %v1335, %v1389
        %v1550 = vsub.f32 %v1337, %v1390
        %v1551 = vsub.f32 %v1339, %v1391
        %v1552 = vsub.f32 %v1341, %v1392
        %v1553 = vsub.f32 %v1345, %v1393
        %v1554 = vsub.f32 %v1347, %v1394
        %v1555 = vsub.f32 %v1349, %v1395
        %v1556 = vsub.f32 %v1351, %v1396
        %v1557 = vsub.f32 %v1355, %v1397
        %v1558 = vsub.f32 %v1357, %v1398
        %v1559 = vsub.f32 %v1359, %v1399
        %v1560 = vsub.f32 %v1361, %v1400
        %v1561 = vsub.f32 %v1365, %v1401
        %v1562 = vsub.f32 %v1367, %v1402
        %v1563 = vsub.f32 %v1369, %v1403
        %v1564 = vsub.f32 %v1371, %v1404
        %v1565 = vmul.f32 %v1533, 1.442695
        %v1566 = vpow.pop %v1565
        %v1567 = vmul.f32 %v1534, 1.442695
        %v1568 = vpow.pop %v1567
        %v1569 = vmul.f32 %v1535, 1.442695
        %v1570 = vpow.pop %v1569
        %v1571 = vmul.f32 %v1536, 1.442695
        %v1572 = vpow.pop %v1571
        %v1573 = vmul.f32 %v1537, 1.442695
        %v1574 = vpow.pop %v1573
        %v1575 = vmul.f32 %v1538, 1.442695
        %v1576 = vpow.pop %v1575
        %v1577 = vmul.f32 %v1539, 1.442695
        %v1578 = vpow.pop %v1577
        %v1579 = vmul.f32 %v1540, 1.442695
        %v1580 = vpow.pop %v1579
        %v1581 = vmul.f32 %v1541, 1.442695
        %v1582 = vpow.pop %v1581
        %v1583 = vmul.f32 %v1542, 1.442695
        %v1584 = vpow.pop %v1583
        %v1585 = vmul.f32 %v1543, 1.442695
        %v1586 = vpow.pop %v1585
        %v1587 = vmul.f32 %v1544, 1.442695
        %v1588 = vpow.pop %v1587
        %v1589 = vmul.f32 %v1545, 1.442695
        %v1590 = vpow.pop %v1589
        %v1591 = vmul.f32 %v1546, 1.442695
        %v1592 = vpow.pop %v1591
        %v1593 = vmul.f32 %v1547, 1.442695
        %v1594 = vpow.pop %v1593
        %v1595 = vmul.f32 %v1548, 1.442695
        %v1596 = vpow.pop %v1595
        %v1597 = vmul.f32 %v1549, 1.442695
        %v1598 = vpow.pop %v1597
        %v1599 = vmul.f32 %v1550, 1.442695
        %v1600 = vpow.pop %v1599
        %v1601 = vmul.f32 %v1551, 1.442695
        %v1602 = vpow.pop %v1601
        %v1603 = vmul.f32 %v1552, 1.442695
        %v1604 = vpow.pop %v1603
        %v1605 = vmul.f32 %v1553, 1.442695
        %v1606 = vpow.pop %v1605
        %v1607 = vmul.f32 %v1554, 1.442695
        %v1608 = vpow.pop %v1607
        %v1609 = vmul.f32 %v1555, 1.442695
        %v1610 = vpow.pop %v1609
        %v1611 = vmul.f32 %v1556, 1.442695
        %v1612 = vpow.pop %v1611
        %v1613 = vmul.f32 %v1557, 1.442695
        %v1614 = vpow.pop %v1613
        %v1615 = vmul.f32 %v1558, 1.442695
        %v1616 = vpow.pop %v1615
        %v1617 = vmul.f32 %v1559, 1.442695
        %v1618 = vpow.pop %v1617
        %v1619 = vmul.f32 %v1560, 1.442695
        %v1620 = vpow.pop %v1619
        %v1621 = vmul.f32 %v1561, 1.442695
        %v1622 = vpow.pop %v1621
        %v1623 = vmul.f32 %v1562, 1.442695
        %v1624 = vpow.pop %v1623
        %v1625 = vmul.f32 %v1563, 1.442695
        %v1626 = vpow.pop %v1625
        %v1627 = vmul.f32 %v1564, 1.442695
        %v1628 = vpow.pop %v1627
        %v1629 = vadd.f32 %v1501, %v1566
        %v1630 = vadd.f32 %v1502, %v1568
        %v1631 = vadd.f32 %v1503, %v1570
        %v1632 = vadd.f32 %v1504, %v1572
        %v1633 = vadd.f32 %v1505, %v1574
        %v1634 = vadd.f32 %v1506, %v1576
        %v1635 = vadd.f32 %v1507, %v1578
        %v1636 = vadd.f32 %v1508, %v1580
        %v1637 = vadd.f32 %v1509, %v1582
        %v1638 = vadd.f32 %v1510, %v1584
        %v1639 = vadd.f32 %v1511, %v1586
        %v1640 = vadd.f32 %v1512, %v1588
        %v1641 = vadd.f32 %v1513, %v1590
        %v1642 = vadd.f32 %v1514, %v1592
        %v1643 = vadd.f32 %v1515, %v1594
        %v1644 = vadd.f32 %v1516, %v1596
        %v1645 = vadd.f32 %v1517, %v1598
        %v1646 = vadd.f32 %v1518, %v1600
        %v1647 = vadd.f32 %v1519, %v1602
        %v1648 = vadd.f32 %v1520, %v1604
        %v1649 = vadd.f32 %v1521, %v1606
        %v1650 = vadd.f32 %v1522, %v1608
        %v1651 = vadd.f32 %v1523, %v1610
        %v1652 = vadd.f32 %v1524, %v1612
        %v1653 = vadd.f32 %v1525, %v1614
        %v1654 = vadd.f32 %v1526, %v1616
        %v1655 = vadd.f32 %v1527, %v1618
        %v1656 = vadd.f32 %v1528, %v1620
        %v1657 = vadd.f32 %v1529, %v1622
        %v1658 = vadd.f32 %v1530, %v1624
        %v1659 = vadd.f32 %v1531, %v1626
        %v1660 = vadd.f32 %v1532, %v1628
        %vm1661 = vcmp.eq.s32.totalorder %v355, 1
        %vm1662 = vcmp.eq.s32.totalorder %v356, 1
        %vm1663 = vcmp.eq.s32.totalorder %v357, 1
        %vm1664 = vcmp.eq.s32.totalorder %v358, 1
        %vm1665 = vcmp.eq.s32.totalorder %v359, 1
        %vm1666 = vcmp.eq.s32.totalorder %v360, 1
        %vm1667 = vcmp.eq.s32.totalorder %v361, 1
        %vm1668 = vcmp.eq.s32.totalorder %v362, 1
        %vm1669 = vcmp.eq.s32.totalorder %v363, 1
        %vm1670 = vcmp.eq.s32.totalorder %v364, 1
        %vm1671 = vcmp.eq.s32.totalorder %v365, 1
        %vm1672 = vcmp.eq.s32.totalorder %v366, 1
        %vm1673 = vcmp.eq.s32.totalorder %v367, 1
        %vm1674 = vcmp.eq.s32.totalorder %v368, 1
        %vm1675 = vcmp.eq.s32.totalorder %v369, 1
        %vm1676 = vcmp.eq.s32.totalorder %v370, 1
        %vm1677 = vcmp.eq.s32.totalorder %v371, 1
        %vm1678 = vcmp.eq.s32.totalorder %v372, 1
        %vm1679 = vcmp.eq.s32.totalorder %v373, 1
        %vm1680 = vcmp.eq.s32.totalorder %v374, 1
        %vm1681 = vcmp.eq.s32.totalorder %v375, 1
        %vm1682 = vcmp.eq.s32.totalorder %v376, 1
        %vm1683 = vcmp.eq.s32.totalorder %v377, 1
        %vm1684 = vcmp.eq.s32.totalorder %v378, 1
        %vm1685 = vcmp.eq.s32.totalorder %v379, 1
        %vm1686 = vcmp.eq.s32.totalorder %v380, 1
        %vm1687 = vcmp.eq.s32.totalorder %v381, 1
        %vm1688 = vcmp.eq.s32.totalorder %v382, 1
        %vm1689 = vcmp.eq.s32.totalorder %v383, 1
        %vm1690 = vcmp.eq.s32.totalorder %v384, 1
        %vm1691 = vcmp.eq.s32.totalorder %v385, 1
        %vm1692 = vcmp.eq.s32.totalorder %v386, 1
        %v1693 = vsel %vm1661, %v1295, 0.0
        %v1694 = vsel %vm1662, %v1297, 0.0
        %v1695 = vsel %vm1663, %v1299, 0.0
        %v1696 = vsel %vm1664, %v1301, 0.0
        %v1697 = vsel %vm1665, %v1305, 0.0
        %v1698 = vsel %vm1666, %v1307, 0.0
        %v1699 = vsel %vm1667, %v1309, 0.0
        %v1700 = vsel %vm1668, %v1311, 0.0
        %v1701 = vsel %vm1669, %v1315, 0.0
        %v1702 = vsel %vm1670, %v1317, 0.0
        %v1703 = vsel %vm1671, %v1319, 0.0
        %v1704 = vsel %vm1672, %v1321, 0.0
        %v1705 = vsel %vm1673, %v1325, 0.0
        %v1706 = vsel %vm1674, %v1327, 0.0
        %v1707 = vsel %vm1675, %v1329, 0.0
        %v1708 = vsel %vm1676, %v1331, 0.0
        %v1709 = vsel %vm1677, %v1335, 0.0
        %v1710 = vsel %vm1678, %v1337, 0.0
        %v1711 = vsel %vm1679, %v1339, 0.0
        %v1712 = vsel %vm1680, %v1341, 0.0
        %v1713 = vsel %vm1681, %v1345, 0.0
        %v1714 = vsel %vm1682, %v1347, 0.0
        %v1715 = vsel %vm1683, %v1349, 0.0
        %v1716 = vsel %vm1684, %v1351, 0.0
        %v1717 = vsel %vm1685, %v1355, 0.0
        %v1718 = vsel %vm1686, %v1357, 0.0
        %v1719 = vsel %vm1687, %v1359, 0.0
        %v1720 = vsel %vm1688, %v1361, 0.0
        %v1721 = vsel %vm1689, %v1365, 0.0
        %v1722 = vsel %vm1690, %v1367, 0.0
        %v1723 = vsel %vm1691, %v1369, 0.0
        %v1724 = vsel %vm1692, %v1371, 0.0
        %v1725 = vadd.f32 %v1082, %v1693
        %v1726 = vadd.f32 %v1083, %v1694
        %v1727 = vadd.f32 %v1084, %v1695
        %v1728 = vadd.f32 %v1085, %v1696
        %v1729 = vadd.f32 %v1086, %v1697
        %v1730 = vadd.f32 %v1087, %v1698
        %v1731 = vadd.f32 %v1088, %v1699
        %v1732 = vadd.f32 %v1089, %v1700
        %v1733 = vadd.f32 %v1090, %v1701
        %v1734 = vadd.f32 %v1091, %v1702
        %v1735 = vadd.f32 %v1092, %v1703
        %v1736 = vadd.f32 %v1093, %v1704
        %v1737 = vadd.f32 %v1094, %v1705
        %v1738 = vadd.f32 %v1095, %v1706
        %v1739 = vadd.f32 %v1096, %v1707
        %v1740 = vadd.f32 %v1097, %v1708
        %v1741 = vadd.f32 %v1098, %v1709
        %v1742 = vadd.f32 %v1099, %v1710
        %v1743 = vadd.f32 %v1100, %v1711
        %v1744 = vadd.f32 %v1101, %v1712
        %v1745 = vadd.f32 %v1102, %v1713
        %v1746 = vadd.f32 %v1103, %v1714
        %v1747 = vadd.f32 %v1104, %v1715
        %v1748 = vadd.f32 %v1105, %v1716
        %v1749 = vadd.f32 %v1106, %v1717
        %v1750 = vadd.f32 %v1107, %v1718
        %v1751 = vadd.f32 %v1108, %v1719
        %v1752 = vadd.f32 %v1109, %v1720
        %v1753 = vadd.f32 %v1110, %v1721
        %v1754 = vadd.f32 %v1111, %v1722
        %v1755 = vadd.f32 %v1112, %v1723
        %v1756 = vadd.f32 %v1113, %v1724
        %s1757 = scalar_lea.vmem %s270, 32 [#allocation2]
        %v1758 = vld [vmem:[%s1757] sm:$0xf]
        %v1759 = vld [vmem:[%s1757 + $0x4] sm:$0xf]
        %v1760 = vld [vmem:[%s1757 + $0x8] sm:$0xf]
        %v1761 = vld [vmem:[%s1757 + $0xc] sm:$0xf]
        %v1766 = vunpack.c.l.b16 %v1758
        %v1767 = vunpack.c.l.b16 %v1759
        %v1768 = vunpack.c.l.b16 %v1760
        %v1769 = vunpack.c.l.b16 %v1761
        %v1770 = vpack.c.b16 %v1767, %v1766
        %v1771 = vpack.c.b16 %v1769, %v1768
        %1774 = vmatprep.subr.bf16.mxu0 0
        %1775 = vmatpush1.bf16.msra.mxu0 %v1770
        %1776 = vmatprep.subr.bf16.mxu0 0
        %1777 = vmatpush1.bf16.msra.mxu0 %v1771
        %1778 = vmatprep.subr.bf16.mxu0 0
        %1779 = vmatpush1.bf16.msra.mxu0 0
        %1780 = vmatprep.subr.bf16.mxu0 0
        %1781 = vmatpush1.bf16.msra.mxu0 0
        %1782 = vmatprep.subr.bf16.mxu0 0
        %1783 = vmatpush1.bf16.msra.mxu0 0
        %1784 = vmatprep.subr.bf16.mxu0 0
        %1785 = vmatpush1.bf16.msra.mxu0 0
        %1786 = vmatprep.subr.bf16.mxu0 0
        %1787 = vmatpush1.bf16.msra.mxu0 0
        %1788 = vmatprep.subr.bf16.mxu0 0
        %1789 = vmatpush1.bf16.msra.mxu0 0
        %1790 = vmatprep.subr.bf16.mxu0 0
        %1791 = vmatpush1.bf16.msra.mxu0 0
        %1792 = vmatprep.subr.bf16.mxu0 0
        %1793 = vmatpush1.bf16.msra.mxu0 0
        %1794 = vmatprep.subr.bf16.mxu0 0
        %1795 = vmatpush1.bf16.msra.mxu0 0
        %1796 = vmatprep.subr.bf16.mxu0 0
        %1797 = vmatpush1.bf16.msra.mxu0 0
        %1798 = vmatprep.subr.bf16.mxu0 0
        %1799 = vmatpush1.bf16.msra.mxu0 0
        %1800 = vmatprep.subr.bf16.mxu0 0
        %1801 = vmatpush1.bf16.msra.mxu0 0
        %1802 = vmatprep.subr.bf16.mxu0 0
        %1803 = vmatpush1.bf16.msra.mxu0 0
        %1804 = vmatprep.subr.bf16.mxu0 0
        %1805 = vmatpush1.bf16.msra.mxu0 0
        %1806 = vmatprep.mubr.bf16.mxu0 0
        %1807 = vmatmul.mubr.bf16.gmra.mrb[0].mxu0 %v445
        %v1808 = vpop.f32.mrb[0].mxu0
        %v1809 = vadd.f32 0.0, %v1808
        %v1810 = vpop.f32.mrb[0].mxu0
        %v1811 = vpop.f32.mrb[0].mxu0
        %v1812 = vadd.f32 0.0, %v1811
        %v1813 = vpop.f32.mrb[0].mxu0
        %1814 = vmatprep.mubr.bf16.mxu0 0
        %1815 = vmatmul.mubr.bf16.gmra.mrb[0].mxu0 %v448
        %v1816 = vpop.f32.mrb[0].mxu0
        %v1817 = vadd.f32 0.0, %v1816
        %v1818 = vpop.f32.mrb[0].mxu0
        %v1819 = vpop.f32.mrb[0].mxu0
        %v1820 = vadd.f32 0.0, %v1819
        %v1821 = vpop.f32.mrb[0].mxu0
        %1822 = vmatprep.mubr.bf16.mxu0 0
        %1823 = vmatmul.mubr.bf16.gmra.mrb[0].mxu0 %v451
        %v1824 = vpop.f32.mrb[0].mxu0
        %v1825 = vadd.f32 0.0, %v1824
        %v1826 = vpop.f32.mrb[0].mxu0
        %v1827 = vpop.f32.mrb[0].mxu0
        %v1828 = vadd.f32 0.0, %v1827
        %v1829 = vpop.f32.mrb[0].mxu0
        %1830 = vmatprep.mubr.bf16.mxu0 0
        %1831 = vmatmul.mubr.bf16.gmra.mrb[0].mxu0 %v454
        %v1832 = vpop.f32.mrb[0].mxu0
        %v1833 = vadd.f32 0.0, %v1832
        %v1834 = vpop.f32.mrb[0].mxu0
        %v1835 = vpop.f32.mrb[0].mxu0
        %v1836 = vadd.f32 0.0, %v1835
        %v1837 = vpop.f32.mrb[0].mxu0
        %1838 = vmatprep.mubr.bf16.mxu0 0
        %1839 = vmatmul.mubr.bf16.gmra.mrb[0].mxu0 %v457
        %v1840 = vpop.f32.mrb[0].mxu0
        %v1841 = vadd.f32 0.0, %v1840
        %v1842 = vpop.f32.mrb[0].mxu0
        %v1843 = vpop.f32.mrb[0].mxu0
        %v1844 = vadd.f32 0.0, %v1843
        %v1845 = vpop.f32.mrb[0].mxu0
        %1846 = vmatprep.mubr.bf16.mxu0 0
        %1847 = vmatmul.mubr.bf16.gmra.mrb[0].mxu0 %v460
        %v1848 = vpop.f32.mrb[0].mxu0
        %v1849 = vadd.f32 0.0, %v1848
        %v1850 = vpop.f32.mrb[0].mxu0
        %v1851 = vpop.f32.mrb[0].mxu0
        %v1852 = vadd.f32 0.0, %v1851
        %v1853 = vpop.f32.mrb[0].mxu0
        %1854 = vmatprep.mubr.bf16.mxu0 0
        %1855 = vmatmul.mubr.bf16.gmra.mrb[0].mxu0 %v463
        %v1856 = vpop.f32.mrb[0].mxu0
        %v1857 = vadd.f32 0.0, %v1856
        %v1858 = vpop.f32.mrb[0].mxu0
        %v1859 = vpop.f32.mrb[0].mxu0
        %v1860 = vadd.f32 0.0, %v1859
        %v1861 = vpop.f32.mrb[0].mxu0
        %1862 = vmatprep.mubr.bf16.mxu0 0
        %1863 = vmatmul.mubr.bf16.gmra.mrb[0].mxu0 %v466
        %v1864 = vpop.f32.mrb[0].mxu0
        %v1865 = vadd.f32 0.0, %v1864
        %v1866 = vpop.f32.mrb[0].mxu0
        %v1867 = vpop.f32.mrb[0].mxu0
        %v1868 = vadd.f32 0.0, %v1867
        %v1869 = vpop.f32.mrb[0].mxu0
        %1870 = vdwg.mxu0
        %v1871 = vpack.c.bf16 %v1812, %v1809
        %v1872 = vpack.c.bf16 %v1820, %v1817
        %v1873 = vpack.c.bf16 %v1828, %v1825
        %v1874 = vpack.c.bf16 %v1836, %v1833
        %v1875 = vpack.c.bf16 %v1844, %v1841
        %v1876 = vpack.c.bf16 %v1852, %v1849
        %v1877 = vpack.c.bf16 %v1860, %v1857
        %v1878 = vpack.c.bf16 %v1868, %v1865
        %v1880 = vsel %vm443, %v1871, 0
        %v1883 = vsel %vm443, %v1872, 0
        %v1886 = vsel %vm443, %v1873, 0
        %v1889 = vsel %vm443, %v1874, 0
        %v1892 = vsel %vm443, %v1875, 0
        %v1895 = vsel %vm443, %v1876, 0
        %v1898 = vsel %vm443, %v1877, 0
        %v1901 = vsel %vm443, %v1878, 0
        %1903 = vmatprep.subr.bf16.mxu0 %v586
        %1904 = vmatpush1.bf16.msra.mxu0 %v585
        %1905 = vmatprep.subr.bf16.mxu0 %v588
        %1906 = vmatpush1.bf16.msra.mxu0 %v587
        %1907 = vmatprep.subr.bf16.mxu0 0
        %1908 = vmatpush1.bf16.msra.mxu0 0
        %1909 = vmatprep.subr.bf16.mxu0 0
        %1910 = vmatpush1.bf16.msra.mxu0 0
        %1911 = vmatprep.subr.bf16.mxu0 0
        %1912 = vmatpush1.bf16.msra.mxu0 0
        %1913 = vmatprep.subr.bf16.mxu0 0
        %1914 = vmatpush1.bf16.msra.mxu0 0
        %1915 = vmatprep.subr.bf16.mxu0 0
        %1916 = vmatpush1.bf16.msra.mxu0 0
        %1917 = vmatprep.subr.bf16.mxu0 0
        %1918 = vmatpush1.bf16.msra.mxu0 0
        %1919 = vmatprep.subr.bf16.mxu0 0
        %1920 = vmatpush1.bf16.msra.mxu0 0
        %1921 = vmatprep.subr.bf16.mxu0 0
        %1922 = vmatpush1.bf16.msra.mxu0 0
        %1923 = vmatprep.subr.bf16.mxu0 0
        %1924 = vmatpush1.bf16.msra.mxu0 0
        %1925 = vmatprep.subr.bf16.mxu0 0
        %1926 = vmatpush1.bf16.msra.mxu0 0
        %1927 = vmatprep.subr.bf16.mxu0 0
        %1928 = vmatpush1.bf16.msra.mxu0 0
        %1929 = vmatprep.subr.bf16.mxu0 0
        %1930 = vmatpush1.bf16.msra.mxu0 0
        %1931 = vmatprep.subr.bf16.mxu0 0
        %1932 = vmatpush1.bf16.msra.mxu0 0
        %1933 = vmatprep.subr.bf16.mxu0 0
        %1934 = vmatpush1.bf16.msra.mxu0 0
        %1935 = vmatprep.mubr.bf16.mxu0 0
        %1936 = vmatmul.mubr.bf16.gmra.mrb[0].mxu0 %v1880
        %v1937 = vpop.f32.mrb[0].mxu0
        %v1938 = vadd.f32 0.0, %v1937
        %v1939 = vpop.f32.mrb[0].mxu0
        %v1940 = vadd.f32 0.0, %v1939
        %v1941 = vpop.f32.mrb[0].mxu0
        %v1942 = vadd.f32 0.0, %v1941
        %v1943 = vpop.f32.mrb[0].mxu0
        %v1944 = vadd.f32 0.0, %v1943
        %1945 = vmatprep.mubr.bf16.mxu0 0
        %1946 = vmatmul.mubr.bf16.gmra.mrb[0].mxu0 %v1883
        %v1947 = vpop.f32.mrb[0].mxu0
        %v1948 = vadd.f32 0.0, %v1947
        %v1949 = vpop.f32.mrb[0].mxu0
        %v1950 = vadd.f32 0.0, %v1949
        %v1951 = vpop.f32.mrb[0].mxu0
        %v1952 = vadd.f32 0.0, %v1951
        %v1953 = vpop.f32.mrb[0].mxu0
        %v1954 = vadd.f32 0.0, %v1953
        %1955 = vmatprep.mubr.bf16.mxu0 0
        %1956 = vmatmul.mubr.bf16.gmra.mrb[0].mxu0 %v1886
        %v1957 = vpop.f32.mrb[0].mxu0
        %v1958 = vadd.f32 0.0, %v1957
        %v1959 = vpop.f32.mrb[0].mxu0
        %v1960 = vadd.f32 0.0, %v1959
        %v1961 = vpop.f32.mrb[0].mxu0
        %v1962 = vadd.f32 0.0, %v1961
        %v1963 = vpop.f32.mrb[0].mxu0
        %v1964 = vadd.f32 0.0, %v1963
        %1965 = vmatprep.mubr.bf16.mxu0 0
        %1966 = vmatmul.mubr.bf16.gmra.mrb[0].mxu0 %v1889
        %v1967 = vpop.f32.mrb[0].mxu0
        %v1968 = vadd.f32 0.0, %v1967
        %v1969 = vpop.f32.mrb[0].mxu0
        %v1970 = vadd.f32 0.0, %v1969
        %v1971 = vpop.f32.mrb[0].mxu0
        %v1972 = vadd.f32 0.0, %v1971
        %v1973 = vpop.f32.mrb[0].mxu0
        %v1974 = vadd.f32 0.0, %v1973
        %1975 = vmatprep.mubr.bf16.mxu0 0
        %1976 = vmatmul.mubr.bf16.gmra.mrb[0].mxu0 %v1892
        %v1977 = vpop.f32.mrb[0].mxu0
        %v1978 = vadd.f32 0.0, %v1977
        %v1979 = vpop.f32.mrb[0].mxu0
        %v1980 = vadd.f32 0.0, %v1979
        %v1981 = vpop.f32.mrb[0].mxu0
        %v1982 = vadd.f32 0.0, %v1981
        %v1983 = vpop.f32.mrb[0].mxu0
        %v1984 = vadd.f32 0.0, %v1983
        %1985 = vmatprep.mubr.bf16.mxu0 0
        %1986 = vmatmul.mubr.bf16.gmra.mrb[0].mxu0 %v1895
        %v1987 = vpop.f32.mrb[0].mxu0
        %v1988 = vadd.f32 0.0, %v1987
        %v1989 = vpop.f32.mrb[0].mxu0
        %v1990 = vadd.f32 0.0, %v1989
        %v1991 = vpop.f32.mrb[0].mxu0
        %v1992 = vadd.f32 0.0, %v1991
        %v1993 = vpop.f32.mrb[0].mxu0
        %v1994 = vadd.f32 0.0, %v1993
        %1995 = vmatprep.mubr.bf16.mxu0 0
        %1996 = vmatmul.mubr.bf16.gmra.mrb[0].mxu0 %v1898
        %v1997 = vpop.f32.mrb[0].mxu0
        %v1998 = vadd.f32 0.0, %v1997
        %v1999 = vpop.f32.mrb[0].mxu0
        %v2000 = vadd.f32 0.0, %v1999
        %v2001 = vpop.f32.mrb[0].mxu0
        %v2002 = vadd.f32 0.0, %v2001
        %v2003 = vpop.f32.mrb[0].mxu0
        %v2004 = vadd.f32 0.0, %v2003
        %2005 = vmatprep.mubr.bf16.mxu0 0
        %2006 = vmatmul.mubr.bf16.gmra.mrb[0].mxu0 %v1901
        %v2007 = vpop.f32.mrb[0].mxu0
        %v2008 = vadd.f32 0.0, %v2007
        %v2009 = vpop.f32.mrb[0].mxu0
        %v2010 = vadd.f32 0.0, %v2009
        %v2011 = vpop.f32.mrb[0].mxu0
        %v2012 = vadd.f32 0.0, %v2011
        %v2013 = vpop.f32.mrb[0].mxu0
        %v2014 = vadd.f32 0.0, %v2013
        %2015 = vdwg.mxu0
        %v2016 = vmax.f32 %v1373, %v1938
        %v2017 = vmax.f32 %v1374, %v1940
        %v2018 = vmax.f32 %v1375, %v1942
        %v2019 = vmax.f32 %v1376, %v1944
        %v2020 = vmax.f32 %v1377, %v1948
        %v2021 = vmax.f32 %v1378, %v1950
        %v2022 = vmax.f32 %v1379, %v1952
        %v2023 = vmax.f32 %v1380, %v1954
        %v2024 = vmax.f32 %v1381, %v1958
        %v2025 = vmax.f32 %v1382, %v1960
        %v2026 = vmax.f32 %v1383, %v1962
        %v2027 = vmax.f32 %v1384, %v1964
        %v2028 = vmax.f32 %v1385, %v1968
        %v2029 = vmax.f32 %v1386, %v1970
        %v2030 = vmax.f32 %v1387, %v1972
        %v2031 = vmax.f32 %v1388, %v1974
        %v2032 = vmax.f32 %v1389, %v1978
        %v2033 = vmax.f32 %v1390, %v1980
        %v2034 = vmax.f32 %v1391, %v1982
        %v2035 = vmax.f32 %v1392, %v1984
        %v2036 = vmax.f32 %v1393, %v1988
        %v2037 = vmax.f32 %v1394, %v1990
        %v2038 = vmax.f32 %v1395, %v1992
        %v2039 = vmax.f32 %v1396, %v1994
        %v2040 = vmax.f32 %v1397, %v1998
        %v2041 = vmax.f32 %v1398, %v2000
        %v2042 = vmax.f32 %v1399, %v2002
        %v2043 = vmax.f32 %v1400, %v2004
        %v2044 = vmax.f32 %v1401, %v2008
        %v2045 = vmax.f32 %v1402, %v2010
        %v2046 = vmax.f32 %v1403, %v2012
        %v2047 = vmax.f32 %v1404, %v2014
        %v2048 = vsub.f32 %v1373, %v2016
        %v2049 = vsub.f32 %v1374, %v2017
        %v2050 = vsub.f32 %v1375, %v2018
        %v2051 = vsub.f32 %v1376, %v2019
        %v2052 = vsub.f32 %v1377, %v2020
        %v2053 = vsub.f32 %v1378, %v2021
        %v2054 = vsub.f32 %v1379, %v2022
        %v2055 = vsub.f32 %v1380, %v2023
        %v2056 = vsub.f32 %v1381, %v2024
        %v2057 = vsub.f32 %v1382, %v2025
        %v2058 = vsub.f32 %v1383, %v2026
        %v2059 = vsub.f32 %v1384, %v2027
        %v2060 = vsub.f32 %v1385, %v2028
        %v2061 = vsub.f32 %v1386, %v2029
        %v2062 = vsub.f32 %v1387, %v2030
        %v2063 = vsub.f32 %v1388, %v2031
        %v2064 = vsub.f32 %v1389, %v2032
        %v2065 = vsub.f32 %v1390, %v2033
        %v2066 = vsub.f32 %v1391, %v2034
        %v2067 = vsub.f32 %v1392, %v2035
        %v2068 = vsub.f32 %v1393, %v2036
        %v2069 = vsub.f32 %v1394, %v2037
        %v2070 = vsub.f32 %v1395, %v2038
        %v2071 = vsub.f32 %v1396, %v2039
        %v2072 = vsub.f32 %v1397, %v2040
        %v2073 = vsub.f32 %v1398, %v2041
        %v2074 = vsub.f32 %v1399, %v2042
        %v2075 = vsub.f32 %v1400, %v2043
        %v2076 = vsub.f32 %v1401, %v2044
        %v2077 = vsub.f32 %v1402, %v2045
        %v2078 = vsub.f32 %v1403, %v2046
        %v2079 = vsub.f32 %v1404, %v2047
        %v2080 = vmul.f32 %v2048, 1.442695
        %v2081 = vpow.pop %v2080
        %v2082 = vmul.f32 %v2049, 1.442695
        %v2083 = vpow.pop %v2082
        %v2084 = vmul.f32 %v2050, 1.442695
        %v2085 = vpow.pop %v2084
        %v2086 = vmul.f32 %v2051, 1.442695
        %v2087 = vpow.pop %v2086
        %v2088 = vmul.f32 %v2052, 1.442695
        %v2089 = vpow.pop %v2088
        %v2090 = vmul.f32 %v2053, 1.442695
        %v2091 = vpow.pop %v2090
        %v2092 = vmul.f32 %v2054, 1.442695
        %v2093 = vpow.pop %v2092
        %v2094 = vmul.f32 %v2055, 1.442695
        %v2095 = vpow.pop %v2094
        %v2096 = vmul.f32 %v2056, 1.442695
        %v2097 = vpow.pop %v2096
        %v2098 = vmul.f32 %v2057, 1.442695
        %v2099 = vpow.pop %v2098
        %v2100 = vmul.f32 %v2058, 1.442695
        %v2101 = vpow.pop %v2100
        %v2102 = vmul.f32 %v2059, 1.442695
        %v2103 = vpow.pop %v2102
        %v2104 = vmul.f32 %v2060, 1.442695
        %v2105 = vpow.pop %v2104
        %v2106 = vmul.f32 %v2061, 1.442695
        %v2107 = vpow.pop %v2106
        %v2108 = vmul.f32 %v2062, 1.442695
        %v2109 = vpow.pop %v2108
        %v2110 = vmul.f32 %v2063, 1.442695
        %v2111 = vpow.pop %v2110
        %v2112 = vmul.f32 %v2064, 1.442695
        %v2113 = vpow.pop %v2112
        %v2114 = vmul.f32 %v2065, 1.442695
        %v2115 = vpow.pop %v2114
        %v2116 = vmul.f32 %v2066, 1.442695
        %v2117 = vpow.pop %v2116
        %v2118 = vmul.f32 %v2067, 1.442695
        %v2119 = vpow.pop %v2118
        %v2120 = vmul.f32 %v2068, 1.442695
        %v2121 = vpow.pop %v2120
        %v2122 = vmul.f32 %v2069, 1.442695
        %v2123 = vpow.pop %v2122
        %v2124 = vmul.f32 %v2070, 1.442695
        %v2125 = vpow.pop %v2124
        %v2126 = vmul.f32 %v2071, 1.442695
        %v2127 = vpow.pop %v2126
        %v2128 = vmul.f32 %v2072, 1.442695
        %v2129 = vpow.pop %v2128
        %v2130 = vmul.f32 %v2073, 1.442695
        %v2131 = vpow.pop %v2130
        %v2132 = vmul.f32 %v2074, 1.442695
        %v2133 = vpow.pop %v2132
        %v2134 = vmul.f32 %v2075, 1.442695
        %v2135 = vpow.pop %v2134
        %v2136 = vmul.f32 %v2076, 1.442695
        %v2137 = vpow.pop %v2136
        %v2138 = vmul.f32 %v2077, 1.442695
        %v2139 = vpow.pop %v2138
        %v2140 = vmul.f32 %v2078, 1.442695
        %v2141 = vpow.pop %v2140
        %v2142 = vmul.f32 %v2079, 1.442695
        %v2143 = vpow.pop %v2142
        %v2144 = vmul.f32 %v1629, %v2081
        %v2145 = vmul.f32 %v1630, %v2083
        %v2146 = vmul.f32 %v1631, %v2085
        %v2147 = vmul.f32 %v1632, %v2087
        %v2148 = vmul.f32 %v1633, %v2089
        %v2149 = vmul.f32 %v1634, %v2091
        %v2150 = vmul.f32 %v1635, %v2093
        %v2151 = vmul.f32 %v1636, %v2095
        %v2152 = vmul.f32 %v1637, %v2097
        %v2153 = vmul.f32 %v1638, %v2099
        %v2154 = vmul.f32 %v1639, %v2101
        %v2155 = vmul.f32 %v1640, %v2103
        %v2156 = vmul.f32 %v1641, %v2105
        %v2157 = vmul.f32 %v1642, %v2107
        %v2158 = vmul.f32 %v1643, %v2109
        %v2159 = vmul.f32 %v1644, %v2111
        %v2160 = vmul.f32 %v1645, %v2113
        %v2161 = vmul.f32 %v1646, %v2115
        %v2162 = vmul.f32 %v1647, %v2117
        %v2163 = vmul.f32 %v1648, %v2119
        %v2164 = vmul.f32 %v1649, %v2121
        %v2165 = vmul.f32 %v1650, %v2123
        %v2166 = vmul.f32 %v1651, %v2125
        %v2167 = vmul.f32 %v1652, %v2127
        %v2168 = vmul.f32 %v1653, %v2129
        %v2169 = vmul.f32 %v1654, %v2131
        %v2170 = vmul.f32 %v1655, %v2133
        %v2171 = vmul.f32 %v1656, %v2135
        %v2172 = vmul.f32 %v1657, %v2137
        %v2173 = vmul.f32 %v1658, %v2139
        %v2174 = vmul.f32 %v1659, %v2141
        %v2175 = vmul.f32 %v1660, %v2143
        %v2176 = vsub.f32 %v1938, %v2016
        %v2177 = vsub.f32 %v1940, %v2017
        %v2178 = vsub.f32 %v1942, %v2018
        %v2179 = vsub.f32 %v1944, %v2019
        %v2180 = vsub.f32 %v1948, %v2020
        %v2181 = vsub.f32 %v1950, %v2021
        %v2182 = vsub.f32 %v1952, %v2022
        %v2183 = vsub.f32 %v1954, %v2023
        %v2184 = vsub.f32 %v1958, %v2024
        %v2185 = vsub.f32 %v1960, %v2025
        %v2186 = vsub.f32 %v1962, %v2026
        %v2187 = vsub.f32 %v1964, %v2027
        %v2188 = vsub.f32 %v1968, %v2028
        %v2189 = vsub.f32 %v1970, %v2029
        %v2190 = vsub.f32 %v1972, %v2030
        %v2191 = vsub.f32 %v1974, %v2031
        %v2192 = vsub.f32 %v1978, %v2032
        %v2193 = vsub.f32 %v1980, %v2033
        %v2194 = vsub.f32 %v1982, %v2034
        %v2195 = vsub.f32 %v1984, %v2035
        %v2196 = vsub.f32 %v1988, %v2036
        %v2197 = vsub.f32 %v1990, %v2037
        %v2198 = vsub.f32 %v1992, %v2038
        %v2199 = vsub.f32 %v1994, %v2039
        %v2200 = vsub.f32 %v1998, %v2040
        %v2201 = vsub.f32 %v2000, %v2041
        %v2202 = vsub.f32 %v2002, %v2042
        %v2203 = vsub.f32 %v2004, %v2043
        %v2204 = vsub.f32 %v2008, %v2044
        %v2205 = vsub.f32 %v2010, %v2045
        %v2206 = vsub.f32 %v2012, %v2046
        %v2207 = vsub.f32 %v2014, %v2047
        %v2208 = vmul.f32 %v2176, 1.442695
        %v2209 = vpow.pop %v2208
        %v2210 = vmul.f32 %v2177, 1.442695
        %v2211 = vpow.pop %v2210
        %v2212 = vmul.f32 %v2178, 1.442695
        %v2213 = vpow.pop %v2212
        %v2214 = vmul.f32 %v2179, 1.442695
        %v2215 = vpow.pop %v2214
        %v2216 = vmul.f32 %v2180, 1.442695
        %v2217 = vpow.pop %v2216
        %v2218 = vmul.f32 %v2181, 1.442695
        %v2219 = vpow.pop %v2218
        %v2220 = vmul.f32 %v2182, 1.442695
        %v2221 = vpow.pop %v2220
        %v2222 = vmul.f32 %v2183, 1.442695
        %v2223 = vpow.pop %v2222
        %v2224 = vmul.f32 %v2184, 1.442695
        %v2225 = vpow.pop %v2224
        %v2226 = vmul.f32 %v2185, 1.442695
        %v2227 = vpow.pop %v2226
        %v2228 = vmul.f32 %v2186, 1.442695
        %v2229 = vpow.pop %v2228
        %v2230 = vmul.f32 %v2187, 1.442695
        %v2231 = vpow.pop %v2230
        %v2232 = vmul.f32 %v2188, 1.442695
        %v2233 = vpow.pop %v2232
        %v2234 = vmul.f32 %v2189, 1.442695
        %v2235 = vpow.pop %v2234
        %v2236 = vmul.f32 %v2190, 1.442695
        %v2237 = vpow.pop %v2236
        %v2238 = vmul.f32 %v2191, 1.442695
        %v2239 = vpow.pop %v2238
        %v2240 = vmul.f32 %v2192, 1.442695
        %v2241 = vpow.pop %v2240
        %v2242 = vmul.f32 %v2193, 1.442695
        %v2243 = vpow.pop %v2242
        %v2244 = vmul.f32 %v2194, 1.442695
        %v2245 = vpow.pop %v2244
        %v2246 = vmul.f32 %v2195, 1.442695
        %v2247 = vpow.pop %v2246
        %v2248 = vmul.f32 %v2196, 1.442695
        %v2249 = vpow.pop %v2248
        %v2250 = vmul.f32 %v2197, 1.442695
        %v2251 = vpow.pop %v2250
        %v2252 = vmul.f32 %v2198, 1.442695
        %v2253 = vpow.pop %v2252
        %v2254 = vmul.f32 %v2199, 1.442695
        %v2255 = vpow.pop %v2254
        %v2256 = vmul.f32 %v2200, 1.442695
        %v2257 = vpow.pop %v2256
        %v2258 = vmul.f32 %v2201, 1.442695
        %v2259 = vpow.pop %v2258
        %v2260 = vmul.f32 %v2202, 1.442695
        %v2261 = vpow.pop %v2260
        %v2262 = vmul.f32 %v2203, 1.442695
        %v2263 = vpow.pop %v2262
        %v2264 = vmul.f32 %v2204, 1.442695
        %v2265 = vpow.pop %v2264
        %v2266 = vmul.f32 %v2205, 1.442695
        %v2267 = vpow.pop %v2266
        %v2268 = vmul.f32 %v2206, 1.442695
        %v2269 = vpow.pop %v2268
        %v2270 = vmul.f32 %v2207, 1.442695
        %v2271 = vpow.pop %v2270
        %v2272 = vadd.f32 %v2144, %v2209
        %v2273 = vadd.f32 %v2145, %v2211
        %v2274 = vadd.f32 %v2146, %v2213
        %v2275 = vadd.f32 %v2147, %v2215
        %v2276 = vadd.f32 %v2148, %v2217
        %v2277 = vadd.f32 %v2149, %v2219
        %v2278 = vadd.f32 %v2150, %v2221
        %v2279 = vadd.f32 %v2151, %v2223
        %v2280 = vadd.f32 %v2152, %v2225
        %v2281 = vadd.f32 %v2153, %v2227
        %v2282 = vadd.f32 %v2154, %v2229
        %v2283 = vadd.f32 %v2155, %v2231
        %v2284 = vadd.f32 %v2156, %v2233
        %v2285 = vadd.f32 %v2157, %v2235
        %v2286 = vadd.f32 %v2158, %v2237
        %v2287 = vadd.f32 %v2159, %v2239
        %v2288 = vadd.f32 %v2160, %v2241
        %v2289 = vadd.f32 %v2161, %v2243
        %v2290 = vadd.f32 %v2162, %v2245
        %v2291 = vadd.f32 %v2163, %v2247
        %v2292 = vadd.f32 %v2164, %v2249
        %v2293 = vadd.f32 %v2165, %v2251
        %v2294 = vadd.f32 %v2166, %v2253
        %v2295 = vadd.f32 %v2167, %v2255
        %v2296 = vadd.f32 %v2168, %v2257
        %v2297 = vadd.f32 %v2169, %v2259
        %v2298 = vadd.f32 %v2170, %v2261
        %v2299 = vadd.f32 %v2171, %v2263
        %v2300 = vadd.f32 %v2172, %v2265
        %v2301 = vadd.f32 %v2173, %v2267
        %v2302 = vadd.f32 %v2174, %v2269
        %v2303 = vadd.f32 %v2175, %v2271
        %vm2304 = vcmp.eq.s32.totalorder %v355, 2
        %vm2305 = vcmp.eq.s32.totalorder %v356, 2
        %vm2306 = vcmp.eq.s32.totalorder %v357, 2
        %vm2307 = vcmp.eq.s32.totalorder %v358, 2
        %vm2308 = vcmp.eq.s32.totalorder %v359, 2
        %vm2309 = vcmp.eq.s32.totalorder %v360, 2
        %vm2310 = vcmp.eq.s32.totalorder %v361, 2
        %vm2311 = vcmp.eq.s32.totalorder %v362, 2
        %vm2312 = vcmp.eq.s32.totalorder %v363, 2
        %vm2313 = vcmp.eq.s32.totalorder %v364, 2
        %vm2314 = vcmp.eq.s32.totalorder %v365, 2
        %vm2315 = vcmp.eq.s32.totalorder %v366, 2
        %vm2316 = vcmp.eq.s32.totalorder %v367, 2
        %vm2317 = vcmp.eq.s32.totalorder %v368, 2
        %vm2318 = vcmp.eq.s32.totalorder %v369, 2
        %vm2319 = vcmp.eq.s32.totalorder %v370, 2
        %vm2320 = vcmp.eq.s32.totalorder %v371, 2
        %vm2321 = vcmp.eq.s32.totalorder %v372, 2
        %vm2322 = vcmp.eq.s32.totalorder %v373, 2
        %vm2323 = vcmp.eq.s32.totalorder %v374, 2
        %vm2324 = vcmp.eq.s32.totalorder %v375, 2
        %vm2325 = vcmp.eq.s32.totalorder %v376, 2
        %vm2326 = vcmp.eq.s32.totalorder %v377, 2
        %vm2327 = vcmp.eq.s32.totalorder %v378, 2
        %vm2328 = vcmp.eq.s32.totalorder %v379, 2
        %vm2329 = vcmp.eq.s32.totalorder %v380, 2
        %vm2330 = vcmp.eq.s32.totalorder %v381, 2
        %vm2331 = vcmp.eq.s32.totalorder %v382, 2
        %vm2332 = vcmp.eq.s32.totalorder %v383, 2
        %vm2333 = vcmp.eq.s32.totalorder %v384, 2
        %vm2334 = vcmp.eq.s32.totalorder %v385, 2
        %vm2335 = vcmp.eq.s32.totalorder %v386, 2
        %v2336 = vsel %vm2304, %v1938, 0.0
        %v2337 = vsel %vm2305, %v1940, 0.0
        %v2338 = vsel %vm2306, %v1942, 0.0
        %v2339 = vsel %vm2307, %v1944, 0.0
        %v2340 = vsel %vm2308, %v1948, 0.0
        %v2341 = vsel %vm2309, %v1950, 0.0
        %v2342 = vsel %vm2310, %v1952, 0.0
        %v2343 = vsel %vm2311, %v1954, 0.0
        %v2344 = vsel %vm2312, %v1958, 0.0
        %v2345 = vsel %vm2313, %v1960, 0.0
        %v2346 = vsel %vm2314, %v1962, 0.0
        %v2347 = vsel %vm2315, %v1964, 0.0
        %v2348 = vsel %vm2316, %v1968, 0.0
        %v2349 = vsel %vm2317, %v1970, 0.0
        %v2350 = vsel %vm2318, %v1972, 0.0
        %v2351 = vsel %vm2319, %v1974, 0.0
        %v2352 = vsel %vm2320, %v1978, 0.0
        %v2353 = vsel %vm2321, %v1980, 0.0
        %v2354 = vsel %vm2322, %v1982, 0.0
        %v2355 = vsel %vm2323, %v1984, 0.0
        %v2356 = vsel %vm2324, %v1988, 0.0
        %v2357 = vsel %vm2325, %v1990, 0.0
        %v2358 = vsel %vm2326, %v1992, 0.0
        %v2359 = vsel %vm2327, %v1994, 0.0
        %v2360 = vsel %vm2328, %v1998, 0.0
        %v2361 = vsel %vm2329, %v2000, 0.0
        %v2362 = vsel %vm2330, %v2002, 0.0
        %v2363 = vsel %vm2331, %v2004, 0.0
        %v2364 = vsel %vm2332, %v2008, 0.0
        %v2365 = vsel %vm2333, %v2010, 0.0
        %v2366 = vsel %vm2334, %v2012, 0.0
        %v2367 = vsel %vm2335, %v2014, 0.0
        %v2368 = vadd.f32 %v1725, %v2336
        %v2369 = vadd.f32 %v1726, %v2337
        %v2370 = vadd.f32 %v1727, %v2338
        %v2371 = vadd.f32 %v1728, %v2339
        %v2372 = vadd.f32 %v1729, %v2340
        %v2373 = vadd.f32 %v1730, %v2341
        %v2374 = vadd.f32 %v1731, %v2342
        %v2375 = vadd.f32 %v1732, %v2343
        %v2376 = vadd.f32 %v1733, %v2344
        %v2377 = vadd.f32 %v1734, %v2345
        %v2378 = vadd.f32 %v1735, %v2346
        %v2379 = vadd.f32 %v1736, %v2347
        %v2380 = vadd.f32 %v1737, %v2348
        %v2381 = vadd.f32 %v1738, %v2349
        %v2382 = vadd.f32 %v1739, %v2350
        %v2383 = vadd.f32 %v1740, %v2351
        %v2384 = vadd.f32 %v1741, %v2352
        %v2385 = vadd.f32 %v1742, %v2353
        %v2386 = vadd.f32 %v1743, %v2354
        %v2387 = vadd.f32 %v1744, %v2355
        %v2388 = vadd.f32 %v1745, %v2356
        %v2389 = vadd.f32 %v1746, %v2357
        %v2390 = vadd.f32 %v1747, %v2358
        %v2391 = vadd.f32 %v1748, %v2359
        %v2392 = vadd.f32 %v1749, %v2360
        %v2393 = vadd.f32 %v1750, %v2361
        %v2394 = vadd.f32 %v1751, %v2362
        %v2395 = vadd.f32 %v1752, %v2363
        %v2396 = vadd.f32 %v1753, %v2364
        %v2397 = vadd.f32 %v1754, %v2365
        %v2398 = vadd.f32 %v1755, %v2366
        %v2399 = vadd.f32 %v1756, %v2367
        %s2400 = scalar_lea.vmem %s270, 48 [#allocation2]
        %v2401 = vld [vmem:[%s2400] sm:$0xf]
        %v2402 = vld [vmem:[%s2400 + $0x4] sm:$0xf]
        %v2403 = vld [vmem:[%s2400 + $0x8] sm:$0xf]
        %v2404 = vld [vmem:[%s2400 + $0xc] sm:$0xf]
        %v2409 = vunpack.c.l.b16 %v2401
        %v2410 = vunpack.c.l.b16 %v2402
        %v2411 = vunpack.c.l.b16 %v2403
        %v2412 = vunpack.c.l.b16 %v2404
        %v2413 = vpack.c.b16 %v2410, %v2409
        %v2414 = vpack.c.b16 %v2412, %v2411
        %2417 = vmatprep.subr.bf16.mxu0 0
        %2418 = vmatpush1.bf16.msra.mxu0 %v2413
        %2419 = vmatprep.subr.bf16.mxu0 0
        %2420 = vmatpush1.bf16.msra.mxu0 %v2414
        %2421 = vmatprep.subr.bf16.mxu0 0
        %2422 = vmatpush1.bf16.msra.mxu0 0
        %2423 = vmatprep.subr.bf16.mxu0 0
        %2424 = vmatpush1.bf16.msra.mxu0 0
        %2425 = vmatprep.subr.bf16.mxu0 0
        %2426 = vmatpush1.bf16.msra.mxu0 0
        %2427 = vmatprep.subr.bf16.mxu0 0
        %2428 = vmatpush1.bf16.msra.mxu0 0
        %2429 = vmatprep.subr.bf16.mxu0 0
        %2430 = vmatpush1.bf16.msra.mxu0 0
        %2431 = vmatprep.subr.bf16.mxu0 0
        %2432 = vmatpush1.bf16.msra.mxu0 0
        %2433 = vmatprep.subr.bf16.mxu0 0
        %2434 = vmatpush1.bf16.msra.mxu0 0
        %2435 = vmatprep.subr.bf16.mxu0 0
        %2436 = vmatpush1.bf16.msra.mxu0 0
        %2437 = vmatprep.subr.bf16.mxu0 0
        %2438 = vmatpush1.bf16.msra.mxu0 0
        %2439 = vmatprep.subr.bf16.mxu0 0
        %2440 = vmatpush1.bf16.msra.mxu0 0
        %2441 = vmatprep.subr.bf16.mxu0 0
        %2442 = vmatpush1.bf16.msra.mxu0 0
        %2443 = vmatprep.subr.bf16.mxu0 0
        %2444 = vmatpush1.bf16.msra.mxu0 0
        %2445 = vmatprep.subr.bf16.mxu0 0
        %2446 = vmatpush1.bf16.msra.mxu0 0
        %2447 = vmatprep.subr.bf16.mxu0 0
        %2448 = vmatpush1.bf16.msra.mxu0 0
        %2449 = vmatprep.mubr.bf16.mxu0 0
        %2450 = vmatmul.mubr.bf16.gmra.mrb[0].mxu0 %v445
        %v2451 = vpop.f32.mrb[0].mxu0
        %v2452 = vadd.f32 0.0, %v2451
        %v2453 = vpop.f32.mrb[0].mxu0
        %v2454 = vpop.f32.mrb[0].mxu0
        %v2455 = vadd.f32 0.0, %v2454
        %v2456 = vpop.f32.mrb[0].mxu0
        %2457 = vmatprep.mubr.bf16.mxu0 0
        %2458 = vmatmul.mubr.bf16.gmra.mrb[0].mxu0 %v448
        %v2459 = vpop.f32.mrb[0].mxu0
        %v2460 = vadd.f32 0.0, %v2459
        %v2461 = vpop.f32.mrb[0].mxu0
        %v2462 = vpop.f32.mrb[0].mxu0
        %v2463 = vadd.f32 0.0, %v2462
        %v2464 = vpop.f32.mrb[0].mxu0
        %2465 = vmatprep.mubr.bf16.mxu0 0
        %2466 = vmatmul.mubr.bf16.gmra.mrb[0].mxu0 %v451
        %v2467 = vpop.f32.mrb[0].mxu0
        %v2468 = vadd.f32 0.0, %v2467
        %v2469 = vpop.f32.mrb[0].mxu0
        %v2470 = vpop.f32.mrb[0].mxu0
        %v2471 = vadd.f32 0.0, %v2470
        %v2472 = vpop.f32.mrb[0].mxu0
        %2473 = vmatprep.mubr.bf16.mxu0 0
        %2474 = vmatmul.mubr.bf16.gmra.mrb[0].mxu0 %v454
        %v2475 = vpop.f32.mrb[0].mxu0
        %v2476 = vadd.f32 0.0, %v2475
        %v2477 = vpop.f32.mrb[0].mxu0
        %v2478 = vpop.f32.mrb[0].mxu0
        %v2479 = vadd.f32 0.0, %v2478
        %v2480 = vpop.f32.mrb[0].mxu0
        %2481 = vmatprep.mubr.bf16.mxu0 0
        %2482 = vmatmul.mubr.bf16.gmra.mrb[0].mxu0 %v457
        %v2483 = vpop.f32.mrb[0].mxu0
        %v2484 = vadd.f32 0.0, %v2483
        %v2485 = vpop.f32.mrb[0].mxu0
        %v2486 = vpop.f32.mrb[0].mxu0
        %v2487 = vadd.f32 0.0, %v2486
        %v2488 = vpop.f32.mrb[0].mxu0
        %2489 = vmatprep.mubr.bf16.mxu0 0
        %2490 = vmatmul.mubr.bf16.gmra.mrb[0].mxu0 %v460
        %v2491 = vpop.f32.mrb[0].mxu0
        %v2492 = vadd.f32 0.0, %v2491
        %v2493 = vpop.f32.mrb[0].mxu0
        %v2494 = vpop.f32.mrb[0].mxu0
        %v2495 = vadd.f32 0.0, %v2494
        %v2496 = vpop.f32.mrb[0].mxu0
        %2497 = vmatprep.mubr.bf16.mxu0 0
        %2498 = vmatmul.mubr.bf16.gmra.mrb[0].mxu0 %v463
        %v2499 = vpop.f32.mrb[0].mxu0
        %v2500 = vadd.f32 0.0, %v2499
        %v2501 = vpop.f32.mrb[0].mxu0
        %v2502 = vpop.f32.mrb[0].mxu0
        %v2503 = vadd.f32 0.0, %v2502
        %v2504 = vpop.f32.mrb[0].mxu0
        %2505 = vmatprep.mubr.bf16.mxu0 0
        %2506 = vmatmul.mubr.bf16.gmra.mrb[0].mxu0 %v466
        %v2507 = vpop.f32.mrb[0].mxu0
        %v2508 = vadd.f32 0.0, %v2507
        %v2509 = vpop.f32.mrb[0].mxu0
        %v2510 = vpop.f32.mrb[0].mxu0
        %v2511 = vadd.f32 0.0, %v2510
        %v2512 = vpop.f32.mrb[0].mxu0
        %2513 = vdwg.mxu0
        %v2514 = vpack.c.bf16 %v2455, %v2452
        %v2515 = vpack.c.bf16 %v2463, %v2460
        %v2516 = vpack.c.bf16 %v2471, %v2468
        %v2517 = vpack.c.bf16 %v2479, %v2476
        %v2518 = vpack.c.bf16 %v2487, %v2484
        %v2519 = vpack.c.bf16 %v2495, %v2492
        %v2520 = vpack.c.bf16 %v2503, %v2500
        %v2521 = vpack.c.bf16 %v2511, %v2508
        %v2523 = vsel %vm443, %v2514, 0
        %v2526 = vsel %vm443, %v2515, 0
        %v2529 = vsel %vm443, %v2516, 0
        %v2532 = vsel %vm443, %v2517, 0
        %v2535 = vsel %vm443, %v2518, 0
        %v2538 = vsel %vm443, %v2519, 0
        %v2541 = vsel %vm443, %v2520, 0
        %v2544 = vsel %vm443, %v2521, 0
        %2546 = vmatprep.subr.bf16.mxu0 %v586
        %2547 = vmatpush1.bf16.msra.mxu0 %v585
        %2548 = vmatprep.subr.bf16.mxu0 %v588
        %2549 = vmatpush1.bf16.msra.mxu0 %v587
        %2550 = vmatprep.subr.bf16.mxu0 0
        %2551 = vmatpush1.bf16.msra.mxu0 0
        %2552 = vmatprep.subr.bf16.mxu0 0
        %2553 = vmatpush1.bf16.msra.mxu0 0
        %2554 = vmatprep.subr.bf16.mxu0 0
        %2555 = vmatpush1.bf16.msra.mxu0 0
        %2556 = vmatprep.subr.bf16.mxu0 0
        %2557 = vmatpush1.bf16.msra.mxu0 0
        %2558 = vmatprep.subr.bf16.mxu0 0
        %2559 = vmatpush1.bf16.msra.mxu0 0
        %2560 = vmatprep.subr.bf16.mxu0 0
        %2561 = vmatpush1.bf16.msra.mxu0 0
        %2562 = vmatprep.subr.bf16.mxu0 0
        %2563 = vmatpush1.bf16.msra.mxu0 0
        %2564 = vmatprep.subr.bf16.mxu0 0
        %2565 = vmatpush1.bf16.msra.mxu0 0
        %2566 = vmatprep.subr.bf16.mxu0 0
        %2567 = vmatpush1.bf16.msra.mxu0 0
        %2568 = vmatprep.subr.bf16.mxu0 0
        %2569 = vmatpush1.bf16.msra.mxu0 0
        %2570 = vmatprep.subr.bf16.mxu0 0
        %2571 = vmatpush1.bf16.msra.mxu0 0
        %2572 = vmatprep.subr.bf16.mxu0 0
        %2573 = vmatpush1.bf16.msra.mxu0 0
        %2574 = vmatprep.subr.bf16.mxu0 0
        %2575 = vmatpush1.bf16.msra.mxu0 0
        %2576 = vmatprep.subr.bf16.mxu0 0
        %2577 = vmatpush1.bf16.msra.mxu0 0
        %2578 = vmatprep.mubr.bf16.mxu0 0
        %2579 = vmatmul.mubr.bf16.gmra.mrb[0].mxu0 %v2523
        %v2580 = vpop.f32.mrb[0].mxu0
        %v2581 = vadd.f32 0.0, %v2580
        %v2582 = vpop.f32.mrb[0].mxu0
        %v2583 = vadd.f32 0.0, %v2582
        %v2584 = vpop.f32.mrb[0].mxu0
        %v2585 = vadd.f32 0.0, %v2584
        %v2586 = vpop.f32.mrb[0].mxu0
        %v2587 = vadd.f32 0.0, %v2586
        %2588 = vmatprep.mubr.bf16.mxu0 0
        %2589 = vmatmul.mubr.bf16.gmra.mrb[0].mxu0 %v2526
        %v2590 = vpop.f32.mrb[0].mxu0
        %v2591 = vadd.f32 0.0, %v2590
        %v2592 = vpop.f32.mrb[0].mxu0
        %v2593 = vadd.f32 0.0, %v2592
        %v2594 = vpop.f32.mrb[0].mxu0
        %v2595 = vadd.f32 0.0, %v2594
        %v2596 = vpop.f32.mrb[0].mxu0
        %v2597 = vadd.f32 0.0, %v2596
        %2598 = vmatprep.mubr.bf16.mxu0 0
        %2599 = vmatmul.mubr.bf16.gmra.mrb[0].mxu0 %v2529
        %v2600 = vpop.f32.mrb[0].mxu0
        %v2601 = vadd.f32 0.0, %v2600
        %v2602 = vpop.f32.mrb[0].mxu0
        %v2603 = vadd.f32 0.0, %v2602
        %v2604 = vpop.f32.mrb[0].mxu0
        %v2605 = vadd.f32 0.0, %v2604
        %v2606 = vpop.f32.mrb[0].mxu0
        %v2607 = vadd.f32 0.0, %v2606
        %2608 = vmatprep.mubr.bf16.mxu0 0
        %2609 = vmatmul.mubr.bf16.gmra.mrb[0].mxu0 %v2532
        %v2610 = vpop.f32.mrb[0].mxu0
        %v2611 = vadd.f32 0.0, %v2610
        %v2612 = vpop.f32.mrb[0].mxu0
        %v2613 = vadd.f32 0.0, %v2612
        %v2614 = vpop.f32.mrb[0].mxu0
        %v2615 = vadd.f32 0.0, %v2614
        %v2616 = vpop.f32.mrb[0].mxu0
        %v2617 = vadd.f32 0.0, %v2616
        %2618 = vmatprep.mubr.bf16.mxu0 0
        %2619 = vmatmul.mubr.bf16.gmra.mrb[0].mxu0 %v2535
        %v2620 = vpop.f32.mrb[0].mxu0
        %v2621 = vadd.f32 0.0, %v2620
        %v2622 = vpop.f32.mrb[0].mxu0
        %v2623 = vadd.f32 0.0, %v2622
        %v2624 = vpop.f32.mrb[0].mxu0
        %v2625 = vadd.f32 0.0, %v2624
        %v2626 = vpop.f32.mrb[0].mxu0
        %v2627 = vadd.f32 0.0, %v2626
        %2628 = vmatprep.mubr.bf16.mxu0 0
        %2629 = vmatmul.mubr.bf16.gmra.mrb[0].mxu0 %v2538
        %v2630 = vpop.f32.mrb[0].mxu0
        %v2631 = vadd.f32 0.0, %v2630
        %v2632 = vpop.f32.mrb[0].mxu0
        %v2633 = vadd.f32 0.0, %v2632
        %v2634 = vpop.f32.mrb[0].mxu0
        %v2635 = vadd.f32 0.0, %v2634
        %v2636 = vpop.f32.mrb[0].mxu0
        %v2637 = vadd.f32 0.0, %v2636
        %2638 = vmatprep.mubr.bf16.mxu0 0
        %2639 = vmatmul.mubr.bf16.gmra.mrb[0].mxu0 %v2541
        %v2640 = vpop.f32.mrb[0].mxu0
        %v2641 = vadd.f32 0.0, %v2640
        %v2642 = vpop.f32.mrb[0].mxu0
        %v2643 = vadd.f32 0.0, %v2642
        %v2644 = vpop.f32.mrb[0].mxu0
        %v2645 = vadd.f32 0.0, %v2644
        %v2646 = vpop.f32.mrb[0].mxu0
        %v2647 = vadd.f32 0.0, %v2646
        %2648 = vmatprep.mubr.bf16.mxu0 0
        %2649 = vmatmul.mubr.bf16.gmra.mrb[0].mxu0 %v2544
        %v2650 = vpop.f32.mrb[0].mxu0
        %v2651 = vadd.f32 0.0, %v2650
        %v2652 = vpop.f32.mrb[0].mxu0
        %v2653 = vadd.f32 0.0, %v2652
        %v2654 = vpop.f32.mrb[0].mxu0
        %v2655 = vadd.f32 0.0, %v2654
        %v2656 = vpop.f32.mrb[0].mxu0
        %v2657 = vadd.f32 0.0, %v2656
        %2658 = vdwg.mxu0
        %v2659 = vmax.f32 %v2016, %v2581
        %v2660 = vmax.f32 %v2017, %v2583
        %v2661 = vmax.f32 %v2018, %v2585
        %v2662 = vmax.f32 %v2019, %v2587
        %v2663 = vmax.f32 %v2020, %v2591
        %v2664 = vmax.f32 %v2021, %v2593
        %v2665 = vmax.f32 %v2022, %v2595
        %v2666 = vmax.f32 %v2023, %v2597
        %v2667 = vmax.f32 %v2024, %v2601
        %v2668 = vmax.f32 %v2025, %v2603
        %v2669 = vmax.f32 %v2026, %v2605
        %v2670 = vmax.f32 %v2027, %v2607
        %v2671 = vmax.f32 %v2028, %v2611
        %v2672 = vmax.f32 %v2029, %v2613
        %v2673 = vmax.f32 %v2030, %v2615
        %v2674 = vmax.f32 %v2031, %v2617
        %v2675 = vmax.f32 %v2032, %v2621
        %v2676 = vmax.f32 %v2033, %v2623
        %v2677 = vmax.f32 %v2034, %v2625
        %v2678 = vmax.f32 %v2035, %v2627
        %v2679 = vmax.f32 %v2036, %v2631
        %v2680 = vmax.f32 %v2037, %v2633
        %v2681 = vmax.f32 %v2038, %v2635
        %v2682 = vmax.f32 %v2039, %v2637
        %v2683 = vmax.f32 %v2040, %v2641
        %v2684 = vmax.f32 %v2041, %v2643
        %v2685 = vmax.f32 %v2042, %v2645
        %v2686 = vmax.f32 %v2043, %v2647
        %v2687 = vmax.f32 %v2044, %v2651
        %v2688 = vmax.f32 %v2045, %v2653
        %v2689 = vmax.f32 %v2046, %v2655
        %v2690 = vmax.f32 %v2047, %v2657
        %v2691 = vsub.f32 %v2016, %v2659
        %v2692 = vsub.f32 %v2017, %v2660
        %v2693 = vsub.f32 %v2018, %v2661
        %v2694 = vsub.f32 %v2019, %v2662
        %v2695 = vsub.f32 %v2020, %v2663
        %v2696 = vsub.f32 %v2021, %v2664
        %v2697 = vsub.f32 %v2022, %v2665
        %v2698 = vsub.f32 %v2023, %v2666
        %v2699 = vsub.f32 %v2024, %v2667
        %v2700 = vsub.f32 %v2025, %v2668
        %v2701 = vsub.f32 %v2026, %v2669
        %v2702 = vsub.f32 %v2027, %v2670
        %v2703 = vsub.f32 %v2028, %v2671
        %v2704 = vsub.f32 %v2029, %v2672
        %v2705 = vsub.f32 %v2030, %v2673
        %v2706 = vsub.f32 %v2031, %v2674
        %v2707 = vsub.f32 %v2032, %v2675
        %v2708 = vsub.f32 %v2033, %v2676
        %v2709 = vsub.f32 %v2034, %v2677
        %v2710 = vsub.f32 %v2035, %v2678
        %v2711 = vsub.f32 %v2036, %v2679
        %v2712 = vsub.f32 %v2037, %v2680
        %v2713 = vsub.f32 %v2038, %v2681
        %v2714 = vsub.f32 %v2039, %v2682
        %v2715 = vsub.f32 %v2040, %v2683
        %v2716 = vsub.f32 %v2041, %v2684
        %v2717 = vsub.f32 %v2042, %v2685
        %v2718 = vsub.f32 %v2043, %v2686
        %v2719 = vsub.f32 %v2044, %v2687
        %v2720 = vsub.f32 %v2045, %v2688
        %v2721 = vsub.f32 %v2046, %v2689
        %v2722 = vsub.f32 %v2047, %v2690
        %v2723 = vmul.f32 %v2691, 1.442695
        %v2724 = vpow.pop %v2723
        %v2725 = vmul.f32 %v2692, 1.442695
        %v2726 = vpow.pop %v2725
        %v2727 = vmul.f32 %v2693, 1.442695
        %v2728 = vpow.pop %v2727
        %v2729 = vmul.f32 %v2694, 1.442695
        %v2730 = vpow.pop %v2729
        %v2731 = vmul.f32 %v2695, 1.442695
        %v2732 = vpow.pop %v2731
        %v2733 = vmul.f32 %v2696, 1.442695
        %v2734 = vpow.pop %v2733
        %v2735 = vmul.f32 %v2697, 1.442695
        %v2736 = vpow.pop %v2735
        %v2737 = vmul.f32 %v2698, 1.442695
        %v2738 = vpow.pop %v2737
        %v2739 = vmul.f32 %v2699, 1.442695
        %v2740 = vpow.pop %v2739
        %v2741 = vmul.f32 %v2700, 1.442695
        %v2742 = vpow.pop %v2741
        %v2743 = vmul.f32 %v2701, 1.442695
        %v2744 = vpow.pop %v2743
        %v2745 = vmul.f32 %v2702, 1.442695
        %v2746 = vpow.pop %v2745
        %v2747 = vmul.f32 %v2703, 1.442695
        %v2748 = vpow.pop %v2747
        %v2749 = vmul.f32 %v2704, 1.442695
        %v2750 = vpow.pop %v2749
        %v2751 = vmul.f32 %v2705, 1.442695
        %v2752 = vpow.pop %v2751
        %v2753 = vmul.f32 %v2706, 1.442695
        %v2754 = vpow.pop %v2753
        %v2755 = vmul.f32 %v2707, 1.442695
        %v2756 = vpow.pop %v2755
        %v2757 = vmul.f32 %v2708, 1.442695
        %v2758 = vpow.pop %v2757
        %v2759 = vmul.f32 %v2709, 1.442695
        %v2760 = vpow.pop %v2759
        %v2761 = vmul.f32 %v2710, 1.442695
        %v2762 = vpow.pop %v2761
        %v2763 = vmul.f32 %v2711, 1.442695
        %v2764 = vpow.pop %v2763
        %v2765 = vmul.f32 %v2712, 1.442695
        %v2766 = vpow.pop %v2765
        %v2767 = vmul.f32 %v2713, 1.442695
        %v2768 = vpow.pop %v2767
        %v2769 = vmul.f32 %v2714, 1.442695
        %v2770 = vpow.pop %v2769
        %v2771 = vmul.f32 %v2715, 1.442695
        %v2772 = vpow.pop %v2771
        %v2773 = vmul.f32 %v2716, 1.442695
        %v2774 = vpow.pop %v2773
        %v2775 = vmul.f32 %v2717, 1.442695
        %v2776 = vpow.pop %v2775
        %v2777 = vmul.f32 %v2718, 1.442695
        %v2778 = vpow.pop %v2777
        %v2779 = vmul.f32 %v2719, 1.442695
        %v2780 = vpow.pop %v2779
        %v2781 = vmul.f32 %v2720, 1.442695
        %v2782 = vpow.pop %v2781
        %v2783 = vmul.f32 %v2721, 1.442695
        %v2784 = vpow.pop %v2783
        %v2785 = vmul.f32 %v2722, 1.442695
        %v2786 = vpow.pop %v2785
        %v2787 = vmul.f32 %v2272, %v2724
        %v2788 = vmul.f32 %v2273, %v2726
        %v2789 = vmul.f32 %v2274, %v2728
        %v2790 = vmul.f32 %v2275, %v2730
        %v2791 = vmul.f32 %v2276, %v2732
        %v2792 = vmul.f32 %v2277, %v2734
        %v2793 = vmul.f32 %v2278, %v2736
        %v2794 = vmul.f32 %v2279, %v2738
        %v2795 = vmul.f32 %v2280, %v2740
        %v2796 = vmul.f32 %v2281, %v2742
        %v2797 = vmul.f32 %v2282, %v2744
        %v2798 = vmul.f32 %v2283, %v2746
        %v2799 = vmul.f32 %v2284, %v2748
        %v2800 = vmul.f32 %v2285, %v2750
        %v2801 = vmul.f32 %v2286, %v2752
        %v2802 = vmul.f32 %v2287, %v2754
        %v2803 = vmul.f32 %v2288, %v2756
        %v2804 = vmul.f32 %v2289, %v2758
        %v2805 = vmul.f32 %v2290, %v2760
        %v2806 = vmul.f32 %v2291, %v2762
        %v2807 = vmul.f32 %v2292, %v2764
        %v2808 = vmul.f32 %v2293, %v2766
        %v2809 = vmul.f32 %v2294, %v2768
        %v2810 = vmul.f32 %v2295, %v2770
        %v2811 = vmul.f32 %v2296, %v2772
        %v2812 = vmul.f32 %v2297, %v2774
        %v2813 = vmul.f32 %v2298, %v2776
        %v2814 = vmul.f32 %v2299, %v2778
        %v2815 = vmul.f32 %v2300, %v2780
        %v2816 = vmul.f32 %v2301, %v2782
        %v2817 = vmul.f32 %v2302, %v2784
        %v2818 = vmul.f32 %v2303, %v2786
        %v2819 = vsub.f32 %v2581, %v2659
        %v2820 = vsub.f32 %v2583, %v2660
        %v2821 = vsub.f32 %v2585, %v2661
        %v2822 = vsub.f32 %v2587, %v2662
        %v2823 = vsub.f32 %v2591, %v2663
        %v2824 = vsub.f32 %v2593, %v2664
        %v2825 = vsub.f32 %v2595, %v2665
        %v2826 = vsub.f32 %v2597, %v2666
        %v2827 = vsub.f32 %v2601, %v2667
        %v2828 = vsub.f32 %v2603, %v2668
        %v2829 = vsub.f32 %v2605, %v2669
        %v2830 = vsub.f32 %v2607, %v2670
        %v2831 = vsub.f32 %v2611, %v2671
        %v2832 = vsub.f32 %v2613, %v2672
        %v2833 = vsub.f32 %v2615, %v2673
        %v2834 = vsub.f32 %v2617, %v2674
        %v2835 = vsub.f32 %v2621, %v2675
        %v2836 = vsub.f32 %v2623, %v2676
        %v2837 = vsub.f32 %v2625, %v2677
        %v2838 = vsub.f32 %v2627, %v2678
        %v2839 = vsub.f32 %v2631, %v2679
        %v2840 = vsub.f32 %v2633, %v2680
        %v2841 = vsub.f32 %v2635, %v2681
        %v2842 = vsub.f32 %v2637, %v2682
        %v2843 = vsub.f32 %v2641, %v2683
        %v2844 = vsub.f32 %v2643, %v2684
        %v2845 = vsub.f32 %v2645, %v2685
        %v2846 = vsub.f32 %v2647, %v2686
        %v2847 = vsub.f32 %v2651, %v2687
        %v2848 = vsub.f32 %v2653, %v2688
        %v2849 = vsub.f32 %v2655, %v2689
        %v2850 = vsub.f32 %v2657, %v2690
        %v2851 = vmul.f32 %v2819, 1.442695
        %v2852 = vpow.pop %v2851
        %v2853 = vmul.f32 %v2820, 1.442695
        %v2854 = vpow.pop %v2853
        %v2855 = vmul.f32 %v2821, 1.442695
        %v2856 = vpow.pop %v2855
        %v2857 = vmul.f32 %v2822, 1.442695
        %v2858 = vpow.pop %v2857
        %v2859 = vmul.f32 %v2823, 1.442695
        %v2860 = vpow.pop %v2859
        %v2861 = vmul.f32 %v2824, 1.442695
        %v2862 = vpow.pop %v2861
        %v2863 = vmul.f32 %v2825, 1.442695
        %v2864 = vpow.pop %v2863
        %v2865 = vmul.f32 %v2826, 1.442695
        %v2866 = vpow.pop %v2865
        %v2867 = vmul.f32 %v2827, 1.442695
        %v2868 = vpow.pop %v2867
        %v2869 = vmul.f32 %v2828, 1.442695
        %v2870 = vpow.pop %v2869
        %v2871 = vmul.f32 %v2829, 1.442695
        %v2872 = vpow.pop %v2871
        %v2873 = vmul.f32 %v2830, 1.442695
        %v2874 = vpow.pop %v2873
        %v2875 = vmul.f32 %v2831, 1.442695
        %v2876 = vpow.pop %v2875
        %v2877 = vmul.f32 %v2832, 1.442695
        %v2878 = vpow.pop %v2877
        %v2879 = vmul.f32 %v2833, 1.442695
        %v2880 = vpow.pop %v2879
        %v2881 = vmul.f32 %v2834, 1.442695
        %v2882 = vpow.pop %v2881
        %v2883 = vmul.f32 %v2835, 1.442695
        %v2884 = vpow.pop %v2883
        %v2885 = vmul.f32 %v2836, 1.442695
        %v2886 = vpow.pop %v2885
        %v2887 = vmul.f32 %v2837, 1.442695
        %v2888 = vpow.pop %v2887
        %v2889 = vmul.f32 %v2838, 1.442695
        %v2890 = vpow.pop %v2889
        %v2891 = vmul.f32 %v2839, 1.442695
        %v2892 = vpow.pop %v2891
        %v2893 = vmul.f32 %v2840, 1.442695
        %v2894 = vpow.pop %v2893
        %v2895 = vmul.f32 %v2841, 1.442695
        %v2896 = vpow.pop %v2895
        %v2897 = vmul.f32 %v2842, 1.442695
        %v2898 = vpow.pop %v2897
        %v2899 = vmul.f32 %v2843, 1.442695
        %v2900 = vpow.pop %v2899
        %v2901 = vmul.f32 %v2844, 1.442695
        %v2902 = vpow.pop %v2901
        %v2903 = vmul.f32 %v2845, 1.442695
        %v2904 = vpow.pop %v2903
        %v2905 = vmul.f32 %v2846, 1.442695
        %v2906 = vpow.pop %v2905
        %v2907 = vmul.f32 %v2847, 1.442695
        %v2908 = vpow.pop %v2907
        %v2909 = vmul.f32 %v2848, 1.442695
        %v2910 = vpow.pop %v2909
        %v2911 = vmul.f32 %v2849, 1.442695
        %v2912 = vpow.pop %v2911
        %v2913 = vmul.f32 %v2850, 1.442695
        %v2914 = vpow.pop %v2913
        %v2915 = vadd.f32 %v2787, %v2852
        %v2916 = vadd.f32 %v2788, %v2854
        %v2917 = vadd.f32 %v2789, %v2856
        %v2918 = vadd.f32 %v2790, %v2858
        %v2919 = vadd.f32 %v2791, %v2860
        %v2920 = vadd.f32 %v2792, %v2862
        %v2921 = vadd.f32 %v2793, %v2864
        %v2922 = vadd.f32 %v2794, %v2866
        %v2923 = vadd.f32 %v2795, %v2868
        %v2924 = vadd.f32 %v2796, %v2870
        %v2925 = vadd.f32 %v2797, %v2872
        %v2926 = vadd.f32 %v2798, %v2874
        %v2927 = vadd.f32 %v2799, %v2876
        %v2928 = vadd.f32 %v2800, %v2878
        %v2929 = vadd.f32 %v2801, %v2880
        %v2930 = vadd.f32 %v2802, %v2882
        %v2931 = vadd.f32 %v2803, %v2884
        %v2932 = vadd.f32 %v2804, %v2886
        %v2933 = vadd.f32 %v2805, %v2888
        %v2934 = vadd.f32 %v2806, %v2890
        %v2935 = vadd.f32 %v2807, %v2892
        %v2936 = vadd.f32 %v2808, %v2894
        %v2937 = vadd.f32 %v2809, %v2896
        %v2938 = vadd.f32 %v2810, %v2898
        %v2939 = vadd.f32 %v2811, %v2900
        %v2940 = vadd.f32 %v2812, %v2902
        %v2941 = vadd.f32 %v2813, %v2904
        %v2942 = vadd.f32 %v2814, %v2906
        %v2943 = vadd.f32 %v2815, %v2908
        %v2944 = vadd.f32 %v2816, %v2910
        %v2945 = vadd.f32 %v2817, %v2912
        %v2946 = vadd.f32 %v2818, %v2914
        %vm2947 = vcmp.eq.s32.totalorder %v355, 3
        %vm2948 = vcmp.eq.s32.totalorder %v356, 3
        %vm2949 = vcmp.eq.s32.totalorder %v357, 3
        %vm2950 = vcmp.eq.s32.totalorder %v358, 3
        %vm2951 = vcmp.eq.s32.totalorder %v359, 3
        %vm2952 = vcmp.eq.s32.totalorder %v360, 3
        %vm2953 = vcmp.eq.s32.totalorder %v361, 3
        %vm2954 = vcmp.eq.s32.totalorder %v362, 3
        %vm2955 = vcmp.eq.s32.totalorder %v363, 3
        %vm2956 = vcmp.eq.s32.totalorder %v364, 3
        %vm2957 = vcmp.eq.s32.totalorder %v365, 3
        %vm2958 = vcmp.eq.s32.totalorder %v366, 3
        %vm2959 = vcmp.eq.s32.totalorder %v367, 3
        %vm2960 = vcmp.eq.s32.totalorder %v368, 3
        %vm2961 = vcmp.eq.s32.totalorder %v369, 3
        %vm2962 = vcmp.eq.s32.totalorder %v370, 3
        %vm2963 = vcmp.eq.s32.totalorder %v371, 3
        %vm2964 = vcmp.eq.s32.totalorder %v372, 3
        %vm2965 = vcmp.eq.s32.totalorder %v373, 3
        %vm2966 = vcmp.eq.s32.totalorder %v374, 3
        %vm2967 = vcmp.eq.s32.totalorder %v375, 3
        %vm2968 = vcmp.eq.s32.totalorder %v376, 3
        %vm2969 = vcmp.eq.s32.totalorder %v377, 3
        %vm2970 = vcmp.eq.s32.totalorder %v378, 3
        %vm2971 = vcmp.eq.s32.totalorder %v379, 3
        %vm2972 = vcmp.eq.s32.totalorder %v380, 3
        %vm2973 = vcmp.eq.s32.totalorder %v381, 3
        %vm2974 = vcmp.eq.s32.totalorder %v382, 3
        %vm2975 = vcmp.eq.s32.totalorder %v383, 3
        %vm2976 = vcmp.eq.s32.totalorder %v384, 3
        %vm2977 = vcmp.eq.s32.totalorder %v385, 3
        %vm2978 = vcmp.eq.s32.totalorder %v386, 3
        %v2979 = vsel %vm2947, %v2581, 0.0
        %v2980 = vsel %vm2948, %v2583, 0.0
        %v2981 = vsel %vm2949, %v2585, 0.0
        %v2982 = vsel %vm2950, %v2587, 0.0
        %v2983 = vsel %vm2951, %v2591, 0.0
        %v2984 = vsel %vm2952, %v2593, 0.0
        %v2985 = vsel %vm2953, %v2595, 0.0
        %v2986 = vsel %vm2954, %v2597, 0.0
        %v2987 = vsel %vm2955, %v2601, 0.0
        %v2988 = vsel %vm2956, %v2603, 0.0
        %v2989 = vsel %vm2957, %v2605, 0.0
        %v2990 = vsel %vm2958, %v2607, 0.0
        %v2991 = vsel %vm2959, %v2611, 0.0
        %v2992 = vsel %vm2960, %v2613, 0.0
        %v2993 = vsel %vm2961, %v2615, 0.0
        %v2994 = vsel %vm2962, %v2617, 0.0
        %v2995 = vsel %vm2963, %v2621, 0.0
        %v2996 = vsel %vm2964, %v2623, 0.0
        %v2997 = vsel %vm2965, %v2625, 0.0
        %v2998 = vsel %vm2966, %v2627, 0.0
        %v2999 = vsel %vm2967, %v2631, 0.0
        %v3000 = vsel %vm2968, %v2633, 0.0
        %v3001 = vsel %vm2969, %v2635, 0.0
        %v3002 = vsel %vm2970, %v2637, 0.0
        %v3003 = vsel %vm2971, %v2641, 0.0
        %v3004 = vsel %vm2972, %v2643, 0.0
        %v3005 = vsel %vm2973, %v2645, 0.0
        %v3006 = vsel %vm2974, %v2647, 0.0
        %v3007 = vsel %vm2975, %v2651, 0.0
        %v3008 = vsel %vm2976, %v2653, 0.0
        %v3009 = vsel %vm2977, %v2655, 0.0
        %v3010 = vsel %vm2978, %v2657, 0.0
        %v3011 = vadd.f32 %v2368, %v2979
        %v3012 = vadd.f32 %v2369, %v2980
        %v3013 = vadd.f32 %v2370, %v2981
        %v3014 = vadd.f32 %v2371, %v2982
        %v3015 = vadd.f32 %v2372, %v2983
        %v3016 = vadd.f32 %v2373, %v2984
        %v3017 = vadd.f32 %v2374, %v2985
        %v3018 = vadd.f32 %v2375, %v2986
        %v3019 = vadd.f32 %v2376, %v2987
        %v3020 = vadd.f32 %v2377, %v2988
        %v3021 = vadd.f32 %v2378, %v2989
        %v3022 = vadd.f32 %v2379, %v2990
        %v3023 = vadd.f32 %v2380, %v2991
        %v3024 = vadd.f32 %v2381, %v2992
        %v3025 = vadd.f32 %v2382, %v2993
        %v3026 = vadd.f32 %v2383, %v2994
        %v3027 = vadd.f32 %v2384, %v2995
        %v3028 = vadd.f32 %v2385, %v2996
        %v3029 = vadd.f32 %v2386, %v2997
        %v3030 = vadd.f32 %v2387, %v2998
        %v3031 = vadd.f32 %v2388, %v2999
        %v3032 = vadd.f32 %v2389, %v3000
        %v3033 = vadd.f32 %v2390, %v3001
        %v3034 = vadd.f32 %v2391, %v3002
        %v3035 = vadd.f32 %v2392, %v3003
        %v3036 = vadd.f32 %v2393, %v3004
        %v3037 = vadd.f32 %v2394, %v3005
        %v3038 = vadd.f32 %v2395, %v3006
        %v3039 = vadd.f32 %v2396, %v3007
        %v3040 = vadd.f32 %v2397, %v3008
        %v3041 = vadd.f32 %v2398, %v3009
        %v3042 = vadd.f32 %v2399, %v3010
        %s3043 = scalar_lea.vmem %s270, 64 [#allocation2]
        %v3044 = vld [vmem:[%s3043] sm:$0xf]
        %v3045 = vld [vmem:[%s3043 + $0x4] sm:$0xf]
        %v3046 = vld [vmem:[%s3043 + $0x8] sm:$0xf]
        %v3047 = vld [vmem:[%s3043 + $0xc] sm:$0xf]
        %v3052 = vunpack.c.l.b16 %v3044
        %v3053 = vunpack.c.l.b16 %v3045
        %v3054 = vunpack.c.l.b16 %v3046
        %v3055 = vunpack.c.l.b16 %v3047
        %v3056 = vpack.c.b16 %v3053, %v3052
        %v3057 = vpack.c.b16 %v3055, %v3054
        %3060 = vmatprep.subr.bf16.mxu0 0
        %3061 = vmatpush1.bf16.msra.mxu0 %v3056
        %3062 = vmatprep.subr.bf16.mxu0 0
        %3063 = vmatpush1.bf16.msra.mxu0 %v3057
        %3064 = vmatprep.subr.bf16.mxu0 0
        %3065 = vmatpush1.bf16.msra.mxu0 0
        %3066 = vmatprep.subr.bf16.mxu0 0
        %3067 = vmatpush1.bf16.msra.mxu0 0
        %3068 = vmatprep.subr.bf16.mxu0 0
        %3069 = vmatpush1.bf16.msra.mxu0 0
        %3070 = vmatprep.subr.bf16.mxu0 0
        %3071 = vmatpush1.bf16.msra.mxu0 0
        %3072 = vmatprep.subr.bf16.mxu0 0
        %3073 = vmatpush1.bf16.msra.mxu0 0
        %3074 = vmatprep.subr.bf16.mxu0 0
        %3075 = vmatpush1.bf16.msra.mxu0 0
        %3076 = vmatprep.subr.bf16.mxu0 0
        %3077 = vmatpush1.bf16.msra.mxu0 0
        %3078 = vmatprep.subr.bf16.mxu0 0
        %3079 = vmatpush1.bf16.msra.mxu0 0
        %3080 = vmatprep.subr.bf16.mxu0 0
        %3081 = vmatpush1.bf16.msra.mxu0 0
        %3082 = vmatprep.subr.bf16.mxu0 0
        %3083 = vmatpush1.bf16.msra.mxu0 0
        %3084 = vmatprep.subr.bf16.mxu0 0
        %3085 = vmatpush1.bf16.msra.mxu0 0
        %3086 = vmatprep.subr.bf16.mxu0 0
        %3087 = vmatpush1.bf16.msra.mxu0 0
        %3088 = vmatprep.subr.bf16.mxu0 0
        %3089 = vmatpush1.bf16.msra.mxu0 0
        %3090 = vmatprep.subr.bf16.mxu0 0
        %3091 = vmatpush1.bf16.msra.mxu0 0
        %3092 = vmatprep.mubr.bf16.mxu0 0
        %3093 = vmatmul.mubr.bf16.gmra.mrb[0].mxu0 %v445
        %v3094 = vpop.f32.mrb[0].mxu0
        %v3095 = vadd.f32 0.0, %v3094
        %v3096 = vpop.f32.mrb[0].mxu0
        %v3097 = vpop.f32.mrb[0].mxu0
        %v3098 = vadd.f32 0.0, %v3097
        %v3099 = vpop.f32.mrb[0].mxu0
        %3100 = vmatprep.mubr.bf16.mxu0 0
        %3101 = vmatmul.mubr.bf16.gmra.mrb[0].mxu0 %v448
        %v3102 = vpop.f32.mrb[0].mxu0
        %v3103 = vadd.f32 0.0, %v3102
        %v3104 = vpop.f32.mrb[0].mxu0
        %v3105 = vpop.f32.mrb[0].mxu0
        %v3106 = vadd.f32 0.0, %v3105
        %v3107 = vpop.f32.mrb[0].mxu0
        %3108 = vmatprep.mubr.bf16.mxu0 0
        %3109 = vmatmul.mubr.bf16.gmra.mrb[0].mxu0 %v451
        %v3110 = vpop.f32.mrb[0].mxu0
        %v3111 = vadd.f32 0.0, %v3110
        %v3112 = vpop.f32.mrb[0].mxu0
        %v3113 = vpop.f32.mrb[0].mxu0
        %v3114 = vadd.f32 0.0, %v3113
        %v3115 = vpop.f32.mrb[0].mxu0
        %3116 = vmatprep.mubr.bf16.mxu0 0
        %3117 = vmatmul.mubr.bf16.gmra.mrb[0].mxu0 %v454
        %v3118 = vpop.f32.mrb[0].mxu0
        %v3119 = vadd.f32 0.0, %v3118
        %v3120 = vpop.f32.mrb[0].mxu0
        %v3121 = vpop.f32.mrb[0].mxu0
        %v3122 = vadd.f32 0.0, %v3121
        %v3123 = vpop.f32.mrb[0].mxu0
        %3124 = vmatprep.mubr.bf16.mxu0 0
        %3125 = vmatmul.mubr.bf16.gmra.mrb[0].mxu0 %v457
        %v3126 = vpop.f32.mrb[0].mxu0
        %v3127 = vadd.f32 0.0, %v3126
        %v3128 = vpop.f32.mrb[0].mxu0
        %v3129 = vpop.f32.mrb[0].mxu0
        %v3130 = vadd.f32 0.0, %v3129
        %v3131 = vpop.f32.mrb[0].mxu0
        %3132 = vmatprep.mubr.bf16.mxu0 0
        %3133 = vmatmul.mubr.bf16.gmra.mrb[0].mxu0 %v460
        %v3134 = vpop.f32.mrb[0].mxu0
        %v3135 = vadd.f32 0.0, %v3134
        %v3136 = vpop.f32.mrb[0].mxu0
        %v3137 = vpop.f32.mrb[0].mxu0
        %v3138 = vadd.f32 0.0, %v3137
        %v3139 = vpop.f32.mrb[0].mxu0
        %3140 = vmatprep.mubr.bf16.mxu0 0
        %3141 = vmatmul.mubr.bf16.gmra.mrb[0].mxu0 %v463
        %v3142 = vpop.f32.mrb[0].mxu0
        %v3143 = vadd.f32 0.0, %v3142
        %v3144 = vpop.f32.mrb[0].mxu0
        %v3145 = vpop.f32.mrb[0].mxu0
        %v3146 = vadd.f32 0.0, %v3145
        %v3147 = vpop.f32.mrb[0].mxu0
        %3148 = vmatprep.mubr.bf16.mxu0 0
        %3149 = vmatmul.mubr.bf16.gmra.mrb[0].mxu0 %v466
        %v3150 = vpop.f32.mrb[0].mxu0
        %v3151 = vadd.f32 0.0, %v3150
        %v3152 = vpop.f32.mrb[0].mxu0
        %v3153 = vpop.f32.mrb[0].mxu0
        %v3154 = vadd.f32 0.0, %v3153
        %v3155 = vpop.f32.mrb[0].mxu0
        %3156 = vdwg.mxu0
        %v3157 = vpack.c.bf16 %v3098, %v3095
        %v3158 = vpack.c.bf16 %v3106, %v3103
        %v3159 = vpack.c.bf16 %v3114, %v3111
        %v3160 = vpack.c.bf16 %v3122, %v3119
        %v3161 = vpack.c.bf16 %v3130, %v3127
        %v3162 = vpack.c.bf16 %v3138, %v3135
        %v3163 = vpack.c.bf16 %v3146, %v3143
        %v3164 = vpack.c.bf16 %v3154, %v3151
        %v3166 = vsel %vm443, %v3157, 0
        %v3169 = vsel %vm443, %v3158, 0
        %v3172 = vsel %vm443, %v3159, 0
        %v3175 = vsel %vm443, %v3160, 0
        %v3178 = vsel %vm443, %v3161, 0
        %v3181 = vsel %vm443, %v3162, 0
        %v3184 = vsel %vm443, %v3163, 0
        %v3187 = vsel %vm443, %v3164, 0
        %3189 = vmatprep.subr.bf16.mxu0 %v586
        %3190 = vmatpush1.bf16.msra.mxu0 %v585
        %3191 = vmatprep.subr.bf16.mxu0 %v588
        %3192 = vmatpush1.bf16.msra.mxu0 %v587
        %3193 = vmatprep.subr.bf16.mxu0 0
        %3194 = vmatpush1.bf16.msra.mxu0 0
        %3195 = vmatprep.subr.bf16.mxu0 0
        %3196 = vmatpush1.bf16.msra.mxu0 0
        %3197 = vmatprep.subr.bf16.mxu0 0
        %3198 = vmatpush1.bf16.msra.mxu0 0
        %3199 = vmatprep.subr.bf16.mxu0 0
        %3200 = vmatpush1.bf16.msra.mxu0 0
        %3201 = vmatprep.subr.bf16.mxu0 0
        %3202 = vmatpush1.bf16.msra.mxu0 0
        %3203 = vmatprep.subr.bf16.mxu0 0
        %3204 = vmatpush1.bf16.msra.mxu0 0
        %3205 = vmatprep.subr.bf16.mxu0 0
        %3206 = vmatpush1.bf16.msra.mxu0 0
        %3207 = vmatprep.subr.bf16.mxu0 0
        %3208 = vmatpush1.bf16.msra.mxu0 0
        %3209 = vmatprep.subr.bf16.mxu0 0
        %3210 = vmatpush1.bf16.msra.mxu0 0
        %3211 = vmatprep.subr.bf16.mxu0 0
        %3212 = vmatpush1.bf16.msra.mxu0 0
        %3213 = vmatprep.subr.bf16.mxu0 0
        %3214 = vmatpush1.bf16.msra.mxu0 0
        %3215 = vmatprep.subr.bf16.mxu0 0
        %3216 = vmatpush1.bf16.msra.mxu0 0
        %3217 = vmatprep.subr.bf16.mxu0 0
        %3218 = vmatpush1.bf16.msra.mxu0 0
        %3219 = vmatprep.subr.bf16.mxu0 0
        %3220 = vmatpush1.bf16.msra.mxu0 0
        %3221 = vmatprep.mubr.bf16.mxu0 0
        %3222 = vmatmul.mubr.bf16.gmra.mrb[0].mxu0 %v3166
        %v3223 = vpop.f32.mrb[0].mxu0
        %v3224 = vadd.f32 0.0, %v3223
        %v3225 = vpop.f32.mrb[0].mxu0
        %v3226 = vadd.f32 0.0, %v3225
        %v3227 = vpop.f32.mrb[0].mxu0
        %v3228 = vadd.f32 0.0, %v3227
        %v3229 = vpop.f32.mrb[0].mxu0
        %v3230 = vadd.f32 0.0, %v3229
        %3231 = vmatprep.mubr.bf16.mxu0 0
        %3232 = vmatmul.mubr.bf16.gmra.mrb[0].mxu0 %v3169
        %v3233 = vpop.f32.mrb[0].mxu0
        %v3234 = vadd.f32 0.0, %v3233
        %v3235 = vpop.f32.mrb[0].mxu0
        %v3236 = vadd.f32 0.0, %v3235
        %v3237 = vpop.f32.mrb[0].mxu0
        %v3238 = vadd.f32 0.0, %v3237
        %v3239 = vpop.f32.mrb[0].mxu0
        %v3240 = vadd.f32 0.0, %v3239
        %3241 = vmatprep.mubr.bf16.mxu0 0
        %3242 = vmatmul.mubr.bf16.gmra.mrb[0].mxu0 %v3172
        %v3243 = vpop.f32.mrb[0].mxu0
        %v3244 = vadd.f32 0.0, %v3243
        %v3245 = vpop.f32.mrb[0].mxu0
        %v3246 = vadd.f32 0.0, %v3245
        %v3247 = vpop.f32.mrb[0].mxu0
        %v3248 = vadd.f32 0.0, %v3247
        %v3249 = vpop.f32.mrb[0].mxu0
        %v3250 = vadd.f32 0.0, %v3249
        %3251 = vmatprep.mubr.bf16.mxu0 0
        %3252 = vmatmul.mubr.bf16.gmra.mrb[0].mxu0 %v3175
        %v3253 = vpop.f32.mrb[0].mxu0
        %v3254 = vadd.f32 0.0, %v3253
        %v3255 = vpop.f32.mrb[0].mxu0
        %v3256 = vadd.f32 0.0, %v3255
        %v3257 = vpop.f32.mrb[0].mxu0
        %v3258 = vadd.f32 0.0, %v3257
        %v3259 = vpop.f32.mrb[0].mxu0
        %v3260 = vadd.f32 0.0, %v3259
        %3261 = vmatprep.mubr.bf16.mxu0 0
        %3262 = vmatmul.mubr.bf16.gmra.mrb[0].mxu0 %v3178
        %v3263 = vpop.f32.mrb[0].mxu0
        %v3264 = vadd.f32 0.0, %v3263
        %v3265 = vpop.f32.mrb[0].mxu0
        %v3266 = vadd.f32 0.0, %v3265
        %v3267 = vpop.f32.mrb[0].mxu0
        %v3268 = vadd.f32 0.0, %v3267
        %v3269 = vpop.f32.mrb[0].mxu0
        %v3270 = vadd.f32 0.0, %v3269
        %3271 = vmatprep.mubr.bf16.mxu0 0
        %3272 = vmatmul.mubr.bf16.gmra.mrb[0].mxu0 %v3181
        %v3273 = vpop.f32.mrb[0].mxu0
        %v3274 = vadd.f32 0.0, %v3273
        %v3275 = vpop.f32.mrb[0].mxu0
        %v3276 = vadd.f32 0.0, %v3275
        %v3277 = vpop.f32.mrb[0].mxu0
        %v3278 = vadd.f32 0.0, %v3277
        %v3279 = vpop.f32.mrb[0].mxu0
        %v3280 = vadd.f32 0.0, %v3279
        %3281 = vmatprep.mubr.bf16.mxu0 0
        %3282 = vmatmul.mubr.bf16.gmra.mrb[0].mxu0 %v3184
        %v3283 = vpop.f32.mrb[0].mxu0
        %v3284 = vadd.f32 0.0, %v3283
        %v3285 = vpop.f32.mrb[0].mxu0
        %v3286 = vadd.f32 0.0, %v3285
        %v3287 = vpop.f32.mrb[0].mxu0
        %v3288 = vadd.f32 0.0, %v3287
        %v3289 = vpop.f32.mrb[0].mxu0
        %v3290 = vadd.f32 0.0, %v3289
        %3291 = vmatprep.mubr.bf16.mxu0 0
        %3292 = vmatmul.mubr.bf16.gmra.mrb[0].mxu0 %v3187
        %v3293 = vpop.f32.mrb[0].mxu0
        %v3294 = vadd.f32 0.0, %v3293
        %v3295 = vpop.f32.mrb[0].mxu0
        %v3296 = vadd.f32 0.0, %v3295
        %v3297 = vpop.f32.mrb[0].mxu0
        %v3298 = vadd.f32 0.0, %v3297
        %v3299 = vpop.f32.mrb[0].mxu0
        %v3300 = vadd.f32 0.0, %v3299
        %3301 = vdwg.mxu0
        %v3302 = vmax.f32 %v2659, %v3224
        %v3303 = vmax.f32 %v2660, %v3226
        %v3304 = vmax.f32 %v2661, %v3228
        %v3305 = vmax.f32 %v2662, %v3230
        %v3306 = vmax.f32 %v2663, %v3234
        %v3307 = vmax.f32 %v2664, %v3236
        %v3308 = vmax.f32 %v2665, %v3238
        %v3309 = vmax.f32 %v2666, %v3240
        %v3310 = vmax.f32 %v2667, %v3244
        %v3311 = vmax.f32 %v2668, %v3246
        %v3312 = vmax.f32 %v2669, %v3248
        %v3313 = vmax.f32 %v2670, %v3250
        %v3314 = vmax.f32 %v2671, %v3254
        %v3315 = vmax.f32 %v2672, %v3256
        %v3316 = vmax.f32 %v2673, %v3258
        %v3317 = vmax.f32 %v2674, %v3260
        %v3318 = vmax.f32 %v2675, %v3264
        %v3319 = vmax.f32 %v2676, %v3266
        %v3320 = vmax.f32 %v2677, %v3268
        %v3321 = vmax.f32 %v2678, %v3270
        %v3322 = vmax.f32 %v2679, %v3274
        %v3323 = vmax.f32 %v2680, %v3276
        %v3324 = vmax.f32 %v2681, %v3278
        %v3325 = vmax.f32 %v2682, %v3280
        %v3326 = vmax.f32 %v2683, %v3284
        %v3327 = vmax.f32 %v2684, %v3286
        %v3328 = vmax.f32 %v2685, %v3288
        %v3329 = vmax.f32 %v2686, %v3290
        %v3330 = vmax.f32 %v2687, %v3294
        %v3331 = vmax.f32 %v2688, %v3296
        %v3332 = vmax.f32 %v2689, %v3298
        %v3333 = vmax.f32 %v2690, %v3300
        %v3334 = vsub.f32 %v2659, %v3302
        %v3335 = vsub.f32 %v2660, %v3303
        %v3336 = vsub.f32 %v2661, %v3304
        %v3337 = vsub.f32 %v2662, %v3305
        %v3338 = vsub.f32 %v2663, %v3306
        %v3339 = vsub.f32 %v2664, %v3307
        %v3340 = vsub.f32 %v2665, %v3308
        %v3341 = vsub.f32 %v2666, %v3309
        %v3342 = vsub.f32 %v2667, %v3310
        %v3343 = vsub.f32 %v2668, %v3311
        %v3344 = vsub.f32 %v2669, %v3312
        %v3345 = vsub.f32 %v2670, %v3313
        %v3346 = vsub.f32 %v2671, %v3314
        %v3347 = vsub.f32 %v2672, %v3315
        %v3348 = vsub.f32 %v2673, %v3316
        %v3349 = vsub.f32 %v2674, %v3317
        %v3350 = vsub.f32 %v2675, %v3318
        %v3351 = vsub.f32 %v2676, %v3319
        %v3352 = vsub.f32 %v2677, %v3320
        %v3353 = vsub.f32 %v2678, %v3321
        %v3354 = vsub.f32 %v2679, %v3322
        %v3355 = vsub.f32 %v2680, %v3323
        %v3356 = vsub.f32 %v2681, %v3324
        %v3357 = vsub.f32 %v2682, %v3325
        %v3358 = vsub.f32 %v2683, %v3326
        %v3359 = vsub.f32 %v2684, %v3327
        %v3360 = vsub.f32 %v2685, %v3328
        %v3361 = vsub.f32 %v2686, %v3329
        %v3362 = vsub.f32 %v2687, %v3330
        %v3363 = vsub.f32 %v2688, %v3331
        %v3364 = vsub.f32 %v2689, %v3332
        %v3365 = vsub.f32 %v2690, %v3333
        %v3366 = vmul.f32 %v3334, 1.442695
        %v3367 = vpow.pop %v3366
        %v3368 = vmul.f32 %v3335, 1.442695
        %v3369 = vpow.pop %v3368
        %v3370 = vmul.f32 %v3336, 1.442695
        %v3371 = vpow.pop %v3370
        %v3372 = vmul.f32 %v3337, 1.442695
        %v3373 = vpow.pop %v3372
        %v3374 = vmul.f32 %v3338, 1.442695
        %v3375 = vpow.pop %v3374
        %v3376 = vmul.f32 %v3339, 1.442695
        %v3377 = vpow.pop %v3376
        %v3378 = vmul.f32 %v3340, 1.442695
        %v3379 = vpow.pop %v3378
        %v3380 = vmul.f32 %v3341, 1.442695
        %v3381 = vpow.pop %v3380
        %v3382 = vmul.f32 %v3342, 1.442695
        %v3383 = vpow.pop %v3382
        %v3384 = vmul.f32 %v3343, 1.442695
        %v3385 = vpow.pop %v3384
        %v3386 = vmul.f32 %v3344, 1.442695
        %v3387 = vpow.pop %v3386
        %v3388 = vmul.f32 %v3345, 1.442695
        %v3389 = vpow.pop %v3388
        %v3390 = vmul.f32 %v3346, 1.442695
        %v3391 = vpow.pop %v3390
        %v3392 = vmul.f32 %v3347, 1.442695
        %v3393 = vpow.pop %v3392
        %v3394 = vmul.f32 %v3348, 1.442695
        %v3395 = vpow.pop %v3394
        %v3396 = vmul.f32 %v3349, 1.442695
        %v3397 = vpow.pop %v3396
        %v3398 = vmul.f32 %v3350, 1.442695
        %v3399 = vpow.pop %v3398
        %v3400 = vmul.f32 %v3351, 1.442695
        %v3401 = vpow.pop %v3400
        %v3402 = vmul.f32 %v3352, 1.442695
        %v3403 = vpow.pop %v3402
        %v3404 = vmul.f32 %v3353, 1.442695
        %v3405 = vpow.pop %v3404
        %v3406 = vmul.f32 %v3354, 1.442695
        %v3407 = vpow.pop %v3406
        %v3408 = vmul.f32 %v3355, 1.442695
        %v3409 = vpow.pop %v3408
        %v3410 = vmul.f32 %v3356, 1.442695
        %v3411 = vpow.pop %v3410
        %v3412 = vmul.f32 %v3357, 1.442695
        %v3413 = vpow.pop %v3412
        %v3414 = vmul.f32 %v3358, 1.442695
        %v3415 = vpow.pop %v3414
        %v3416 = vmul.f32 %v3359, 1.442695
        %v3417 = vpow.pop %v3416
        %v3418 = vmul.f32 %v3360, 1.442695
        %v3419 = vpow.pop %v3418
        %v3420 = vmul.f32 %v3361, 1.442695
        %v3421 = vpow.pop %v3420
        %v3422 = vmul.f32 %v3362, 1.442695
        %v3423 = vpow.pop %v3422
        %v3424 = vmul.f32 %v3363, 1.442695
        %v3425 = vpow.pop %v3424
        %v3426 = vmul.f32 %v3364, 1.442695
        %v3427 = vpow.pop %v3426
        %v3428 = vmul.f32 %v3365, 1.442695
        %v3429 = vpow.pop %v3428
        %v3430 = vmul.f32 %v2915, %v3367
        %v3431 = vmul.f32 %v2916, %v3369
        %v3432 = vmul.f32 %v2917, %v3371
        %v3433 = vmul.f32 %v2918, %v3373
        %v3434 = vmul.f32 %v2919, %v3375
        %v3435 = vmul.f32 %v2920, %v3377
        %v3436 = vmul.f32 %v2921, %v3379
        %v3437 = vmul.f32 %v2922, %v3381
        %v3438 = vmul.f32 %v2923, %v3383
        %v3439 = vmul.f32 %v2924, %v3385
        %v3440 = vmul.f32 %v2925, %v3387
        %v3441 = vmul.f32 %v2926, %v3389
        %v3442 = vmul.f32 %v2927, %v3391
        %v3443 = vmul.f32 %v2928, %v3393
        %v3444 = vmul.f32 %v2929, %v3395
        %v3445 = vmul.f32 %v2930, %v3397
        %v3446 = vmul.f32 %v2931, %v3399
        %v3447 = vmul.f32 %v2932, %v3401
        %v3448 = vmul.f32 %v2933, %v3403
        %v3449 = vmul.f32 %v2934, %v3405
        %v3450 = vmul.f32 %v2935, %v3407
        %v3451 = vmul.f32 %v2936, %v3409
        %v3452 = vmul.f32 %v2937, %v3411
        %v3453 = vmul.f32 %v2938, %v3413
        %v3454 = vmul.f32 %v2939, %v3415
        %v3455 = vmul.f32 %v2940, %v3417
        %v3456 = vmul.f32 %v2941, %v3419
        %v3457 = vmul.f32 %v2942, %v3421
        %v3458 = vmul.f32 %v2943, %v3423
        %v3459 = vmul.f32 %v2944, %v3425
        %v3460 = vmul.f32 %v2945, %v3427
        %v3461 = vmul.f32 %v2946, %v3429
        %v3462 = vsub.f32 %v3224, %v3302
        %v3463 = vsub.f32 %v3226, %v3303
        %v3464 = vsub.f32 %v3228, %v3304
        %v3465 = vsub.f32 %v3230, %v3305
        %v3466 = vsub.f32 %v3234, %v3306
        %v3467 = vsub.f32 %v3236, %v3307
        %v3468 = vsub.f32 %v3238, %v3308
        %v3469 = vsub.f32 %v3240, %v3309
        %v3470 = vsub.f32 %v3244, %v3310
        %v3471 = vsub.f32 %v3246, %v3311
        %v3472 = vsub.f32 %v3248, %v3312
        %v3473 = vsub.f32 %v3250, %v3313
        %v3474 = vsub.f32 %v3254, %v3314
        %v3475 = vsub.f32 %v3256, %v3315
        %v3476 = vsub.f32 %v3258, %v3316
        %v3477 = vsub.f32 %v3260, %v3317
        %v3478 = vsub.f32 %v3264, %v3318
        %v3479 = vsub.f32 %v3266, %v3319
        %v3480 = vsub.f32 %v3268, %v3320
        %v3481 = vsub.f32 %v3270, %v3321
        %v3482 = vsub.f32 %v3274, %v3322
        %v3483 = vsub.f32 %v3276, %v3323
        %v3484 = vsub.f32 %v3278, %v3324
        %v3485 = vsub.f32 %v3280, %v3325
        %v3486 = vsub.f32 %v3284, %v3326
        %v3487 = vsub.f32 %v3286, %v3327
        %v3488 = vsub.f32 %v3288, %v3328
        %v3489 = vsub.f32 %v3290, %v3329
        %v3490 = vsub.f32 %v3294, %v3330
        %v3491 = vsub.f32 %v3296, %v3331
        %v3492 = vsub.f32 %v3298, %v3332
        %v3493 = vsub.f32 %v3300, %v3333
        %v3494 = vmul.f32 %v3462, 1.442695
        %v3495 = vpow.pop %v3494
        %v3496 = vmul.f32 %v3463, 1.442695
        %v3497 = vpow.pop %v3496
        %v3498 = vmul.f32 %v3464, 1.442695
        %v3499 = vpow.pop %v3498
        %v3500 = vmul.f32 %v3465, 1.442695
        %v3501 = vpow.pop %v3500
        %v3502 = vmul.f32 %v3466, 1.442695
        %v3503 = vpow.pop %v3502
        %v3504 = vmul.f32 %v3467, 1.442695
        %v3505 = vpow.pop %v3504
        %v3506 = vmul.f32 %v3468, 1.442695
        %v3507 = vpow.pop %v3506
        %v3508 = vmul.f32 %v3469, 1.442695
        %v3509 = vpow.pop %v3508
        %v3510 = vmul.f32 %v3470, 1.442695
        %v3511 = vpow.pop %v3510
        %v3512 = vmul.f32 %v3471, 1.442695
        %v3513 = vpow.pop %v3512
        %v3514 = vmul.f32 %v3472, 1.442695
        %v3515 = vpow.pop %v3514
        %v3516 = vmul.f32 %v3473, 1.442695
        %v3517 = vpow.pop %v3516
        %v3518 = vmul.f32 %v3474, 1.442695
        %v3519 = vpow.pop %v3518
        %v3520 = vmul.f32 %v3475, 1.442695
        %v3521 = vpow.pop %v3520
        %v3522 = vmul.f32 %v3476, 1.442695
        %v3523 = vpow.pop %v3522
        %v3524 = vmul.f32 %v3477, 1.442695
        %v3525 = vpow.pop %v3524
        %v3526 = vmul.f32 %v3478, 1.442695
        %v3527 = vpow.pop %v3526
        %v3528 = vmul.f32 %v3479, 1.442695
        %v3529 = vpow.pop %v3528
        %v3530 = vmul.f32 %v3480, 1.442695
        %v3531 = vpow.pop %v3530
        %v3532 = vmul.f32 %v3481, 1.442695
        %v3533 = vpow.pop %v3532
        %v3534 = vmul.f32 %v3482, 1.442695
        %v3535 = vpow.pop %v3534
        %v3536 = vmul.f32 %v3483, 1.442695
        %v3537 = vpow.pop %v3536
        %v3538 = vmul.f32 %v3484, 1.442695
        %v3539 = vpow.pop %v3538
        %v3540 = vmul.f32 %v3485, 1.442695
        %v3541 = vpow.pop %v3540
        %v3542 = vmul.f32 %v3486, 1.442695
        %v3543 = vpow.pop %v3542
        %v3544 = vmul.f32 %v3487, 1.442695
        %v3545 = vpow.pop %v3544
        %v3546 = vmul.f32 %v3488, 1.442695
        %v3547 = vpow.pop %v3546
        %v3548 = vmul.f32 %v3489, 1.442695
        %v3549 = vpow.pop %v3548
        %v3550 = vmul.f32 %v3490, 1.442695
        %v3551 = vpow.pop %v3550
        %v3552 = vmul.f32 %v3491, 1.442695
        %v3553 = vpow.pop %v3552
        %v3554 = vmul.f32 %v3492, 1.442695
        %v3555 = vpow.pop %v3554
        %v3556 = vmul.f32 %v3493, 1.442695
        %v3557 = vpow.pop %v3556
        %v3558 = vadd.f32 %v3430, %v3495
        %v3559 = vadd.f32 %v3431, %v3497
        %v3560 = vadd.f32 %v3432, %v3499
        %v3561 = vadd.f32 %v3433, %v3501
        %v3562 = vadd.f32 %v3434, %v3503
        %v3563 = vadd.f32 %v3435, %v3505
        %v3564 = vadd.f32 %v3436, %v3507
        %v3565 = vadd.f32 %v3437, %v3509
        %v3566 = vadd.f32 %v3438, %v3511
        %v3567 = vadd.f32 %v3439, %v3513
        %v3568 = vadd.f32 %v3440, %v3515
        %v3569 = vadd.f32 %v3441, %v3517
        %v3570 = vadd.f32 %v3442, %v3519
        %v3571 = vadd.f32 %v3443, %v3521
        %v3572 = vadd.f32 %v3444, %v3523
        %v3573 = vadd.f32 %v3445, %v3525
        %v3574 = vadd.f32 %v3446, %v3527
        %v3575 = vadd.f32 %v3447, %v3529
        %v3576 = vadd.f32 %v3448, %v3531
        %v3577 = vadd.f32 %v3449, %v3533
        %v3578 = vadd.f32 %v3450, %v3535
        %v3579 = vadd.f32 %v3451, %v3537
        %v3580 = vadd.f32 %v3452, %v3539
        %v3581 = vadd.f32 %v3453, %v3541
        %v3582 = vadd.f32 %v3454, %v3543
        %v3583 = vadd.f32 %v3455, %v3545
        %v3584 = vadd.f32 %v3456, %v3547
        %v3585 = vadd.f32 %v3457, %v3549
        %v3586 = vadd.f32 %v3458, %v3551
        %v3587 = vadd.f32 %v3459, %v3553
        %v3588 = vadd.f32 %v3460, %v3555
        %v3589 = vadd.f32 %v3461, %v3557
        %vm3590 = vcmp.eq.s32.totalorder %v355, 4
        %vm3591 = vcmp.eq.s32.totalorder %v356, 4
        %vm3592 = vcmp.eq.s32.totalorder %v357, 4
        %vm3593 = vcmp.eq.s32.totalorder %v358, 4
        %vm3594 = vcmp.eq.s32.totalorder %v359, 4
        %vm3595 = vcmp.eq.s32.totalorder %v360, 4
        %vm3596 = vcmp.eq.s32.totalorder %v361, 4
        %vm3597 = vcmp.eq.s32.totalorder %v362, 4
        %vm3598 = vcmp.eq.s32.totalorder %v363, 4
        %vm3599 = vcmp.eq.s32.totalorder %v364, 4
        %vm3600 = vcmp.eq.s32.totalorder %v365, 4
        %vm3601 = vcmp.eq.s32.totalorder %v366, 4
        %vm3602 = vcmp.eq.s32.totalorder %v367, 4
        %vm3603 = vcmp.eq.s32.totalorder %v368, 4
        %vm3604 = vcmp.eq.s32.totalorder %v369, 4
        %vm3605 = vcmp.eq.s32.totalorder %v370, 4
        %vm3606 = vcmp.eq.s32.totalorder %v371, 4
        %vm3607 = vcmp.eq.s32.totalorder %v372, 4
        %vm3608 = vcmp.eq.s32.totalorder %v373, 4
        %vm3609 = vcmp.eq.s32.totalorder %v374, 4
        %vm3610 = vcmp.eq.s32.totalorder %v375, 4
        %vm3611 = vcmp.eq.s32.totalorder %v376, 4
        %vm3612 = vcmp.eq.s32.totalorder %v377, 4
        %vm3613 = vcmp.eq.s32.totalorder %v378, 4
        %vm3614 = vcmp.eq.s32.totalorder %v379, 4
        %vm3615 = vcmp.eq.s32.totalorder %v380, 4
        %vm3616 = vcmp.eq.s32.totalorder %v381, 4
        %vm3617 = vcmp.eq.s32.totalorder %v382, 4
        %vm3618 = vcmp.eq.s32.totalorder %v383, 4
        %vm3619 = vcmp.eq.s32.totalorder %v384, 4
        %vm3620 = vcmp.eq.s32.totalorder %v385, 4
        %vm3621 = vcmp.eq.s32.totalorder %v386, 4
        %v3622 = vsel %vm3590, %v3224, 0.0
        %v3623 = vsel %vm3591, %v3226, 0.0
        %v3624 = vsel %vm3592, %v3228, 0.0
        %v3625 = vsel %vm3593, %v3230, 0.0
        %v3626 = vsel %vm3594, %v3234, 0.0
        %v3627 = vsel %vm3595, %v3236, 0.0
        %v3628 = vsel %vm3596, %v3238, 0.0
        %v3629 = vsel %vm3597, %v3240, 0.0
        %v3630 = vsel %vm3598, %v3244, 0.0
        %v3631 = vsel %vm3599, %v3246, 0.0
        %v3632 = vsel %vm3600, %v3248, 0.0
        %v3633 = vsel %vm3601, %v3250, 0.0
        %v3634 = vsel %vm3602, %v3254, 0.0
        %v3635 = vsel %vm3603, %v3256, 0.0
        %v3636 = vsel %vm3604, %v3258, 0.0
        %v3637 = vsel %vm3605, %v3260, 0.0
        %v3638 = vsel %vm3606, %v3264, 0.0
        %v3639 = vsel %vm3607, %v3266, 0.0
        %v3640 = vsel %vm3608, %v3268, 0.0
        %v3641 = vsel %vm3609, %v3270, 0.0
        %v3642 = vsel %vm3610, %v3274, 0.0
        %v3643 = vsel %vm3611, %v3276, 0.0
        %v3644 = vsel %vm3612, %v3278, 0.0
        %v3645 = vsel %vm3613, %v3280, 0.0
        %v3646 = vsel %vm3614, %v3284, 0.0
        %v3647 = vsel %vm3615, %v3286, 0.0
        %v3648 = vsel %vm3616, %v3288, 0.0
        %v3649 = vsel %vm3617, %v3290, 0.0
        %v3650 = vsel %vm3618, %v3294, 0.0
        %v3651 = vsel %vm3619, %v3296, 0.0
        %v3652 = vsel %vm3620, %v3298, 0.0
        %v3653 = vsel %vm3621, %v3300, 0.0
        %v3654 = vadd.f32 %v3011, %v3622
        %v3655 = vadd.f32 %v3012, %v3623
        %v3656 = vadd.f32 %v3013, %v3624
        %v3657 = vadd.f32 %v3014, %v3625
        %v3658 = vadd.f32 %v3015, %v3626
        %v3659 = vadd.f32 %v3016, %v3627
        %v3660 = vadd.f32 %v3017, %v3628
        %v3661 = vadd.f32 %v3018, %v3629
        %v3662 = vadd.f32 %v3019, %v3630
        %v3663 = vadd.f32 %v3020, %v3631
        %v3664 = vadd.f32 %v3021, %v3632
        %v3665 = vadd.f32 %v3022, %v3633
        %v3666 = vadd.f32 %v3023, %v3634
        %v3667 = vadd.f32 %v3024, %v3635
        %v3668 = vadd.f32 %v3025, %v3636
        %v3669 = vadd.f32 %v3026, %v3637
        %v3670 = vadd.f32 %v3027, %v3638
        %v3671 = vadd.f32 %v3028, %v3639
        %v3672 = vadd.f32 %v3029, %v3640
        %v3673 = vadd.f32 %v3030, %v3641
        %v3674 = vadd.f32 %v3031, %v3642
        %v3675 = vadd.f32 %v3032, %v3643
        %v3676 = vadd.f32 %v3033, %v3644
        %v3677 = vadd.f32 %v3034, %v3645
        %v3678 = vadd.f32 %v3035, %v3646
        %v3679 = vadd.f32 %v3036, %v3647
        %v3680 = vadd.f32 %v3037, %v3648
        %v3681 = vadd.f32 %v3038, %v3649
        %v3682 = vadd.f32 %v3039, %v3650
        %v3683 = vadd.f32 %v3040, %v3651
        %v3684 = vadd.f32 %v3041, %v3652
        %v3685 = vadd.f32 %v3042, %v3653
        %v3686 = vlog2.pop %v3558
        %v3687 = vmul.f32 %v3686, 0.6931472
        %v3688 = vlog2.pop %v3559
        %v3689 = vmul.f32 %v3688, 0.6931472
        %v3690 = vlog2.pop %v3560
        %v3691 = vmul.f32 %v3690, 0.6931472
        %v3692 = vlog2.pop %v3561
        %v3693 = vmul.f32 %v3692, 0.6931472
        %v3694 = vlog2.pop %v3562
        %v3695 = vmul.f32 %v3694, 0.6931472
        %v3696 = vlog2.pop %v3563
        %v3697 = vmul.f32 %v3696, 0.6931472
        %v3698 = vlog2.pop %v3564
        %v3699 = vmul.f32 %v3698, 0.6931472
        %v3700 = vlog2.pop %v3565
        %v3701 = vmul.f32 %v3700, 0.6931472
        %v3702 = vlog2.pop %v3566
        %v3703 = vmul.f32 %v3702, 0.6931472
        %v3704 = vlog2.pop %v3567
        %v3705 = vmul.f32 %v3704, 0.6931472
        %v3706 = vlog2.pop %v3568
        %v3707 = vmul.f32 %v3706, 0.6931472
        %v3708 = vlog2.pop %v3569
        %v3709 = vmul.f32 %v3708, 0.6931472
        %v3710 = vlog2.pop %v3570
        %v3711 = vmul.f32 %v3710, 0.6931472
        %v3712 = vlog2.pop %v3571
        %v3713 = vmul.f32 %v3712, 0.6931472
        %v3714 = vlog2.pop %v3572
        %v3715 = vmul.f32 %v3714, 0.6931472
        %v3716 = vlog2.pop %v3573
        %v3717 = vmul.f32 %v3716, 0.6931472
        %v3718 = vlog2.pop %v3574
        %v3719 = vmul.f32 %v3718, 0.6931472
        %v3720 = vlog2.pop %v3575
        %v3721 = vmul.f32 %v3720, 0.6931472
        %v3722 = vlog2.pop %v3576
        %v3723 = vmul.f32 %v3722, 0.6931472
        %v3724 = vlog2.pop %v3577
        %v3725 = vmul.f32 %v3724, 0.6931472
        %v3726 = vlog2.pop %v3578
        %v3727 = vmul.f32 %v3726, 0.6931472
        %v3728 = vlog2.pop %v3579
        %v3729 = vmul.f32 %v3728, 0.6931472
        %v3730 = vlog2.pop %v3580
        %v3731 = vmul.f32 %v3730, 0.6931472
        %v3732 = vlog2.pop %v3581
        %v3733 = vmul.f32 %v3732, 0.6931472
        %v3734 = vlog2.pop %v3582
        %v3735 = vmul.f32 %v3734, 0.6931472
        %v3736 = vlog2.pop %v3583
        %v3737 = vmul.f32 %v3736, 0.6931472
        %v3738 = vlog2.pop %v3584
        %v3739 = vmul.f32 %v3738, 0.6931472
        %v3740 = vlog2.pop %v3585
        %v3741 = vmul.f32 %v3740, 0.6931472
        %v3742 = vlog2.pop %v3586
        %v3743 = vmul.f32 %v3742, 0.6931472
        %v3744 = vlog2.pop %v3587
        %v3745 = vmul.f32 %v3744, 0.6931472
        %v3746 = vlog2.pop %v3588
        %v3747 = vmul.f32 %v3746, 0.6931472
        %v3748 = vlog2.pop %v3589
        %v3749 = vmul.f32 %v3748, 0.6931472
        %v3750 = vadd.f32 %v3687, %v3302
        %v3751 = vadd.f32 %v3689, %v3303
        %v3752 = vadd.f32 %v3691, %v3304
        %v3753 = vadd.f32 %v3693, %v3305
        %v3754 = vadd.f32 %v3695, %v3306
        %v3755 = vadd.f32 %v3697, %v3307
        %v3756 = vadd.f32 %v3699, %v3308
        %v3757 = vadd.f32 %v3701, %v3309
        %v3758 = vadd.f32 %v3703, %v3310
        %v3759 = vadd.f32 %v3705, %v3311
        %v3760 = vadd.f32 %v3707, %v3312
        %v3761 = vadd.f32 %v3709, %v3313
        %v3762 = vadd.f32 %v3711, %v3314
        %v3763 = vadd.f32 %v3713, %v3315
        %v3764 = vadd.f32 %v3715, %v3316
        %v3765 = vadd.f32 %v3717, %v3317
        %v3766 = vadd.f32 %v3719, %v3318
        %v3767 = vadd.f32 %v3721, %v3319
        %v3768 = vadd.f32 %v3723, %v3320
        %v3769 = vadd.f32 %v3725, %v3321
        %v3770 = vadd.f32 %v3727, %v3322
        %v3771 = vadd.f32 %v3729, %v3323
        %v3772 = vadd.f32 %v3731, %v3324
        %v3773 = vadd.f32 %v3733, %v3325
        %v3774 = vadd.f32 %v3735, %v3326
        %v3775 = vadd.f32 %v3737, %v3327
        %v3776 = vadd.f32 %v3739, %v3328
        %v3777 = vadd.f32 %v3741, %v3329
        %v3778 = vadd.f32 %v3743, %v3330
        %v3779 = vadd.f32 %v3745, %v3331
        %v3780 = vadd.f32 %v3747, %v3332
        %v3781 = vadd.f32 %v3749, %v3333
        %v3782 = vsub.f32 %v3750, %v3654
        %v3783 = vsub.f32 %v3751, %v3655
        %v3784 = vsub.f32 %v3752, %v3656
        %v3785 = vsub.f32 %v3753, %v3657
        %v3786 = vsub.f32 %v3754, %v3658
        %v3787 = vsub.f32 %v3755, %v3659
        %v3788 = vsub.f32 %v3756, %v3660
        %v3789 = vsub.f32 %v3757, %v3661
        %v3790 = vsub.f32 %v3758, %v3662
        %v3791 = vsub.f32 %v3759, %v3663
        %v3792 = vsub.f32 %v3760, %v3664
        %v3793 = vsub.f32 %v3761, %v3665
        %v3794 = vsub.f32 %v3762, %v3666
        %v3795 = vsub.f32 %v3763, %v3667
        %v3796 = vsub.f32 %v3764, %v3668
        %v3797 = vsub.f32 %v3765, %v3669
        %v3798 = vsub.f32 %v3766, %v3670
        %v3799 = vsub.f32 %v3767, %v3671
        %v3800 = vsub.f32 %v3768, %v3672
        %v3801 = vsub.f32 %v3769, %v3673
        %v3802 = vsub.f32 %v3770, %v3674
        %v3803 = vsub.f32 %v3771, %v3675
        %v3804 = vsub.f32 %v3772, %v3676
        %v3805 = vsub.f32 %v3773, %v3677
        %v3806 = vsub.f32 %v3774, %v3678
        %v3807 = vsub.f32 %v3775, %v3679
        %v3808 = vsub.f32 %v3776, %v3680
        %v3809 = vsub.f32 %v3777, %v3681
        %v3810 = vsub.f32 %v3778, %v3682
        %v3811 = vsub.f32 %v3779, %v3683
        %v3812 = vsub.f32 %v3780, %v3684
        %v3813 = vsub.f32 %v3781, %v3685
        %v3814 = vadd.f32 %v3782, %v3783
        %v3815 = vadd.f32 %v3814, %v3784
        %v3816 = vadd.f32 %v3815, %v3785
        %v3817 = vadd.f32 %v3816, %v3786
        %v3818 = vadd.f32 %v3817, %v3787
        %v3819 = vadd.f32 %v3818, %v3788
        %v3820 = vadd.f32 %v3819, %v3789
        %v3821 = vadd.f32 %v3820, %v3790
        %v3822 = vadd.f32 %v3821, %v3791
        %v3823 = vadd.f32 %v3822, %v3792
        %v3824 = vadd.f32 %v3823, %v3793
        %v3825 = vadd.f32 %v3824, %v3794
        %v3826 = vadd.f32 %v3825, %v3795
        %v3827 = vadd.f32 %v3826, %v3796
        %v3828 = vadd.f32 %v3827, %v3797
        %v3829 = vadd.f32 %v3828, %v3798
        %v3830 = vadd.f32 %v3829, %v3799
        %v3831 = vadd.f32 %v3830, %v3800
        %v3832 = vadd.f32 %v3831, %v3801
        %v3833 = vadd.f32 %v3832, %v3802
        %v3834 = vadd.f32 %v3833, %v3803
        %v3835 = vadd.f32 %v3834, %v3804
        %v3836 = vadd.f32 %v3835, %v3805
        %v3837 = vadd.f32 %v3836, %v3806
        %v3838 = vadd.f32 %v3837, %v3807
        %v3839 = vadd.f32 %v3838, %v3808
        %v3840 = vadd.f32 %v3839, %v3809
        %v3841 = vadd.f32 %v3840, %v3810
        %v3842 = vadd.f32 %v3841, %v3811
        %v3843 = vadd.f32 %v3842, %v3812
        %v3844 = vadd.f32 %v3843, %v3813
        %3845 = vadd.xlane.f32.xlu0 %v3844
        %v3846 = vpop.xlane.xlu0 %3845
        %v3847 = vrot.slane %v3846, 4
        %v3848 = vadd.f32 %v3846, %v3847
        %v3849 = vrot.slane %v3848, 2
        %v3850 = vadd.f32 %v3848, %v3849
        %v3851 = vrot.slane %v3850, 1
        %v3852 = vadd.f32 %v3850, %v3851
        %s3853 = vtos %v3852
        %v3854 = vlaneseq
        %v3855 = vshrl.u32 %v3854, 7
        %v3856 = vlaneseq
        %v3857 = vand.u32 %v3856, 127
        %v3858 = vld [vmem:[%s326] sm:$0xff]
        %vm3859 = vcmp.eq.s32.totalorder %v3855, 0
        %vm3860 = vcmp.eq.s32.totalorder %v3857, 0
        %vm3861 = vmand %vm3859, %vm3860
        %v3862 = vstv %s3853
        %v3863 = vsel %vm3861, %v3862, 0.0
        %v3864 = vadd.f32 %v3858, %v3863
        %3865 = vst [vmem:[%s326] sm:$0xff] %v3864
        %s3866 = sand.u32 %s148, 1
        %s3867 = scalar_lea.sflag [#allocation4], %s3866
        %s3868 = sand.u32 %s148, 1
        %s3869 = smul.addr %s3868, 8
        %s3870 = scalar_lea.vmem [#allocation10], %s3869
        // Predicated region
        $region57: #{tpu_custom_call.1} parent=35 // pred_check
          %p3871 = pneg %p158
        $region58: #{tpu_custom_call.1} parent=35 // pred_check_branch
          %3873 = sbr.rel (%p3871) target = $region60
        $region59: #{tpu_custom_call.1} parent=35 // pred_region
          %s3875 = ssub.s32 128, 128
          %3876 = vsyncadd %s3867, %s3875
          %s3877 = smul.addr %s31, 128
          %s3878 = scalar_lea.hbm %s4, %s3877
          %s3880 = sshll.u32 %s3870, 4
          %s3881 = int_to_ptr.vmem [resolvable:$true] %s3880
          %3883 = dma.vmem_to_hbm [thread:$0]  %s3881, 128, %s3878, %s3867
        $region60: #{tpu_custom_call.1} parent=35 // pred_fallthru
          _
      $region36: #{tpu_custom_call.1} parent=5 // pred_fallthru
        _
      %p3884 = scmp.le.s32.totalorder 2, %s22
      // Predicated region
      $region61: #{tpu_custom_call.1} parent=5 // pred_check
        %p3885 = pneg %p3884
      $region62: #{tpu_custom_call.1} parent=5 // pred_check_branch
        %3887 = sbr.rel (%p3885) target = $region64
      $region63: #{tpu_custom_call.1} parent=5 // pred_region
        %s3888 = ssub.s32 %s22, 2
        // Predicated region
        $region65: #{tpu_custom_call.1} parent=63 // pred_check
          %p3889 = pneg %p164
        $region66: #{tpu_custom_call.1} parent=63 // pred_check_branch
          %3891 = sbr.rel (%p3889) target = $region68
        $region67: #{tpu_custom_call.1} parent=63 // pred_region
          %s3892 = sand.u32 %s149, 1
          %s3893 = scalar_lea.sflag [#allocation4], %s3892
          %s3894 = sand.u32 %s149, 1
          %s3895 = smul.addr %s3894, 8
          %s3896 = scalar_lea.vmem [#allocation10], %s3895
          %3897 = dma.done %s3893, 128
        $region68: #{tpu_custom_call.1} parent=63 // pred_fallthru
          _
      $region64: #{tpu_custom_call.1} parent=5 // pred_fallthru
        _
    $region6: #{tpu_custom_call.1} parent=1 // loop_footer
      %s26 = sadd.s32 1, %s22
    $region7: #{tpu_custom_call.1} parent=1 // loop_footer_branch
      %21 = sbr.rel target = $region3
    $region8: #{tpu_custom_call.1} parent=1 // loop_exit
      _
    %3898 = vsyncpa [#allocation3], 1
    %s3899 = scalar_lea.sflag [#allocation3], 1
    %3900 = vsyncpa %s3899, 1
    %3901 = vsyncpa [#allocation6], 1
    %s3902 = scalar_lea.sflag [#allocation6], 1
    %3903 = vsyncpa %s3902, 1
    %3904 = vsyncpa [#allocation9], 1
    %s3905 = scalar_lea.sflag [#allocation9], 1
    %3906 = vsyncpa %s3905, 1
    %3907 = vsyncpa [#allocation4], 1
    %s3908 = scalar_lea.sflag [#allocation4], 1
    %3909 = vsyncpa %s3908, 1

</llo_original>
